<compile_context>
chip_gen: v7x
topology: tpu7x:2x2x1
jax: 0.10.0
libtpu: 0.0.40
codegen_flags: <defaults>
</compile_context>

<pallas_src>
import functools

import jax
import jax.numpy as jnp
from jax import lax
from jax.experimental import pallas as pl
from jax.experimental.pallas import tpu as pltpu


def attn_heads_kernel(x_ref, wqkvT_ref, bqkv_ref, o_ref, *, hps, hs):
    """One grid step: fused QKV projection + attention for `hps` heads.

    x_ref:      (1, L, E)
    wqkvT_ref:  (E, 3*hps*hs)  per-group column block, layout [Q | K | V]
                (Q weight/bias pre-scaled by 1/sqrt(hs) in glue)
    bqkv_ref:   (1, 3*hps*hs)  f32
    o_ref:      (1, hps, L, hs)
    """
    cdt = x_ref.dtype                       # MXU compute dtype follows the input
    approx = x_ref.dtype != jnp.float32     # EUP reciprocal only in bf16 path
    x = x_ref[0]                            # (L, E)

    # Fused QKV projection: one MXU stream, N = 3*hps*hs.
    qkv = (jnp.dot(x, wqkvT_ref[...], preferred_element_type=jnp.float32)
           + bqkv_ref[...])                 # (L, 3*hps*hs) f32
    q_all = qkv[:, 0:hps * hs].astype(cdt)              # already scaled
    k_all = qkv[:, hps * hs:2 * hps * hs].astype(cdt)
    v_all = qkv[:, 2 * hps * hs:3 * hps * hs].astype(cdt)

    for j in range(hps):                    # static unroll (hps is tiny)
        q = q_all[:, j * hs:(j + 1) * hs]
        k = k_all[:, j * hs:(j + 1) * hs]
        v = v_all[:, j * hs:(j + 1) * hs]

        # scores (L, L): contract head dims (transposed-RHS MXU mode, no relayout)
        s = lax.dot_general(q, k, (((1,), (1,)), ((), ())),
                            preferred_element_type=jnp.float32)
        s = s - jnp.max(s, axis=-1, keepdims=True)
        e = jnp.exp(s)                      # <= 1, safe to cast to bf16
        inv = pl.reciprocal(jnp.sum(e, axis=-1, keepdims=True), approx=approx)

        # Normalize AFTER the PV matmul: (L, hs) multiply instead of (L, L).
        a = jnp.dot(e.astype(cdt), v, preferred_element_type=jnp.float32)
        o_ref[0, j] = (a * inv).astype(o_ref.dtype)


def ffn_kernel(a_ref, wfT_ref, bf_ref, o_ref):
    """One M-tile of the output projection: (TM, E) @ (E, E) + (1, E)."""
    o = jnp.dot(a_ref[...], wfT_ref[...],
                preferred_element_type=jnp.float32) + bf_ref[...]
    o_ref[...] = o.astype(o_ref.dtype)


def multi_head_attention(x, params, num_head):
    bs, L, E = x.shape
    hs = E // num_head
    assert hs * num_head == E
    # TPU alignment requirements for this (fast-path) kernel.
    assert E % 128 == 0 and L % 8 == 0, (E, L)
    assert hs % 128 == 0, "head_size must be a multiple of 128 (TPU lane width)"

    dt = x.dtype
    itemsize = jnp.dtype(dt).itemsize
    scale = hs ** (-0.5)

    # Heads per grid step: widen the fused matmul / cut grid overhead while
    # keeping >= 2 grid steps (v7x has 2 TensorCores).
    HPS = 2 if (num_head % 2 == 0 and bs * (num_head // 2) >= 2) else 1
    G = num_head // HPS

    # ---- glue: fused, pre-transposed (in, out) QKV weight; scale folded into Q.
    def gcols(w):                                   # (E, E) -> (E, G, HPS*hs)
        return w.reshape(E, G, HPS * hs)

    wqT = (params["wq"].T * scale).astype(dt)
    wkT = params["wk"].T.astype(dt)
    wvT = params["wv"].T.astype(dt)
    wqkvT = jnp.concatenate([gcols(wqT), gcols(wkT), gcols(wvT)],
                            axis=2).reshape(E, 3 * E)

    def grows(b):                                   # (E,) -> (G, HPS*hs) f32
        return b.astype(jnp.float32).reshape(G, HPS * hs)

    bqkv = jnp.concatenate([grows(params["bq"] * scale), grows(params["bk"]),
                            grows(params["bv"])], axis=1).reshape(1, 3 * E)

    wfT = params["wf"].T.astype(dt)
    bf2 = params["bf"].reshape(1, E).astype(jnp.float32)

    # ---- grid ordering: make the operand that would otherwise be re-DMA'd the
    # resident (outer) axis, based on simple HBM-traffic arithmetic.
    x_blk, w_blk = L * E, E * 3 * HPS * hs
    traffic_batch_outer = bs * x_blk + (bs * G if G > 1 else 1) * w_blk
    traffic_group_outer = G * w_blk + (G * bs if bs > 1 else 1) * x_blk
    weights_outer = traffic_group_outer < traffic_batch_outer

    if weights_outer:
        grid = (G, bs)
        xidx = lambda g, b: (b, 0, 0)
        widx = lambda g, b: (0, g)
        oidx = lambda g, b: (b, g, 0, 0)
    else:
        grid = (bs, G)
        xidx = lambda b, g: (b, 0, 0)
        widx = lambda b, g: (0, g)
        oidx = lambda b, g: (b, g, 0, 0)

    attn_cost = pl.CostEstimate(
        flops=bs * 2 * L * E * 3 * E + bs * num_head * 4 * L * L * hs,
        transcendentals=bs * num_head * (L * L + L),
        bytes_accessed=int((min(traffic_batch_outer, traffic_group_outer)
                            + bs * L * E) * itemsize + 3 * E * 4),
    )

    # ---- kernel 1: fused QKV projection + attention, HPS heads per step -----
    attn = pl.pallas_call(
        functools.partial(attn_heads_kernel, hps=HPS, hs=hs),
        out_shape=jax.ShapeDtypeStruct((bs, num_head, L, hs), dt),
        grid=grid,
        in_specs=[
            pl.BlockSpec((1, L, E), xidx),                  # x
            pl.BlockSpec((E, 3 * HPS * hs), widx),          # fused QKV weight
            pl.BlockSpec((1, 3 * HPS * hs), widx),          # fused QKV bias
        ],
        out_specs=pl.BlockSpec((1, HPS, L, hs), oidx),
        compiler_params=pltpu.CompilerParams(
            dimension_semantics=("parallel", "parallel")),
        cost_estimate=attn_cost,
    )(x, wqkvT, bqkv)

    # Exact PyTorch semantics: row-major reshape of (bs, nh, L, hs) -> (bs, L, E)
    # with NO transpose back (mixes heads across sequence positions). Also merge
    # batch into the matmul M dimension for the output projection.
    a_flat = attn.reshape(bs * L, E)

    # ---- kernel 2: output projection, M-tiled over (bs * L) ------------------
    M = bs * L
    TM = M
    for cand in (512, 256, 128):            # biggest tile that keeps >= 2 steps
        if M % cand == 0 and M // cand >= 2:
            TM = cand
            break
    else:
        for cand in (512, 256, 128):        # otherwise biggest that divides M
            if M % cand == 0:
                TM = cand
                break

    ffn_cost = pl.CostEstimate(
        flops=2 * M * E * E,
        transcendentals=0,
        bytes_accessed=(2 * M * E + E * E) * itemsize + E * 4,
    )

    out = pl.pallas_call(
        ffn_kernel,
        out_shape=jax.ShapeDtypeStruct((M, E), dt),
        grid=(M // TM,),
        in_specs=[
            pl.BlockSpec((TM, E), lambda i: (i, 0)),
            # weight / bias block index never changes -> single-buffer them
            pl.BlockSpec((E, E), lambda i: (0, 0), pipeline_mode=pl.Buffered(1)),
            pl.BlockSpec((1, E), lambda i: (0, 0), pipeline_mode=pl.Buffered(1)),
        ],
        out_specs=pl.BlockSpec((TM, E), lambda i: (i, 0)),
        compiler_params=pltpu.CompilerParams(dimension_semantics=("parallel",)),
        cost_estimate=ffn_cost,
    )(a_flat, wfT, bf2)

    return out.reshape(bs, L, E)


def reference(x, params, num_head):
    """Plain-JAX replica of the PyTorch forward (for verification)."""
    bs, L, E = x.shape
    hs = E // num_head
    q = x @ params["wq"].T + params["bq"]
    k = x @ params["wk"].T + params["bk"]
    v = x @ params["wv"].T + params["bv"]
    q = q.reshape(bs, L, num_head, hs).transpose(0, 2, 1, 3)
    k = k.reshape(bs, L, num_head, hs).transpose(0, 2, 1, 3)
    v = v.reshape(bs, L, num_head, hs).transpose(0, 2, 1, 3)
    s = jnp.einsum("bhld,bhmd->bhlm", q, k) * hs ** (-0.5)
    p = jax.nn.softmax(s, axis=-1)
    a = jnp.einsum("bhlm,bhmd->bhld", p, v)
    a = a.reshape(bs, L, E)                                   # same no-permute reshape
    return a @ params["wf"].T + params["bf"]


if __name__ == "__main__":
    bs, L, E, num_head = 2, 128, 512, 4        # head_size = 128 (lane-aligned)

    key = jax.random.PRNGKey(0)
    keys = jax.random.split(key, 9)
    bound = 1.0 / (E ** 0.5)                   # PyTorch nn.Linear default init range

    def u(k, shape):
        return jax.random.uniform(k, shape, jnp.float32, -bound, bound)

    params = {
        "wq": u(keys[0], (E, E)), "bq": u(keys[1], (E,)),
        "wk": u(keys[2], (E, E)), "bk": u(keys[3], (E,)),
        "wv": u(keys[4], (E, E)), "bv": u(keys[5], (E,)),
        "wf": u(keys[6], (E, E)), "bf": u(keys[7], (E,)),
    }
    x = jax.random.normal(keys[8], (bs, L, E), jnp.float32)

    fwd = jax.jit(functools.partial(multi_head_attention, num_head=num_head))

    # f32 path: exact-reciprocal softmax, tight check against the JAX reference.
    out = fwd(x, params)
    jax.block_until_ready(out)
    ref = reference(x, params, num_head)
    assert out.shape == (bs, L, E), out.shape
    max_err = float(jnp.max(jnp.abs(out - ref)))
    assert jnp.allclose(out, ref, atol=2e-5, rtol=2e-5), max_err

    # bf16 fast path (bf16-rate MXU matmuls, f32 softmax/accumulation); loose check.
    xb = x.astype(jnp.bfloat16)
    pb = {k: v.astype(jnp.bfloat16) for k, v in params.items()}
    outb = fwd(xb, pb)
    jax.block_until_ready(outb)
    max_err_b = float(jnp.max(jnp.abs(outb.astype(jnp.float32) - ref)))
    assert max_err_b < 1e-1, max_err_b

    print("KERNEL_OK")
</pallas_src>

<mosaic_0001>
module attributes {stable_mosaic.version = 11 : i64} {
  func.func @attn_heads_kernel(%arg0: i32, %arg1: i32, %arg2: memref<1x128x512xf32, #tpu.memory_space<vmem>>, %arg3: memref<512x768xf32, #tpu.memory_space<vmem>>, %arg4: memref<1x768xf32, #tpu.memory_space<vmem>>, %arg5: memref<1x2x128x128xf32, #tpu.memory_space<vmem>>) attributes {dimension_semantics = [#tpu.dimension_semantics<parallel>, #tpu.dimension_semantics<parallel>], iteration_bounds = array<i64: 2, 2>, scalar_prefetch = 0 : i64, scratch_operands = 0 : i64, tpu.core_type = #tpu.core_type<tc>, window_params = [{transform_indices = @transform_0, window_bounds = array<i64: 1, 128, 512>}, {transform_indices = @transform_1, window_bounds = array<i64: 512, 768>}, {transform_indices = @transform_2, window_bounds = array<i64: 1, 768>}, {transform_indices = @transform_3, window_bounds = array<i64: 1, 2, 128, 128>}]} {
    %c0 = arith.constant 0 : index
    %c0_0 = arith.constant 0 : index
    %c0_1 = arith.constant 0 : index
    %0 = vector.load %arg2[%c0, %c0_0, %c0_1] : memref<1x128x512xf32, #tpu.memory_space<vmem>>, vector<1x128x512xf32>
    %1 = vector.shape_cast %0 : vector<1x128x512xf32> to vector<128x512xf32>
    %c0_2 = arith.constant 0 : index
    %c0_3 = arith.constant 0 : index
    %2 = vector.load %arg3[%c0_2, %c0_3] : memref<512x768xf32, #tpu.memory_space<vmem>>, vector<512x768xf32>
    %cst = arith.constant dense<0.000000e+00> : vector<128x768xf32>
    %3 = tpu.matmul %1, %2, %cst {dimension_numbers = #tpu.dot_dimension_numbers<[1], [0], [0], [1], [0, 0, 1, 1], [], []>} : vector<128x512xf32>, vector<512x768xf32>, vector<128x768xf32> -> vector<128x768xf32>
    %c0_4 = arith.constant 0 : index
    %c0_5 = arith.constant 0 : index
    %4 = vector.load %arg4[%c0_4, %c0_5] : memref<1x768xf32, #tpu.memory_space<vmem>>, vector<1x768xf32>
    %5 = vector.broadcast %4 : vector<1x768xf32> to vector<128x768xf32>
    %6 = arith.addf %3, %5 : vector<128x768xf32>
    %7 = vector.extract_strided_slice %6 {offsets = [0, 0], sizes = [128, 256], strides = [1, 1]} : vector<128x768xf32> to vector<128x256xf32>
    %8 = vector.extract_strided_slice %6 {offsets = [0, 256], sizes = [128, 256], strides = [1, 1]} : vector<128x768xf32> to vector<128x256xf32>
    %9 = vector.extract_strided_slice %6 {offsets = [0, 512], sizes = [128, 256], strides = [1, 1]} : vector<128x768xf32> to vector<128x256xf32>
    %10 = vector.extract_strided_slice %7 {offsets = [0, 0], sizes = [128, 128], strides = [1, 1]} : vector<128x256xf32> to vector<128x128xf32>
    %11 = vector.extract_strided_slice %8 {offsets = [0, 0], sizes = [128, 128], strides = [1, 1]} : vector<128x256xf32> to vector<128x128xf32>
    %12 = vector.extract_strided_slice %9 {offsets = [0, 0], sizes = [128, 128], strides = [1, 1]} : vector<128x256xf32> to vector<128x128xf32>
    %cst_6 = arith.constant dense<0.000000e+00> : vector<128x128xf32>
    %13 = tpu.matmul %10, %11, %cst_6 {dimension_numbers = #tpu.dot_dimension_numbers<[1], [1], [0], [0], [0, 0, 1, 0], [], []>} : vector<128x128xf32>, vector<128x128xf32>, vector<128x128xf32> -> vector<128x128xf32>
    %cst_7 = arith.constant dense<0xFF800000> : vector<128xf32>
    %14 = vector.multi_reduction <maximumf>, %13, %cst_7 [1] : vector<128x128xf32> to vector<128xf32>
    %15 = vector.shape_cast %14 : vector<128xf32> to vector<128x1xf32>
    %16 = vector.broadcast %15 : vector<128x1xf32> to vector<128x128xf32>
    %17 = arith.subf %13, %16 : vector<128x128xf32>
    %18 = math.exp %17 : vector<128x128xf32>
    %cst_8 = arith.constant dense<0.000000e+00> : vector<128xf32>
    %19 = vector.multi_reduction <add>, %18, %cst_8 [1] : vector<128x128xf32> to vector<128xf32>
    %20 = vector.shape_cast %19 : vector<128xf32> to vector<128x1xf32>
    %21 = tpu.reciprocal %20 : vector<128x1xf32> -> vector<128x1xf32>
    %cst_9 = arith.constant dense<0.000000e+00> : vector<128x128xf32>
    %22 = tpu.matmul %18, %12, %cst_9 {dimension_numbers = #tpu.dot_dimension_numbers<[1], [0], [0], [1], [0, 0, 1, 1], [], []>} : vector<128x128xf32>, vector<128x128xf32>, vector<128x128xf32> -> vector<128x128xf32>
    %23 = vector.broadcast %21 : vector<128x1xf32> to vector<128x128xf32>
    %24 = arith.mulf %22, %23 : vector<128x128xf32>
    %c0_10 = arith.constant 0 : index
    %c0_11 = arith.constant 0 : index
    %c0_12 = arith.constant 0 : index
    %c0_13 = arith.constant 0 : index
    %25 = vector.load %arg5[%c0_10, %c0_11, %c0_12, %c0_13] : memref<1x2x128x128xf32, #tpu.memory_space<vmem>>, vector<1x1x128x128xf32>
    %26 = vector.shape_cast %25 : vector<1x1x128x128xf32> to vector<128x128xf32>
    %27 = vector.shape_cast %24 : vector<128x128xf32> to vector<1x1x128x128xf32>
    tpu.vector_store %arg5[%c0_10, %c0_11, %c0_12, %c0_13], %27 {strides = array<i32>} : memref<1x2x128x128xf32, #tpu.memory_space<vmem>>, vector<1x1x128x128xf32>,
    %28 = vector.extract_strided_slice %7 {offsets = [0, 128], sizes = [128, 128], strides = [1, 1]} : vector<128x256xf32> to vector<128x128xf32>
    %29 = vector.extract_strided_slice %8 {offsets = [0, 128], sizes = [128, 128], strides = [1, 1]} : vector<128x256xf32> to vector<128x128xf32>
    %30 = vector.extract_strided_slice %9 {offsets = [0, 128], sizes = [128, 128], strides = [1, 1]} : vector<128x256xf32> to vector<128x128xf32>
    %cst_14 = arith.constant dense<0.000000e+00> : vector<128x128xf32>
    %31 = tpu.matmul %28, %29, %cst_14 {dimension_numbers = #tpu.dot_dimension_numbers<[1], [1], [0], [0], [0, 0, 1, 0], [], []>} : vector<128x128xf32>, vector<128x128xf32>, vector<128x128xf32> -> vector<128x128xf32>
    %cst_15 = arith.constant dense<0xFF800000> : vector<128xf32>
    %32 = vector.multi_reduction <maximumf>, %31, %cst_15 [1] : vector<128x128xf32> to vector<128xf32>
    %33 = vector.shape_cast %32 : vector<128xf32> to vector<128x1xf32>
    %34 = vector.broadcast %33 : vector<128x1xf32> to vector<128x128xf32>
    %35 = arith.subf %31, %34 : vector<128x128xf32>
    %36 = math.exp %35 : vector<128x128xf32>
    %cst_16 = arith.constant dense<0.000000e+00> : vector<128xf32>
    %37 = vector.multi_reduction <add>, %36, %cst_16 [1] : vector<128x128xf32> to vector<128xf32>
    %38 = vector.shape_cast %37 : vector<128xf32> to vector<128x1xf32>
    %39 = tpu.reciprocal %38 : vector<128x1xf32> -> vector<128x1xf32>
    %cst_17 = arith.constant dense<0.000000e+00> : vector<128x128xf32>
    %40 = tpu.matmul %36, %30, %cst_17 {dimension_numbers = #tpu.dot_dimension_numbers<[1], [0], [0], [1], [0, 0, 1, 1], [], []>} : vector<128x128xf32>, vector<128x128xf32>, vector<128x128xf32> -> vector<128x128xf32>
    %41 = vector.broadcast %39 : vector<128x1xf32> to vector<128x128xf32>
    %42 = arith.mulf %40, %41 : vector<128x128xf32>
    %c0_18 = arith.constant 0 : index
    %c1 = arith.constant 1 : index
    %c0_19 = arith.constant 0 : index
    %c0_20 = arith.constant 0 : index
    %43 = vector.load %arg5[%c0_18, %c1, %c0_19, %c0_20] : memref<1x2x128x128xf32, #tpu.memory_space<vmem>>, vector<1x1x128x128xf32>
    %44 = vector.shape_cast %43 : vector<1x1x128x128xf32> to vector<128x128xf32>
    %45 = vector.shape_cast %42 : vector<128x128xf32> to vector<1x1x128x128xf32>
    tpu.vector_store %arg5[%c0_18, %c1, %c0_19, %c0_20], %45 {strides = array<i32>} : memref<1x2x128x128xf32, #tpu.memory_space<vmem>>, vector<1x1x128x128xf32>,
    return
  }
  func.func @transform_0(%arg0: i32, %arg1: i32) -> (i32, i32, i32) {
    %c0_i32 = arith.constant 0 : i32
    %c0_i32_0 = arith.constant 0 : i32
    %c0_i32_1 = arith.constant 0 : i32
    return %arg1, %c0_i32, %c0_i32_0 : i32, i32, i32
  }
  func.func @transform_1(%arg0: i32, %arg1: i32) -> (i32, i32) {
    %c0_i32 = arith.constant 0 : i32
    %c0_i32_0 = arith.constant 0 : i32
    return %c0_i32, %arg0 : i32, i32
  }
  func.func @transform_2(%arg0: i32, %arg1: i32) -> (i32, i32) {
    %c0_i32 = arith.constant 0 : i32
    %c0_i32_0 = arith.constant 0 : i32
    return %c0_i32, %arg0 : i32, i32
  }
  func.func @transform_3(%arg0: i32, %arg1: i32) -> (i32, i32, i32, i32) {
    %c0_i32 = arith.constant 0 : i32
    %c0_i32_0 = arith.constant 0 : i32
    %c0_i32_1 = arith.constant 0 : i32
    return %arg1, %arg0, %c0_i32, %c0_i32_0 : i32, i32, i32, i32
  }
}

module attributes {stable_mosaic.version = 11 : i64} {
  func.func @ffn_kernel(%arg0: i32, %arg1: memref<128x512xf32, #tpu.memory_space<vmem>>, %arg2: memref<512x512xf32, #tpu.memory_space<vmem>>, %arg3: memref<1x512xf32, #tpu.memory_space<vmem>>, %arg4: memref<128x512xf32, #tpu.memory_space<vmem>>) attributes {dimension_semantics = [#tpu.dimension_semantics<parallel>], iteration_bounds = array<i64: 2>, scalar_prefetch = 0 : i64, scratch_operands = 0 : i64, tpu.core_type = #tpu.core_type<tc>, window_params = [{transform_indices = @transform_0, window_bounds = array<i64: 128, 512>}, {pipeline_mode = #tpu.pipeline_mode<synchronous>, transform_indices = @transform_1, window_bounds = array<i64: 512, 512>}, {pipeline_mode = #tpu.pipeline_mode<synchronous>, transform_indices = @transform_2, window_bounds = array<i64: 1, 512>}, {transform_indices = @transform_3, window_bounds = array<i64: 128, 512>}]} {
    %c0 = arith.constant 0 : index
    %c0_0 = arith.constant 0 : index
    %0 = vector.load %arg1[%c0, %c0_0] : memref<128x512xf32, #tpu.memory_space<vmem>>, vector<128x512xf32>
    %c0_1 = arith.constant 0 : index
    %c0_2 = arith.constant 0 : index
    %1 = vector.load %arg2[%c0_1, %c0_2] : memref<512x512xf32, #tpu.memory_space<vmem>>, vector<512x512xf32>
    %cst = arith.constant dense<0.000000e+00> : vector<128x512xf32>
    %2 = tpu.matmul %0, %1, %cst {dimension_numbers = #tpu.dot_dimension_numbers<[1], [0], [0], [1], [0, 0, 1, 1], [], []>} : vector<128x512xf32>, vector<512x512xf32>, vector<128x512xf32> -> vector<128x512xf32>
    %c0_3 = arith.constant 0 : index
    %c0_4 = arith.constant 0 : index
    %3 = vector.load %arg3[%c0_3, %c0_4] : memref<1x512xf32, #tpu.memory_space<vmem>>, vector<1x512xf32>
    %4 = vector.broadcast %3 : vector<1x512xf32> to vector<128x512xf32>
    %5 = arith.addf %2, %4 : vector<128x512xf32>
    %c0_5 = arith.constant 0 : index
    %c0_6 = arith.constant 0 : index
    %6 = vector.load %arg4[%c0_5, %c0_6] : memref<128x512xf32, #tpu.memory_space<vmem>>, vector<128x512xf32>
    tpu.vector_store %arg4[%c0_5, %c0_6], %5 {strides = array<i32>} : memref<128x512xf32, #tpu.memory_space<vmem>>, vector<128x512xf32>,
    return
  }
  func.func @transform_0(%arg0: i32) -> (i32, i32) {
    %c0_i32 = arith.constant 0 : i32
    %c0_i32_0 = arith.constant 0 : i32
    return %arg0, %c0_i32 : i32, i32
  }
  func.func @transform_1(%arg0: i32) -> (i32, i32) {
    %c0_i32 = arith.constant 0 : i32
    %c0_i32_0 = arith.constant 0 : i32
    %c0_i32_1 = arith.constant 0 : i32
    return %c0_i32, %c0_i32_0 : i32, i32
  }
  func.func @transform_2(%arg0: i32) -> (i32, i32) {
    %c0_i32 = arith.constant 0 : i32
    %c0_i32_0 = arith.constant 0 : i32
    %c0_i32_1 = arith.constant 0 : i32
    return %c0_i32, %c0_i32_0 : i32, i32
  }
  func.func @transform_3(%arg0: i32) -> (i32, i32) {
    %c0_i32 = arith.constant 0 : i32
    %c0_i32_0 = arith.constant 0 : i32
    return %arg0, %c0_i32 : i32, i32
  }
}

</mosaic_0001>

<llo_original>
// kernel: multi_head_attention.3
$region0: #{multi_head_attention.3}
  #allocation0 [shape = 'u32[]', space=smem, size = 0x4, offset = 0x4, fixed_abs, tag = 'smem constant byte address 0x4 - core index']
  #allocation1 [shape = 'u32[144,128]{1,0:T(1,128)}', space=vmem, size = 0x12000, scoped, tag = 'internal scratch']
  %s0 = inlined_call_operand.vmem [shape: f32[256,512], index: 0, kind: input, shape index: {}]
  %s1 = inlined_call_operand.vmem [shape: f32[512,512], index: 1, kind: input, shape index: {}]
  %s2 = inlined_call_operand.vmem [shape: f32[1,512], index: 2, kind: input, shape index: {}]
  %s3 = inlined_call_operand.hbm [shape: f32[256,512], index: 3, kind: output, shape index: {}]
  %s4 = sld [smem:[#allocation0]]
  $region45: #{multi_head_attention.3} parent=0
    _
  %s6 = ssub.s32 1, %s4
  %s7 = scalar_select 0, %s6, %s4
  $region1: #{multi_head_attention.3} parent=0
    #allocation2 [shape = 'u8[524288]{0}', space=vmem, size = 0x80000, scoped, tag = 'output window, operand 0']
    #allocation3 [shape = 's32[2]{0}', space=sflag, size = 0x8, scoped, tag = 'scoped memory for multi_head_attention.3']
    %8 = vsyncpa [#allocation3], 0
    %s9 = scalar_lea.sflag [#allocation3], 1
    %10 = vsyncpa %s9, 0
    loop: start=0, step=1, limit=4
    $region2: #{multi_head_attention.3} parent=1 // loop_pre_header
      _
    $region3: #{multi_head_attention.3} parent=1 // loop_header
      %s12 = sphi 0, %s16
      %p13 = scmp.ge.s32.totalorder %s12, 4
      %s22 = sphi 0, %s24
      %s25 = sphi 0, %s22
      %s26 = sphi 0, %s25
      %s42 = sphi 0, %s26
      %s46 = sphi 0, %s46
      %s48 = sphi 0, %s46
      %s49 = sphi 0, %s48
      %s63 = sphi 0, %s49
      %s67 = sphi 0, %s67
      %s69 = sphi 0, %s67
      %s70 = sphi 0, %s69
      %s84 = sphi 0, %s70
      %s90 = sphi 0, %s92
      %s93 = sphi 0, %s90
      %s94 = sphi 0, %s93
      %s110 = sphi 0, %s94
    $region4: #{multi_head_attention.3} parent=1 // loop_header_branch
      %15 = sbr.rel (%p13) target = $region8
    $region5: #{multi_head_attention.3} parent=1 // loop_body
      %s17 = ssub.s32 %s12, 1
      %s18 = ssub.s32 %s12, 2
      %s19 = sadd.s32 %s12, 1
      %s20 = ssub.s32 %s12, %s19
      %p21 = scmp.eq.s32.totalorder %s20, 0
      %s23 = sadd.s32 %s22, 1
      %s24 = scalar_select %p21, %s22, %s23
      %p27 = pneg %p21
      %p28 = scmp.eq.s32.totalorder %s12, 1
      %p29 = por %p27, %p28
      %p30 = scmp.ne.s32.totalorder %s22, %s25
      %p31 = scmp.eq.s32.totalorder %s12, 0
      %p32 = por %p30, %p31
      %p33 = scmp.ne.s32.totalorder %s22, %s25
      %p34 = scmp.eq.s32.totalorder %s17, 1
      %p35 = por %p33, %p34
      %p36 = scmp.ne.s32.totalorder %s25, %s26
      %p37 = scmp.eq.s32.totalorder %s17, 0
      %p38 = por %p36, %p37
      %p39 = scmp.ne.s32.totalorder %s25, %s26
      %p40 = scmp.eq.s32.totalorder %s18, 1
      %p41 = por %p39, %p40
      %p43 = scmp.ne.s32.totalorder %s26, %s42
      %p44 = scmp.eq.s32.totalorder %s18, 0
      %p45 = por %p43, %p44
      %s47 = sadd.s32 %s46, 1
      %p50 = scmp.eq.s32.totalorder %s12, 1
      %p51 = scmp.ne.s32.totalorder %s46, %s48
      %p52 = scmp.eq.s32.totalorder %s12, 0
      %p53 = por %p51, %p52
      %p54 = scmp.ne.s32.totalorder %s46, %s48
      %p55 = scmp.eq.s32.totalorder %s17, 1
      %p56 = por %p54, %p55
      %p57 = scmp.ne.s32.totalorder %s48, %s49
      %p58 = scmp.eq.s32.totalorder %s17, 0
      %p59 = por %p57, %p58
      %p60 = scmp.ne.s32.totalorder %s48, %s49
      %p61 = scmp.eq.s32.totalorder %s18, 1
      %p62 = por %p60, %p61
      %p64 = scmp.ne.s32.totalorder %s49, %s63
      %p65 = scmp.eq.s32.totalorder %s18, 0
      %p66 = por %p64, %p65
      %s68 = sadd.s32 %s67, 1
      %p71 = scmp.eq.s32.totalorder %s12, 1
      %p72 = scmp.ne.s32.totalorder %s67, %s69
      %p73 = scmp.eq.s32.totalorder %s12, 0
      %p74 = por %p72, %p73
      %p75 = scmp.ne.s32.totalorder %s67, %s69
      %p76 = scmp.eq.s32.totalorder %s17, 1
      %p77 = por %p75, %p76
      %p78 = scmp.ne.s32.totalorder %s69, %s70
      %p79 = scmp.eq.s32.totalorder %s17, 0
      %p80 = por %p78, %p79
      %p81 = scmp.ne.s32.totalorder %s69, %s70
      %p82 = scmp.eq.s32.totalorder %s18, 1
      %p83 = por %p81, %p82
      %p85 = scmp.ne.s32.totalorder %s70, %s84
      %p86 = scmp.eq.s32.totalorder %s18, 0
      %p87 = por %p85, %p86
      %s88 = ssub.s32 %s12, %s19
      %p89 = scmp.eq.s32.totalorder %s88, 0
      %s91 = sadd.s32 %s90, 1
      %s92 = scalar_select %p89, %s90, %s91
      %p95 = pneg %p89
      %p96 = scmp.eq.s32.totalorder %s12, 1
      %p97 = por %p95, %p96
      %p98 = scmp.ne.s32.totalorder %s90, %s93
      %p99 = scmp.eq.s32.totalorder %s12, 0
      %p100 = por %p98, %p99
      %p101 = scmp.ne.s32.totalorder %s90, %s93
      %p102 = scmp.eq.s32.totalorder %s17, 1
      %p103 = por %p101, %p102
      %p104 = scmp.ne.s32.totalorder %s93, %s94
      %p105 = scmp.eq.s32.totalorder %s17, 0
      %p106 = por %p104, %p105
      %p107 = scmp.ne.s32.totalorder %s93, %s94
      %p108 = scmp.eq.s32.totalorder %s18, 1
      %p109 = por %p107, %p108
      %p111 = scmp.ne.s32.totalorder %s94, %s110
      %p112 = scmp.eq.s32.totalorder %s18, 0
      %p113 = por %p111, %p112
      %p114 = scmp.le.s32.totalorder 1, %s12
      %p115 = scmp.lt.s32.totalorder %s12, 3
      %p116 = pnand %p114, %p115
      %p117 = pneg %p116
      // Predicated region
      $region9: #{multi_head_attention.3} parent=5 // pred_check
        _
      $region10: #{multi_head_attention.3} parent=5 // pred_check_branch
        %119 = sbr.rel (%p116) target = $region12
      $region11: #{multi_head_attention.3} parent=5 // pred_region
        %s120 = ssub.s32 %s12, 1
        // Predicated region
        $region13: #{multi_head_attention.3} parent=11 // pred_check
          %p121 = pneg %p59
        $region14: #{multi_head_attention.3} parent=11 // pred_check_branch
          %123 = sbr.rel (%p121) target = $region16
        $region15: #{multi_head_attention.3} parent=11 // pred_region
          _
        $region16: #{multi_head_attention.3} parent=11 // pred_fallthru
          _
        // Predicated region
        $region17: #{multi_head_attention.3} parent=11 // pred_check
          %p124 = pneg %p80
        $region18: #{multi_head_attention.3} parent=11 // pred_check_branch
          %126 = sbr.rel (%p124) target = $region20
        $region19: #{multi_head_attention.3} parent=11 // pred_region
          _
        $region20: #{multi_head_attention.3} parent=11 // pred_fallthru
          _
      $region12: #{multi_head_attention.3} parent=5 // pred_fallthru
        _
      %p127 = scmp.lt.s32.totalorder %s12, 2
      // Predicated region
      $region21: #{multi_head_attention.3} parent=5 // pred_check
        %p128 = pneg %p127
      $region22: #{multi_head_attention.3} parent=5 // pred_check_branch
        %130 = sbr.rel (%p128) target = $region24
      $region23: #{multi_head_attention.3} parent=5 // pred_region
        // Predicated region
        $region25: #{multi_head_attention.3} parent=23 // pred_check
          %p131 = pneg %p32
        $region26: #{multi_head_attention.3} parent=23 // pred_check_branch
          %133 = sbr.rel (%p131) target = $region28
        $region27: #{multi_head_attention.3} parent=23 // pred_region
          %s134 = smul.u32 16, %s12
          %p135 = scmp.lt.s32.totalorder %s134, 31
          %s136 = scalar_select %p135, %s134, 31
          %s137 = smul.addr %s136, 4
          %s138 = smul.addr %s137, 8
          %s139 = scalar_lea.vmem %s0, %s138
          %s140 = smul.u32 16, %s12
        $region28: #{multi_head_attention.3} parent=23 // pred_fallthru
          _
      $region24: #{multi_head_attention.3} parent=5 // pred_fallthru
        _
      %p141 = scmp.le.s32.totalorder 1, %s12
      %p142 = scmp.lt.s32.totalorder %s12, 3
      %p143 = pnand %p141, %p142
      %p144 = pneg %p143
      // Predicated region
      $region29: #{multi_head_attention.3} parent=5 // pred_check
        _
      $region30: #{multi_head_attention.3} parent=5 // pred_check_branch
        %146 = sbr.rel (%p143) target = $region32
      $region31: #{multi_head_attention.3} parent=5 // pred_region
        %s147 = ssub.s32 %s12, 1
        %s148 = smul.u32 16, %s17
        %p149 = scmp.lt.s32.totalorder %s148, 31
        %s150 = scalar_select %p149, %s148, 31
        %s151 = smul.addr %s150, 4
        %s152 = smul.addr %s151, 8
        %s153 = scalar_lea.vmem %s0, %s152
        %p154 = pneg %p38
        %p155 = pneg %p35
        %p156 = pneg %p59
        %p157 = pneg %p56
        %p158 = pneg %p80
        %p159 = pneg %p77
        %p160 = pneg %p106
        %p161 = pneg %p103
        %s162 = sand.u32 %s93, 1
        %s163 = scalar_lea.sflag [#allocation3], %s162
        %s164 = sand.u32 %s93, 1
        %s165 = smul.addr %s164, 512
        %s166 = scalar_lea.vmem [#allocation2], %s165
        %s167 = smul.u32 16, %s17
        %p168 = scmp.lt.s32.totalorder %s167, 31
        %s169 = scalar_select %p168, %s167, 31
        %s170 = smul.addr %s169, 4
        %s171 = smul.addr %s170, 8
        %s172 = scalar_lea.vmem %s0, %s171
        %s173 = smul.u32 16, %s17
        %s174 = smul.u32 16, %s17
        %v175 = vld [vmem:[%s172] sm:$0xff]
        %v176 = vld [vmem:[%s172 + $0x8] sm:$0xff]
        %v177 = vld [vmem:[%s172 + $0x10] sm:$0xff]
        %v178 = vld [vmem:[%s172 + $0x18] sm:$0xff]
        %v179 = vld [vmem:[%s172 + $0x20] sm:$0xff]
        %v180 = vld [vmem:[%s172 + $0x28] sm:$0xff]
        %v181 = vld [vmem:[%s172 + $0x30] sm:$0xff]
        %v182 = vld [vmem:[%s172 + $0x38] sm:$0xff]
        %v183 = vld [vmem:[%s172 + $0x40] sm:$0xff]
        %v184 = vld [vmem:[%s172 + $0x48] sm:$0xff]
        %v185 = vld [vmem:[%s172 + $0x50] sm:$0xff]
        %v186 = vld [vmem:[%s172 + $0x58] sm:$0xff]
        %v187 = vld [vmem:[%s172 + $0x60] sm:$0xff]
        %v188 = vld [vmem:[%s172 + $0x68] sm:$0xff]
        %v189 = vld [vmem:[%s172 + $0x70] sm:$0xff]
        %v190 = vld [vmem:[%s172 + $0x78] sm:$0xff]
        %v191 = vld [vmem:[%s172 + $0x80] sm:$0xff]
        %v192 = vld [vmem:[%s172 + $0x88] sm:$0xff]
        %v193 = vld [vmem:[%s172 + $0x90] sm:$0xff]
        %v194 = vld [vmem:[%s172 + $0x98] sm:$0xff]
        %v195 = vld [vmem:[%s172 + $0xa0] sm:$0xff]
        %v196 = vld [vmem:[%s172 + $0xa8] sm:$0xff]
        %v197 = vld [vmem:[%s172 + $0xb0] sm:$0xff]
        %v198 = vld [vmem:[%s172 + $0xb8] sm:$0xff]
        %v199 = vld [vmem:[%s172 + $0xc0] sm:$0xff]
        %v200 = vld [vmem:[%s172 + $0xc8] sm:$0xff]
        %v201 = vld [vmem:[%s172 + $0xd0] sm:$0xff]
        %v202 = vld [vmem:[%s172 + $0xd8] sm:$0xff]
        %v203 = vld [vmem:[%s172 + $0xe0] sm:$0xff]
        %v204 = vld [vmem:[%s172 + $0xe8] sm:$0xff]
        %v205 = vld [vmem:[%s172 + $0xf0] sm:$0xff]
        %v206 = vld [vmem:[%s172 + $0xf8] sm:$0xff]
        %v207 = vld [vmem:[%s172 + $0x100] sm:$0xff]
        %v208 = vld [vmem:[%s172 + $0x108] sm:$0xff]
        %v209 = vld [vmem:[%s172 + $0x110] sm:$0xff]
        %v210 = vld [vmem:[%s172 + $0x118] sm:$0xff]
        %v211 = vld [vmem:[%s172 + $0x120] sm:$0xff]
        %v212 = vld [vmem:[%s172 + $0x128] sm:$0xff]
        %v213 = vld [vmem:[%s172 + $0x130] sm:$0xff]
        %v214 = vld [vmem:[%s172 + $0x138] sm:$0xff]
        %v215 = vld [vmem:[%s172 + $0x140] sm:$0xff]
        %v216 = vld [vmem:[%s172 + $0x148] sm:$0xff]
        %v217 = vld [vmem:[%s172 + $0x150] sm:$0xff]
        %v218 = vld [vmem:[%s172 + $0x158] sm:$0xff]
        %v219 = vld [vmem:[%s172 + $0x160] sm:$0xff]
        %v220 = vld [vmem:[%s172 + $0x168] sm:$0xff]
        %v221 = vld [vmem:[%s172 + $0x170] sm:$0xff]
        %v222 = vld [vmem:[%s172 + $0x178] sm:$0xff]
        %v223 = vld [vmem:[%s172 + $0x180] sm:$0xff]
        %v224 = vld [vmem:[%s172 + $0x188] sm:$0xff]
        %v225 = vld [vmem:[%s172 + $0x190] sm:$0xff]
        %v226 = vld [vmem:[%s172 + $0x198] sm:$0xff]
        %v227 = vld [vmem:[%s172 + $0x1a0] sm:$0xff]
        %v228 = vld [vmem:[%s172 + $0x1a8] sm:$0xff]
        %v229 = vld [vmem:[%s172 + $0x1b0] sm:$0xff]
        %v230 = vld [vmem:[%s172 + $0x1b8] sm:$0xff]
        %v231 = vld [vmem:[%s172 + $0x1c0] sm:$0xff]
        %v232 = vld [vmem:[%s172 + $0x1c8] sm:$0xff]
        %v233 = vld [vmem:[%s172 + $0x1d0] sm:$0xff]
        %v234 = vld [vmem:[%s172 + $0x1d8] sm:$0xff]
        %v235 = vld [vmem:[%s172 + $0x1e0] sm:$0xff]
        %v236 = vld [vmem:[%s172 + $0x1e8] sm:$0xff]
        %v237 = vld [vmem:[%s172 + $0x1f0] sm:$0xff]
        %v238 = vld [vmem:[%s172 + $0x1f8] sm:$0xff]
        %v239 = vld [vmem:[%s1] sm:$0xff]
        %v240 = vld [vmem:[%s1 + $0x8] sm:$0xff]
        %v241 = vld [vmem:[%s1 + $0x10] sm:$0xff]
        %v242 = vld [vmem:[%s1 + $0x18] sm:$0xff]
        %v243 = vld [vmem:[%s1 + $0x20] sm:$0xff]
        %v244 = vld [vmem:[%s1 + $0x28] sm:$0xff]
        %v245 = vld [vmem:[%s1 + $0x30] sm:$0xff]
        %v246 = vld [vmem:[%s1 + $0x38] sm:$0xff]
        %v247 = vld [vmem:[%s1 + $0x40] sm:$0xff]
        %v248 = vld [vmem:[%s1 + $0x48] sm:$0xff]
        %v249 = vld [vmem:[%s1 + $0x50] sm:$0xff]
        %v250 = vld [vmem:[%s1 + $0x58] sm:$0xff]
        %v251 = vld [vmem:[%s1 + $0x60] sm:$0xff]
        %v252 = vld [vmem:[%s1 + $0x68] sm:$0xff]
        %v253 = vld [vmem:[%s1 + $0x70] sm:$0xff]
        %v254 = vld [vmem:[%s1 + $0x78] sm:$0xff]
        %v255 = vld [vmem:[%s1 + $0x80] sm:$0xff]
        %v256 = vld [vmem:[%s1 + $0x88] sm:$0xff]
        %v257 = vld [vmem:[%s1 + $0x90] sm:$0xff]
        %v258 = vld [vmem:[%s1 + $0x98] sm:$0xff]
        %v259 = vld [vmem:[%s1 + $0xa0] sm:$0xff]
        %v260 = vld [vmem:[%s1 + $0xa8] sm:$0xff]
        %v261 = vld [vmem:[%s1 + $0xb0] sm:$0xff]
        %v262 = vld [vmem:[%s1 + $0xb8] sm:$0xff]
        %v263 = vld [vmem:[%s1 + $0xc0] sm:$0xff]
        %v264 = vld [vmem:[%s1 + $0xc8] sm:$0xff]
        %v265 = vld [vmem:[%s1 + $0xd0] sm:$0xff]
        %v266 = vld [vmem:[%s1 + $0xd8] sm:$0xff]
        %v267 = vld [vmem:[%s1 + $0xe0] sm:$0xff]
        %v268 = vld [vmem:[%s1 + $0xe8] sm:$0xff]
        %v269 = vld [vmem:[%s1 + $0xf0] sm:$0xff]
        %v270 = vld [vmem:[%s1 + $0xf8] sm:$0xff]
        %v271 = vld [vmem:[%s1 + $0x100] sm:$0xff]
        %v272 = vld [vmem:[%s1 + $0x108] sm:$0xff]
        %v273 = vld [vmem:[%s1 + $0x110] sm:$0xff]
        %v274 = vld [vmem:[%s1 + $0x118] sm:$0xff]
        %v275 = vld [vmem:[%s1 + $0x120] sm:$0xff]
        %v276 = vld [vmem:[%s1 + $0x128] sm:$0xff]
        %v277 = vld [vmem:[%s1 + $0x130] sm:$0xff]
        %v278 = vld [vmem:[%s1 + $0x138] sm:$0xff]
        %v279 = vld [vmem:[%s1 + $0x140] sm:$0xff]
        %v280 = vld [vmem:[%s1 + $0x148] sm:$0xff]
        %v281 = vld [vmem:[%s1 + $0x150] sm:$0xff]
        %v282 = vld [vmem:[%s1 + $0x158] sm:$0xff]
        %v283 = vld [vmem:[%s1 + $0x160] sm:$0xff]
        %v284 = vld [vmem:[%s1 + $0x168] sm:$0xff]
        %v285 = vld [vmem:[%s1 + $0x170] sm:$0xff]
        %v286 = vld [vmem:[%s1 + $0x178] sm:$0xff]
        %v287 = vld [vmem:[%s1 + $0x180] sm:$0xff]
        %v288 = vld [vmem:[%s1 + $0x188] sm:$0xff]
        %v289 = vld [vmem:[%s1 + $0x190] sm:$0xff]
        %v290 = vld [vmem:[%s1 + $0x198] sm:$0xff]
        %v291 = vld [vmem:[%s1 + $0x1a0] sm:$0xff]
        %v292 = vld [vmem:[%s1 + $0x1a8] sm:$0xff]
        %v293 = vld [vmem:[%s1 + $0x1b0] sm:$0xff]
        %v294 = vld [vmem:[%s1 + $0x1b8] sm:$0xff]
        %v295 = vld [vmem:[%s1 + $0x1c0] sm:$0xff]
        %v296 = vld [vmem:[%s1 + $0x1c8] sm:$0xff]
        %v297 = vld [vmem:[%s1 + $0x1d0] sm:$0xff]
        %v298 = vld [vmem:[%s1 + $0x1d8] sm:$0xff]
        %v299 = vld [vmem:[%s1 + $0x1e0] sm:$0xff]
        %v300 = vld [vmem:[%s1 + $0x1e8] sm:$0xff]
        %v301 = vld [vmem:[%s1 + $0x1f0] sm:$0xff]
        %v302 = vld [vmem:[%s1 + $0x1f8] sm:$0xff]
        %v303 = vld [vmem:[%s1 + $0x200] sm:$0xff]
        %v304 = vld [vmem:[%s1 + $0x208] sm:$0xff]
        %v305 = vld [vmem:[%s1 + $0x210] sm:$0xff]
        %v306 = vld [vmem:[%s1 + $0x218] sm:$0xff]
        %v307 = vld [vmem:[%s1 + $0x220] sm:$0xff]
        %v308 = vld [vmem:[%s1 + $0x228] sm:$0xff]
        %v309 = vld [vmem:[%s1 + $0x230] sm:$0xff]
        %v310 = vld [vmem:[%s1 + $0x238] sm:$0xff]
        %v311 = vld [vmem:[%s1 + $0x240] sm:$0xff]
        %v312 = vld [vmem:[%s1 + $0x248] sm:$0xff]
        %v313 = vld [vmem:[%s1 + $0x250] sm:$0xff]
        %v314 = vld [vmem:[%s1 + $0x258] sm:$0xff]
        %v315 = vld [vmem:[%s1 + $0x260] sm:$0xff]
        %v316 = vld [vmem:[%s1 + $0x268] sm:$0xff]
        %v317 = vld [vmem:[%s1 + $0x270] sm:$0xff]
        %v318 = vld [vmem:[%s1 + $0x278] sm:$0xff]
        %v319 = vld [vmem:[%s1 + $0x280] sm:$0xff]
        %v320 = vld [vmem:[%s1 + $0x288] sm:$0xff]
        %v321 = vld [vmem:[%s1 + $0x290] sm:$0xff]
        %v322 = vld [vmem:[%s1 + $0x298] sm:$0xff]
        %v323 = vld [vmem:[%s1 + $0x2a0] sm:$0xff]
        %v324 = vld [vmem:[%s1 + $0x2a8] sm:$0xff]
        %v325 = vld [vmem:[%s1 + $0x2b0] sm:$0xff]
        %v326 = vld [vmem:[%s1 + $0x2b8] sm:$0xff]
        %v327 = vld [vmem:[%s1 + $0x2c0] sm:$0xff]
        %v328 = vld [vmem:[%s1 + $0x2c8] sm:$0xff]
        %v329 = vld [vmem:[%s1 + $0x2d0] sm:$0xff]
        %v330 = vld [vmem:[%s1 + $0x2d8] sm:$0xff]
        %v331 = vld [vmem:[%s1 + $0x2e0] sm:$0xff]
        %v332 = vld [vmem:[%s1 + $0x2e8] sm:$0xff]
        %v333 = vld [vmem:[%s1 + $0x2f0] sm:$0xff]
        %v334 = vld [vmem:[%s1 + $0x2f8] sm:$0xff]
        %v335 = vld [vmem:[%s1 + $0x300] sm:$0xff]
        %v336 = vld [vmem:[%s1 + $0x308] sm:$0xff]
        %v337 = vld [vmem:[%s1 + $0x310] sm:$0xff]
        %v338 = vld [vmem:[%s1 + $0x318] sm:$0xff]
        %v339 = vld [vmem:[%s1 + $0x320] sm:$0xff]
        %v340 = vld [vmem:[%s1 + $0x328] sm:$0xff]
        %v341 = vld [vmem:[%s1 + $0x330] sm:$0xff]
        %v342 = vld [vmem:[%s1 + $0x338] sm:$0xff]
        %v343 = vld [vmem:[%s1 + $0x340] sm:$0xff]
        %v344 = vld [vmem:[%s1 + $0x348] sm:$0xff]
        %v345 = vld [vmem:[%s1 + $0x350] sm:$0xff]
        %v346 = vld [vmem:[%s1 + $0x358] sm:$0xff]
        %v347 = vld [vmem:[%s1 + $0x360] sm:$0xff]
        %v348 = vld [vmem:[%s1 + $0x368] sm:$0xff]
        %v349 = vld [vmem:[%s1 + $0x370] sm:$0xff]
        %v350 = vld [vmem:[%s1 + $0x378] sm:$0xff]
        %v351 = vld [vmem:[%s1 + $0x380] sm:$0xff]
        %v352 = vld [vmem:[%s1 + $0x388] sm:$0xff]
        %v353 = vld [vmem:[%s1 + $0x390] sm:$0xff]
        %v354 = vld [vmem:[%s1 + $0x398] sm:$0xff]
        %v355 = vld [vmem:[%s1 + $0x3a0] sm:$0xff]
        %v356 = vld [vmem:[%s1 + $0x3a8] sm:$0xff]
        %v357 = vld [vmem:[%s1 + $0x3b0] sm:$0xff]
        %v358 = vld [vmem:[%s1 + $0x3b8] sm:$0xff]
        %v359 = vld [vmem:[%s1 + $0x3c0] sm:$0xff]
        %v360 = vld [vmem:[%s1 + $0x3c8] sm:$0xff]
        %v361 = vld [vmem:[%s1 + $0x3d0] sm:$0xff]
        %v362 = vld [vmem:[%s1 + $0x3d8] sm:$0xff]
        %v363 = vld [vmem:[%s1 + $0x3e0] sm:$0xff]
        %v364 = vld [vmem:[%s1 + $0x3e8] sm:$0xff]
        %v365 = vld [vmem:[%s1 + $0x3f0] sm:$0xff]
        %v366 = vld [vmem:[%s1 + $0x3f8] sm:$0xff]
        %v367 = vld [vmem:[%s1 + $0x400] sm:$0xff]
        %v368 = vld [vmem:[%s1 + $0x408] sm:$0xff]
        %v369 = vld [vmem:[%s1 + $0x410] sm:$0xff]
        %v370 = vld [vmem:[%s1 + $0x418] sm:$0xff]
        %v371 = vld [vmem:[%s1 + $0x420] sm:$0xff]
        %v372 = vld [vmem:[%s1 + $0x428] sm:$0xff]
        %v373 = vld [vmem:[%s1 + $0x430] sm:$0xff]
        %v374 = vld [vmem:[%s1 + $0x438] sm:$0xff]
        %v375 = vld [vmem:[%s1 + $0x440] sm:$0xff]
        %v376 = vld [vmem:[%s1 + $0x448] sm:$0xff]
        %v377 = vld [vmem:[%s1 + $0x450] sm:$0xff]
        %v378 = vld [vmem:[%s1 + $0x458] sm:$0xff]
        %v379 = vld [vmem:[%s1 + $0x460] sm:$0xff]
        %v380 = vld [vmem:[%s1 + $0x468] sm:$0xff]
        %v381 = vld [vmem:[%s1 + $0x470] sm:$0xff]
        %v382 = vld [vmem:[%s1 + $0x478] sm:$0xff]
        %v383 = vld [vmem:[%s1 + $0x480] sm:$0xff]
        %v384 = vld [vmem:[%s1 + $0x488] sm:$0xff]
        %v385 = vld [vmem:[%s1 + $0x490] sm:$0xff]
        %v386 = vld [vmem:[%s1 + $0x498] sm:$0xff]
        %v387 = vld [vmem:[%s1 + $0x4a0] sm:$0xff]
        %v388 = vld [vmem:[%s1 + $0x4a8] sm:$0xff]
        %v389 = vld [vmem:[%s1 + $0x4b0] sm:$0xff]
        %v390 = vld [vmem:[%s1 + $0x4b8] sm:$0xff]
        %v391 = vld [vmem:[%s1 + $0x4c0] sm:$0xff]
        %v392 = vld [vmem:[%s1 + $0x4c8] sm:$0xff]
        %v393 = vld [vmem:[%s1 + $0x4d0] sm:$0xff]
        %v394 = vld [vmem:[%s1 + $0x4d8] sm:$0xff]
        %v395 = vld [vmem:[%s1 + $0x4e0] sm:$0xff]
        %v396 = vld [vmem:[%s1 + $0x4e8] sm:$0xff]
        %v397 = vld [vmem:[%s1 + $0x4f0] sm:$0xff]
        %v398 = vld [vmem:[%s1 + $0x4f8] sm:$0xff]
        %v399 = vld [vmem:[%s1 + $0x500] sm:$0xff]
        %v400 = vld [vmem:[%s1 + $0x508] sm:$0xff]
        %v401 = vld [vmem:[%s1 + $0x510] sm:$0xff]
        %v402 = vld [vmem:[%s1 + $0x518] sm:$0xff]
        %v403 = vld [vmem:[%s1 + $0x520] sm:$0xff]
        %v404 = vld [vmem:[%s1 + $0x528] sm:$0xff]
        %v405 = vld [vmem:[%s1 + $0x530] sm:$0xff]
        %v406 = vld [vmem:[%s1 + $0x538] sm:$0xff]
        %v407 = vld [vmem:[%s1 + $0x540] sm:$0xff]
        %v408 = vld [vmem:[%s1 + $0x548] sm:$0xff]
        %v409 = vld [vmem:[%s1 + $0x550] sm:$0xff]
        %v410 = vld [vmem:[%s1 + $0x558] sm:$0xff]
        %v411 = vld [vmem:[%s1 + $0x560] sm:$0xff]
        %v412 = vld [vmem:[%s1 + $0x568] sm:$0xff]
        %v413 = vld [vmem:[%s1 + $0x570] sm:$0xff]
        %v414 = vld [vmem:[%s1 + $0x578] sm:$0xff]
        %v415 = vld [vmem:[%s1 + $0x580] sm:$0xff]
        %v416 = vld [vmem:[%s1 + $0x588] sm:$0xff]
        %v417 = vld [vmem:[%s1 + $0x590] sm:$0xff]
        %v418 = vld [vmem:[%s1 + $0x598] sm:$0xff]
        %v419 = vld [vmem:[%s1 + $0x5a0] sm:$0xff]
        %v420 = vld [vmem:[%s1 + $0x5a8] sm:$0xff]
        %v421 = vld [vmem:[%s1 + $0x5b0] sm:$0xff]
        %v422 = vld [vmem:[%s1 + $0x5b8] sm:$0xff]
        %v423 = vld [vmem:[%s1 + $0x5c0] sm:$0xff]
        %v424 = vld [vmem:[%s1 + $0x5c8] sm:$0xff]
        %v425 = vld [vmem:[%s1 + $0x5d0] sm:$0xff]
        %v426 = vld [vmem:[%s1 + $0x5d8] sm:$0xff]
        %v427 = vld [vmem:[%s1 + $0x5e0] sm:$0xff]
        %v428 = vld [vmem:[%s1 + $0x5e8] sm:$0xff]
        %v429 = vld [vmem:[%s1 + $0x5f0] sm:$0xff]
        %v430 = vld [vmem:[%s1 + $0x5f8] sm:$0xff]
        %v431 = vld [vmem:[%s1 + $0x600] sm:$0xff]
        %v432 = vld [vmem:[%s1 + $0x608] sm:$0xff]
        %v433 = vld [vmem:[%s1 + $0x610] sm:$0xff]
        %v434 = vld [vmem:[%s1 + $0x618] sm:$0xff]
        %v435 = vld [vmem:[%s1 + $0x620] sm:$0xff]
        %v436 = vld [vmem:[%s1 + $0x628] sm:$0xff]
        %v437 = vld [vmem:[%s1 + $0x630] sm:$0xff]
        %v438 = vld [vmem:[%s1 + $0x638] sm:$0xff]
        %v439 = vld [vmem:[%s1 + $0x640] sm:$0xff]
        %v440 = vld [vmem:[%s1 + $0x648] sm:$0xff]
        %v441 = vld [vmem:[%s1 + $0x650] sm:$0xff]
        %v442 = vld [vmem:[%s1 + $0x658] sm:$0xff]
        %v443 = vld [vmem:[%s1 + $0x660] sm:$0xff]
        %v444 = vld [vmem:[%s1 + $0x668] sm:$0xff]
        %v445 = vld [vmem:[%s1 + $0x670] sm:$0xff]
        %v446 = vld [vmem:[%s1 + $0x678] sm:$0xff]
        %v447 = vld [vmem:[%s1 + $0x680] sm:$0xff]
        %v448 = vld [vmem:[%s1 + $0x688] sm:$0xff]
        %v449 = vld [vmem:[%s1 + $0x690] sm:$0xff]
        %v450 = vld [vmem:[%s1 + $0x698] sm:$0xff]
        %v451 = vld [vmem:[%s1 + $0x6a0] sm:$0xff]
        %v452 = vld [vmem:[%s1 + $0x6a8] sm:$0xff]
        %v453 = vld [vmem:[%s1 + $0x6b0] sm:$0xff]
        %v454 = vld [vmem:[%s1 + $0x6b8] sm:$0xff]
        %v455 = vld [vmem:[%s1 + $0x6c0] sm:$0xff]
        %v456 = vld [vmem:[%s1 + $0x6c8] sm:$0xff]
        %v457 = vld [vmem:[%s1 + $0x6d0] sm:$0xff]
        %v458 = vld [vmem:[%s1 + $0x6d8] sm:$0xff]
        %v459 = vld [vmem:[%s1 + $0x6e0] sm:$0xff]
        %v460 = vld [vmem:[%s1 + $0x6e8] sm:$0xff]
        %v461 = vld [vmem:[%s1 + $0x6f0] sm:$0xff]
        %v462 = vld [vmem:[%s1 + $0x6f8] sm:$0xff]
        %v463 = vld [vmem:[%s1 + $0x700] sm:$0xff]
        %v464 = vld [vmem:[%s1 + $0x708] sm:$0xff]
        %v465 = vld [vmem:[%s1 + $0x710] sm:$0xff]
        %v466 = vld [vmem:[%s1 + $0x718] sm:$0xff]
        %v467 = vld [vmem:[%s1 + $0x720] sm:$0xff]
        %v468 = vld [vmem:[%s1 + $0x728] sm:$0xff]
        %v469 = vld [vmem:[%s1 + $0x730] sm:$0xff]
        %v470 = vld [vmem:[%s1 + $0x738] sm:$0xff]
        %v471 = vld [vmem:[%s1 + $0x740] sm:$0xff]
        %v472 = vld [vmem:[%s1 + $0x748] sm:$0xff]
        %v473 = vld [vmem:[%s1 + $0x750] sm:$0xff]
        %v474 = vld [vmem:[%s1 + $0x758] sm:$0xff]
        %v475 = vld [vmem:[%s1 + $0x760] sm:$0xff]
        %v476 = vld [vmem:[%s1 + $0x768] sm:$0xff]
        %v477 = vld [vmem:[%s1 + $0x770] sm:$0xff]
        %v478 = vld [vmem:[%s1 + $0x778] sm:$0xff]
        %v479 = vld [vmem:[%s1 + $0x780] sm:$0xff]
        %v480 = vld [vmem:[%s1 + $0x788] sm:$0xff]
        %v481 = vld [vmem:[%s1 + $0x790] sm:$0xff]
        %v482 = vld [vmem:[%s1 + $0x798] sm:$0xff]
        %v483 = vld [vmem:[%s1 + $0x7a0] sm:$0xff]
        %v484 = vld [vmem:[%s1 + $0x7a8] sm:$0xff]
        %v485 = vld [vmem:[%s1 + $0x7b0] sm:$0xff]
        %v486 = vld [vmem:[%s1 + $0x7b8] sm:$0xff]
        %v487 = vld [vmem:[%s1 + $0x7c0] sm:$0xff]
        %v488 = vld [vmem:[%s1 + $0x7c8] sm:$0xff]
        %v489 = vld [vmem:[%s1 + $0x7d0] sm:$0xff]
        %v490 = vld [vmem:[%s1 + $0x7d8] sm:$0xff]
        %v491 = vld [vmem:[%s1 + $0x7e0] sm:$0xff]
        %v492 = vld [vmem:[%s1 + $0x7e8] sm:$0xff]
        %v493 = vld [vmem:[%s1 + $0x7f0] sm:$0xff]
        %v494 = vld [vmem:[%s1 + $0x7f8] sm:$0xff]
        %v495 = vld [vmem:[%s2] sm:$0xf]
        %v497 = vlaneseq
        %v498 = vshrl.u32 %v497, 7
        %v499 = vsub.s32 0, %v498
        %v500 = vrot.slane %v495, %v499
        %v501 = vlaneseq
        %v502 = vshrl.u32 %v501, 7
        %v503 = vsub.s32 1, %v502
        %v504 = vrot.slane %v495, %v503
        %v505 = vlaneseq
        %v506 = vshrl.u32 %v505, 7
        %v507 = vsub.s32 2, %v506
        %v508 = vrot.slane %v495, %v507
        %v509 = vlaneseq
        %v510 = vshrl.u32 %v509, 7
        %v511 = vsub.s32 3, %v510
        %v512 = vrot.slane %v495, %v511
        %517 = vmatprep.subr.mxu0 %v240
        %518 = vmatpush1.msra.mxu0 %v239
        %519 = vmatprep.subr.mxu0 %v244
        %520 = vmatpush1.msra.mxu0 %v243
        %521 = vmatprep.subr.mxu0 %v248
        %522 = vmatpush1.msra.mxu0 %v247
        %523 = vmatprep.subr.mxu0 %v252
        %524 = vmatpush1.msra.mxu0 %v251
        %525 = vmatprep.subr.mxu0 %v256
        %526 = vmatpush1.msra.mxu0 %v255
        %527 = vmatprep.subr.mxu0 %v260
        %528 = vmatpush1.msra.mxu0 %v259
        %529 = vmatprep.subr.mxu0 %v264
        %530 = vmatpush1.msra.mxu0 %v263
        %531 = vmatprep.subr.mxu0 %v268
        %532 = vmatpush1.msra.mxu0 %v267
        %533 = vmatprep.subr.mxu0 %v272
        %534 = vmatpush1.msra.mxu0 %v271
        %535 = vmatprep.subr.mxu0 %v276
        %536 = vmatpush1.msra.mxu0 %v275
        %537 = vmatprep.subr.mxu0 %v280
        %538 = vmatpush1.msra.mxu0 %v279
        %539 = vmatprep.subr.mxu0 %v284
        %540 = vmatpush1.msra.mxu0 %v283
        %541 = vmatprep.subr.mxu0 %v288
        %542 = vmatpush1.msra.mxu0 %v287
        %543 = vmatprep.subr.mxu0 %v292
        %544 = vmatpush1.msra.mxu0 %v291
        %545 = vmatprep.subr.mxu0 %v296
        %546 = vmatpush1.msra.mxu0 %v295
        %547 = vmatprep.subr.mxu0 %v300
        %548 = vmatpush1.msra.mxu0 %v299
        %549 = vmatprep.subr.mxu0 %v304
        %550 = vmatpush1.msra.mxu0 %v303
        %551 = vmatprep.subr.mxu0 %v308
        %552 = vmatpush1.msra.mxu0 %v307
        %553 = vmatprep.subr.mxu0 %v312
        %554 = vmatpush1.msra.mxu0 %v311
        %555 = vmatprep.subr.mxu0 %v316
        %556 = vmatpush1.msra.mxu0 %v315
        %557 = vmatprep.subr.mxu0 %v320
        %558 = vmatpush1.msra.mxu0 %v319
        %559 = vmatprep.subr.mxu0 %v324
        %560 = vmatpush1.msra.mxu0 %v323
        %561 = vmatprep.subr.mxu0 %v328
        %562 = vmatpush1.msra.mxu0 %v327
        %563 = vmatprep.subr.mxu0 %v332
        %564 = vmatpush1.msra.mxu0 %v331
        %565 = vmatprep.subr.mxu0 %v336
        %566 = vmatpush1.msra.mxu0 %v335
        %567 = vmatprep.subr.mxu0 %v340
        %568 = vmatpush1.msra.mxu0 %v339
        %569 = vmatprep.subr.mxu0 %v344
        %570 = vmatpush1.msra.mxu0 %v343
        %571 = vmatprep.subr.mxu0 %v348
        %572 = vmatpush1.msra.mxu0 %v347
        %573 = vmatprep.subr.mxu0 %v352
        %574 = vmatpush1.msra.mxu0 %v351
        %575 = vmatprep.subr.mxu0 %v356
        %576 = vmatpush1.msra.mxu0 %v355
        %577 = vmatprep.subr.mxu0 %v360
        %578 = vmatpush1.msra.mxu0 %v359
        %579 = vmatprep.subr.mxu0 %v364
        %580 = vmatpush1.msra.mxu0 %v363
        %581 = vmatprep.mubr.f32.mxu0 %v176
        %582 = vmatmul.mubr.f32.gmra.mrb[0].mxu0 %v175
        %v583 = vpop.f32.mrb[0].mxu0
        %v584 = vadd.f32 %v500, %v583
        %v585 = vpop.f32.mrb[0].mxu0
        %v586 = vadd.f32 %v504, %v585
        %587 = vmatprep.mubr.f32.mxu0 %v180
        %588 = vmatmul.mubr.f32.gmra.mrb[0].mxu0 %v179
        %v589 = vpop.f32.mrb[0].mxu0
        %v590 = vadd.f32 %v500, %v589
        %v591 = vpop.f32.mrb[0].mxu0
        %v592 = vadd.f32 %v504, %v591
        %593 = vmatprep.mubr.f32.mxu0 %v184
        %594 = vmatmul.mubr.f32.gmra.mrb[0].mxu0 %v183
        %v595 = vpop.f32.mrb[0].mxu0
        %v596 = vadd.f32 %v500, %v595
        %v597 = vpop.f32.mrb[0].mxu0
        %v598 = vadd.f32 %v504, %v597
        %599 = vmatprep.mubr.f32.mxu0 %v188
        %600 = vmatmul.mubr.f32.gmra.mrb[0].mxu0 %v187
        %v601 = vpop.f32.mrb[0].mxu0
        %v602 = vadd.f32 %v500, %v601
        %v603 = vpop.f32.mrb[0].mxu0
        %v604 = vadd.f32 %v504, %v603
        %605 = vmatprep.mubr.f32.mxu0 %v192
        %606 = vmatmul.mubr.f32.gmra.mrb[0].mxu0 %v191
        %v607 = vpop.f32.mrb[0].mxu0
        %v608 = vadd.f32 %v500, %v607
        %v609 = vpop.f32.mrb[0].mxu0
        %v610 = vadd.f32 %v504, %v609
        %611 = vmatprep.mubr.f32.mxu0 %v196
        %612 = vmatmul.mubr.f32.gmra.mrb[0].mxu0 %v195
        %v613 = vpop.f32.mrb[0].mxu0
        %v614 = vadd.f32 %v500, %v613
        %v615 = vpop.f32.mrb[0].mxu0
        %v616 = vadd.f32 %v504, %v615
        %617 = vmatprep.mubr.f32.mxu0 %v200
        %618 = vmatmul.mubr.f32.gmra.mrb[0].mxu0 %v199
        %v619 = vpop.f32.mrb[0].mxu0
        %v620 = vadd.f32 %v500, %v619
        %v621 = vpop.f32.mrb[0].mxu0
        %v622 = vadd.f32 %v504, %v621
        %623 = vmatprep.mubr.f32.mxu0 %v204
        %624 = vmatmul.mubr.f32.gmra.mrb[0].mxu0 %v203
        %v625 = vpop.f32.mrb[0].mxu0
        %v626 = vadd.f32 %v500, %v625
        %v627 = vpop.f32.mrb[0].mxu0
        %v628 = vadd.f32 %v504, %v627
        %629 = vmatprep.mubr.f32.mxu0 %v208
        %630 = vmatmul.mubr.f32.gmra.mrb[0].mxu0 %v207
        %v631 = vpop.f32.mrb[0].mxu0
        %v632 = vadd.f32 %v500, %v631
        %v633 = vpop.f32.mrb[0].mxu0
        %v634 = vadd.f32 %v504, %v633
        %635 = vmatprep.mubr.f32.mxu0 %v212
        %636 = vmatmul.mubr.f32.gmra.mrb[0].mxu0 %v211
        %v637 = vpop.f32.mrb[0].mxu0
        %v638 = vadd.f32 %v500, %v637
        %v639 = vpop.f32.mrb[0].mxu0
        %v640 = vadd.f32 %v504, %v639
        %641 = vmatprep.mubr.f32.mxu0 %v216
        %642 = vmatmul.mubr.f32.gmra.mrb[0].mxu0 %v215
        %v643 = vpop.f32.mrb[0].mxu0
        %v644 = vadd.f32 %v500, %v643
        %v645 = vpop.f32.mrb[0].mxu0
        %v646 = vadd.f32 %v504, %v645
        %647 = vmatprep.mubr.f32.mxu0 %v220
        %648 = vmatmul.mubr.f32.gmra.mrb[0].mxu0 %v219
        %v649 = vpop.f32.mrb[0].mxu0
        %v650 = vadd.f32 %v500, %v649
        %v651 = vpop.f32.mrb[0].mxu0
        %v652 = vadd.f32 %v504, %v651
        %653 = vmatprep.mubr.f32.mxu0 %v224
        %654 = vmatmul.mubr.f32.gmra.mrb[0].mxu0 %v223
        %v655 = vpop.f32.mrb[0].mxu0
        %v656 = vadd.f32 %v500, %v655
        %v657 = vpop.f32.mrb[0].mxu0
        %v658 = vadd.f32 %v504, %v657
        %659 = vmatprep.mubr.f32.mxu0 %v228
        %660 = vmatmul.mubr.f32.gmra.mrb[0].mxu0 %v227
        %v661 = vpop.f32.mrb[0].mxu0
        %v662 = vadd.f32 %v500, %v661
        %v663 = vpop.f32.mrb[0].mxu0
        %v664 = vadd.f32 %v504, %v663
        %665 = vmatprep.mubr.f32.mxu0 %v232
        %666 = vmatmul.mubr.f32.gmra.mrb[0].mxu0 %v231
        %v667 = vpop.f32.mrb[0].mxu0
        %v668 = vadd.f32 %v500, %v667
        %v669 = vpop.f32.mrb[0].mxu0
        %v670 = vadd.f32 %v504, %v669
        %671 = vmatprep.mubr.f32.mxu0 %v236
        %672 = vmatmul.mubr.f32.gmra.mrb[0].mxu0 %v235
        %v673 = vpop.f32.mrb[0].mxu0
        %v674 = vadd.f32 %v500, %v673
        %v675 = vpop.f32.mrb[0].mxu0
        %v676 = vadd.f32 %v504, %v675
        %677 = vdwg.mxu0
        %678 = vmatprep.subr.mxu0 %v368
        %679 = vmatpush1.msra.mxu0 %v367
        %680 = vmatprep.subr.mxu0 %v372
        %681 = vmatpush1.msra.mxu0 %v371
        %682 = vmatprep.subr.mxu0 %v376
        %683 = vmatpush1.msra.mxu0 %v375
        %684 = vmatprep.subr.mxu0 %v380
        %685 = vmatpush1.msra.mxu0 %v379
        %686 = vmatprep.subr.mxu0 %v384
        %687 = vmatpush1.msra.mxu0 %v383
        %688 = vmatprep.subr.mxu0 %v388
        %689 = vmatpush1.msra.mxu0 %v387
        %690 = vmatprep.subr.mxu0 %v392
        %691 = vmatpush1.msra.mxu0 %v391
        %692 = vmatprep.subr.mxu0 %v396
        %693 = vmatpush1.msra.mxu0 %v395
        %694 = vmatprep.subr.mxu0 %v400
        %695 = vmatpush1.msra.mxu0 %v399
        %696 = vmatprep.subr.mxu0 %v404
        %697 = vmatpush1.msra.mxu0 %v403
        %698 = vmatprep.subr.mxu0 %v408
        %699 = vmatpush1.msra.mxu0 %v407
        %700 = vmatprep.subr.mxu0 %v412
        %701 = vmatpush1.msra.mxu0 %v411
        %702 = vmatprep.subr.mxu0 %v416
        %703 = vmatpush1.msra.mxu0 %v415
        %704 = vmatprep.subr.mxu0 %v420
        %705 = vmatpush1.msra.mxu0 %v419
        %706 = vmatprep.subr.mxu0 %v424
        %707 = vmatpush1.msra.mxu0 %v423
        %708 = vmatprep.subr.mxu0 %v428
        %709 = vmatpush1.msra.mxu0 %v427
        %710 = vmatprep.subr.mxu0 %v432
        %711 = vmatpush1.msra.mxu0 %v431
        %712 = vmatprep.subr.mxu0 %v436
        %713 = vmatpush1.msra.mxu0 %v435
        %714 = vmatprep.subr.mxu0 %v440
        %715 = vmatpush1.msra.mxu0 %v439
        %716 = vmatprep.subr.mxu0 %v444
        %717 = vmatpush1.msra.mxu0 %v443
        %718 = vmatprep.subr.mxu0 %v448
        %719 = vmatpush1.msra.mxu0 %v447
        %720 = vmatprep.subr.mxu0 %v452
        %721 = vmatpush1.msra.mxu0 %v451
        %722 = vmatprep.subr.mxu0 %v456
        %723 = vmatpush1.msra.mxu0 %v455
        %724 = vmatprep.subr.mxu0 %v460
        %725 = vmatpush1.msra.mxu0 %v459
        %726 = vmatprep.subr.mxu0 %v464
        %727 = vmatpush1.msra.mxu0 %v463
        %728 = vmatprep.subr.mxu0 %v468
        %729 = vmatpush1.msra.mxu0 %v467
        %730 = vmatprep.subr.mxu0 %v472
        %731 = vmatpush1.msra.mxu0 %v471
        %732 = vmatprep.subr.mxu0 %v476
        %733 = vmatpush1.msra.mxu0 %v475
        %734 = vmatprep.subr.mxu0 %v480
        %735 = vmatpush1.msra.mxu0 %v479
        %736 = vmatprep.subr.mxu0 %v484
        %737 = vmatpush1.msra.mxu0 %v483
        %738 = vmatprep.subr.mxu0 %v488
        %739 = vmatpush1.msra.mxu0 %v487
        %740 = vmatprep.subr.mxu0 %v492
        %741 = vmatpush1.msra.mxu0 %v491
        %742 = vmatprep.mubr.f32.mxu0 %v178
        %743 = vmatmul.mubr.f32.gmra.mrb[0].mxu0 %v177
        %v744 = vpop.f32.mrb[0].mxu0
        %v745 = vadd.f32 %v584, %v744
        %v746 = vpop.f32.mrb[0].mxu0
        %v747 = vadd.f32 %v586, %v746
        %748 = vmatprep.mubr.f32.mxu0 %v182
        %749 = vmatmul.mubr.f32.gmra.mrb[0].mxu0 %v181
        %v750 = vpop.f32.mrb[0].mxu0
        %v751 = vadd.f32 %v590, %v750
        %v752 = vpop.f32.mrb[0].mxu0
        %v753 = vadd.f32 %v592, %v752
        %754 = vmatprep.mubr.f32.mxu0 %v186
        %755 = vmatmul.mubr.f32.gmra.mrb[0].mxu0 %v185
        %v756 = vpop.f32.mrb[0].mxu0
        %v757 = vadd.f32 %v596, %v756
        %v758 = vpop.f32.mrb[0].mxu0
        %v759 = vadd.f32 %v598, %v758
        %760 = vmatprep.mubr.f32.mxu0 %v190
        %761 = vmatmul.mubr.f32.gmra.mrb[0].mxu0 %v189
        %v762 = vpop.f32.mrb[0].mxu0
        %v763 = vadd.f32 %v602, %v762
        %v764 = vpop.f32.mrb[0].mxu0
        %v765 = vadd.f32 %v604, %v764
        %766 = vmatprep.mubr.f32.mxu0 %v194
        %767 = vmatmul.mubr.f32.gmra.mrb[0].mxu0 %v193
        %v768 = vpop.f32.mrb[0].mxu0
        %v769 = vadd.f32 %v608, %v768
        %v770 = vpop.f32.mrb[0].mxu0
        %v771 = vadd.f32 %v610, %v770
        %772 = vmatprep.mubr.f32.mxu0 %v198
        %773 = vmatmul.mubr.f32.gmra.mrb[0].mxu0 %v197
        %v774 = vpop.f32.mrb[0].mxu0
        %v775 = vadd.f32 %v614, %v774
        %v776 = vpop.f32.mrb[0].mxu0
        %v777 = vadd.f32 %v616, %v776
        %778 = vmatprep.mubr.f32.mxu0 %v202
        %779 = vmatmul.mubr.f32.gmra.mrb[0].mxu0 %v201
        %v780 = vpop.f32.mrb[0].mxu0
        %v781 = vadd.f32 %v620, %v780
        %v782 = vpop.f32.mrb[0].mxu0
        %v783 = vadd.f32 %v622, %v782
        %784 = vmatprep.mubr.f32.mxu0 %v206
        %785 = vmatmul.mubr.f32.gmra.mrb[0].mxu0 %v205
        %v786 = vpop.f32.mrb[0].mxu0
        %v787 = vadd.f32 %v626, %v786
        %v788 = vpop.f32.mrb[0].mxu0
        %v789 = vadd.f32 %v628, %v788
        %790 = vmatprep.mubr.f32.mxu0 %v210
        %791 = vmatmul.mubr.f32.gmra.mrb[0].mxu0 %v209
        %v792 = vpop.f32.mrb[0].mxu0
        %v793 = vadd.f32 %v632, %v792
        %v794 = vpop.f32.mrb[0].mxu0
        %v795 = vadd.f32 %v634, %v794
        %796 = vmatprep.mubr.f32.mxu0 %v214
        %797 = vmatmul.mubr.f32.gmra.mrb[0].mxu0 %v213
        %v798 = vpop.f32.mrb[0].mxu0
        %v799 = vadd.f32 %v638, %v798
        %v800 = vpop.f32.mrb[0].mxu0
        %v801 = vadd.f32 %v640, %v800
        %802 = vmatprep.mubr.f32.mxu0 %v218
        %803 = vmatmul.mubr.f32.gmra.mrb[0].mxu0 %v217
        %v804 = vpop.f32.mrb[0].mxu0
        %v805 = vadd.f32 %v644, %v804
        %v806 = vpop.f32.mrb[0].mxu0
        %v807 = vadd.f32 %v646, %v806
        %808 = vmatprep.mubr.f32.mxu0 %v222
        %809 = vmatmul.mubr.f32.gmra.mrb[0].mxu0 %v221
        %v810 = vpop.f32.mrb[0].mxu0
        %v811 = vadd.f32 %v650, %v810
        %v812 = vpop.f32.mrb[0].mxu0
        %v813 = vadd.f32 %v652, %v812
        %814 = vmatprep.mubr.f32.mxu0 %v226
        %815 = vmatmul.mubr.f32.gmra.mrb[0].mxu0 %v225
        %v816 = vpop.f32.mrb[0].mxu0
        %v817 = vadd.f32 %v656, %v816
        %v818 = vpop.f32.mrb[0].mxu0
        %v819 = vadd.f32 %v658, %v818
        %820 = vmatprep.mubr.f32.mxu0 %v230
        %821 = vmatmul.mubr.f32.gmra.mrb[0].mxu0 %v229
        %v822 = vpop.f32.mrb[0].mxu0
        %v823 = vadd.f32 %v662, %v822
        %v824 = vpop.f32.mrb[0].mxu0
        %v825 = vadd.f32 %v664, %v824
        %826 = vmatprep.mubr.f32.mxu0 %v234
        %827 = vmatmul.mubr.f32.gmra.mrb[0].mxu0 %v233
        %v828 = vpop.f32.mrb[0].mxu0
        %v829 = vadd.f32 %v668, %v828
        %v830 = vpop.f32.mrb[0].mxu0
        %v831 = vadd.f32 %v670, %v830
        %832 = vmatprep.mubr.f32.mxu0 %v238
        %833 = vmatmul.mubr.f32.gmra.mrb[0].mxu0 %v237
        %v834 = vpop.f32.mrb[0].mxu0
        %v835 = vadd.f32 %v674, %v834
        %v836 = vpop.f32.mrb[0].mxu0
        %v837 = vadd.f32 %v676, %v836
        %838 = vdwg.mxu0
        %839 = vmatprep.subr.mxu0 %v242
        %840 = vmatpush1.msra.mxu0 %v241
        %841 = vmatprep.subr.mxu0 %v246
        %842 = vmatpush1.msra.mxu0 %v245
        %843 = vmatprep.subr.mxu0 %v250
        %844 = vmatpush1.msra.mxu0 %v249
        %845 = vmatprep.subr.mxu0 %v254
        %846 = vmatpush1.msra.mxu0 %v253
        %847 = vmatprep.subr.mxu0 %v258
        %848 = vmatpush1.msra.mxu0 %v257
        %849 = vmatprep.subr.mxu0 %v262
        %850 = vmatpush1.msra.mxu0 %v261
        %851 = vmatprep.subr.mxu0 %v266
        %852 = vmatpush1.msra.mxu0 %v265
        %853 = vmatprep.subr.mxu0 %v270
        %854 = vmatpush1.msra.mxu0 %v269
        %855 = vmatprep.subr.mxu0 %v274
        %856 = vmatpush1.msra.mxu0 %v273
        %857 = vmatprep.subr.mxu0 %v278
        %858 = vmatpush1.msra.mxu0 %v277
        %859 = vmatprep.subr.mxu0 %v282
        %860 = vmatpush1.msra.mxu0 %v281
        %861 = vmatprep.subr.mxu0 %v286
        %862 = vmatpush1.msra.mxu0 %v285
        %863 = vmatprep.subr.mxu0 %v290
        %864 = vmatpush1.msra.mxu0 %v289
        %865 = vmatprep.subr.mxu0 %v294
        %866 = vmatpush1.msra.mxu0 %v293
        %867 = vmatprep.subr.mxu0 %v298
        %868 = vmatpush1.msra.mxu0 %v297
        %869 = vmatprep.subr.mxu0 %v302
        %870 = vmatpush1.msra.mxu0 %v301
        %871 = vmatprep.subr.mxu0 %v306
        %872 = vmatpush1.msra.mxu0 %v305
        %873 = vmatprep.subr.mxu0 %v310
        %874 = vmatpush1.msra.mxu0 %v309
        %875 = vmatprep.subr.mxu0 %v314
        %876 = vmatpush1.msra.mxu0 %v313
        %877 = vmatprep.subr.mxu0 %v318
        %878 = vmatpush1.msra.mxu0 %v317
        %879 = vmatprep.subr.mxu0 %v322
        %880 = vmatpush1.msra.mxu0 %v321
        %881 = vmatprep.subr.mxu0 %v326
        %882 = vmatpush1.msra.mxu0 %v325
        %883 = vmatprep.subr.mxu0 %v330
        %884 = vmatpush1.msra.mxu0 %v329
        %885 = vmatprep.subr.mxu0 %v334
        %886 = vmatpush1.msra.mxu0 %v333
        %887 = vmatprep.subr.mxu0 %v338
        %888 = vmatpush1.msra.mxu0 %v337
        %889 = vmatprep.subr.mxu0 %v342
        %890 = vmatpush1.msra.mxu0 %v341
        %891 = vmatprep.subr.mxu0 %v346
        %892 = vmatpush1.msra.mxu0 %v345
        %893 = vmatprep.subr.mxu0 %v350
        %894 = vmatpush1.msra.mxu0 %v349
        %895 = vmatprep.subr.mxu0 %v354
        %896 = vmatpush1.msra.mxu0 %v353
        %897 = vmatprep.subr.mxu0 %v358
        %898 = vmatpush1.msra.mxu0 %v357
        %899 = vmatprep.subr.mxu0 %v362
        %900 = vmatpush1.msra.mxu0 %v361
        %901 = vmatprep.subr.mxu0 %v366
        %902 = vmatpush1.msra.mxu0 %v365
        %903 = vmatprep.mubr.f32.mxu0 %v176
        %904 = vmatmul.mubr.f32.gmra.mrb[0].mxu0 %v175
        %v905 = vpop.f32.mrb[0].mxu0
        %v906 = vadd.f32 %v508, %v905
        %v907 = vpop.f32.mrb[0].mxu0
        %v908 = vadd.f32 %v512, %v907
        %909 = vmatprep.mubr.f32.mxu0 %v180
        %910 = vmatmul.mubr.f32.gmra.mrb[0].mxu0 %v179
        %v911 = vpop.f32.mrb[0].mxu0
        %v912 = vadd.f32 %v508, %v911
        %v913 = vpop.f32.mrb[0].mxu0
        %v914 = vadd.f32 %v512, %v913
        %915 = vmatprep.mubr.f32.mxu0 %v184
        %916 = vmatmul.mubr.f32.gmra.mrb[0].mxu0 %v183
        %v917 = vpop.f32.mrb[0].mxu0
        %v918 = vadd.f32 %v508, %v917
        %v919 = vpop.f32.mrb[0].mxu0
        %v920 = vadd.f32 %v512, %v919
        %921 = vmatprep.mubr.f32.mxu0 %v188
        %922 = vmatmul.mubr.f32.gmra.mrb[0].mxu0 %v187
        %v923 = vpop.f32.mrb[0].mxu0
        %v924 = vadd.f32 %v508, %v923
        %v925 = vpop.f32.mrb[0].mxu0
        %v926 = vadd.f32 %v512, %v925
        %927 = vmatprep.mubr.f32.mxu0 %v192
        %928 = vmatmul.mubr.f32.gmra.mrb[0].mxu0 %v191
        %v929 = vpop.f32.mrb[0].mxu0
        %v930 = vadd.f32 %v508, %v929
        %v931 = vpop.f32.mrb[0].mxu0
        %v932 = vadd.f32 %v512, %v931
        %933 = vmatprep.mubr.f32.mxu0 %v196
        %934 = vmatmul.mubr.f32.gmra.mrb[0].mxu0 %v195
        %v935 = vpop.f32.mrb[0].mxu0
        %v936 = vadd.f32 %v508, %v935
        %v937 = vpop.f32.mrb[0].mxu0
        %v938 = vadd.f32 %v512, %v937
        %939 = vmatprep.mubr.f32.mxu0 %v200
        %940 = vmatmul.mubr.f32.gmra.mrb[0].mxu0 %v199
        %v941 = vpop.f32.mrb[0].mxu0
        %v942 = vadd.f32 %v508, %v941
        %v943 = vpop.f32.mrb[0].mxu0
        %v944 = vadd.f32 %v512, %v943
        %945 = vmatprep.mubr.f32.mxu0 %v204
        %946 = vmatmul.mubr.f32.gmra.mrb[0].mxu0 %v203
        %v947 = vpop.f32.mrb[0].mxu0
        %v948 = vadd.f32 %v508, %v947
        %v949 = vpop.f32.mrb[0].mxu0
        %v950 = vadd.f32 %v512, %v949
        %951 = vmatprep.mubr.f32.mxu0 %v208
        %952 = vmatmul.mubr.f32.gmra.mrb[0].mxu0 %v207
        %v953 = vpop.f32.mrb[0].mxu0
        %v954 = vadd.f32 %v508, %v953
        %v955 = vpop.f32.mrb[0].mxu0
        %v956 = vadd.f32 %v512, %v955
        %957 = vmatprep.mubr.f32.mxu0 %v212
        %958 = vmatmul.mubr.f32.gmra.mrb[0].mxu0 %v211
        %v959 = vpop.f32.mrb[0].mxu0
        %v960 = vadd.f32 %v508, %v959
        %v961 = vpop.f32.mrb[0].mxu0
        %v962 = vadd.f32 %v512, %v961
        %963 = vmatprep.mubr.f32.mxu0 %v216
        %964 = vmatmul.mubr.f32.gmra.mrb[0].mxu0 %v215
        %v965 = vpop.f32.mrb[0].mxu0
        %v966 = vadd.f32 %v508, %v965
        %v967 = vpop.f32.mrb[0].mxu0
        %v968 = vadd.f32 %v512, %v967
        %969 = vmatprep.mubr.f32.mxu0 %v220
        %970 = vmatmul.mubr.f32.gmra.mrb[0].mxu0 %v219
        %v971 = vpop.f32.mrb[0].mxu0
        %v972 = vadd.f32 %v508, %v971
        %v973 = vpop.f32.mrb[0].mxu0
        %v974 = vadd.f32 %v512, %v973
        %975 = vmatprep.mubr.f32.mxu0 %v224
        %976 = vmatmul.mubr.f32.gmra.mrb[0].mxu0 %v223
        %v977 = vpop.f32.mrb[0].mxu0
        %v978 = vadd.f32 %v508, %v977
        %v979 = vpop.f32.mrb[0].mxu0
        %v980 = vadd.f32 %v512, %v979
        %981 = vmatprep.mubr.f32.mxu0 %v228
        %982 = vmatmul.mubr.f32.gmra.mrb[0].mxu0 %v227
        %v983 = vpop.f32.mrb[0].mxu0
        %v984 = vadd.f32 %v508, %v983
        %v985 = vpop.f32.mrb[0].mxu0
        %v986 = vadd.f32 %v512, %v985
        %987 = vmatprep.mubr.f32.mxu0 %v232
        %988 = vmatmul.mubr.f32.gmra.mrb[0].mxu0 %v231
        %v989 = vpop.f32.mrb[0].mxu0
        %v990 = vadd.f32 %v508, %v989
        %v991 = vpop.f32.mrb[0].mxu0
        %v992 = vadd.f32 %v512, %v991
        %993 = vmatprep.mubr.f32.mxu0 %v236
        %994 = vmatmul.mubr.f32.gmra.mrb[0].mxu0 %v235
        %v995 = vpop.f32.mrb[0].mxu0
        %v996 = vadd.f32 %v508, %v995
        %v997 = vpop.f32.mrb[0].mxu0
        %v998 = vadd.f32 %v512, %v997
        %999 = vdwg.mxu0
        %1000 = vmatprep.subr.mxu0 %v370
        %1001 = vmatpush1.msra.mxu0 %v369
        %1002 = vmatprep.subr.mxu0 %v374
        %1003 = vmatpush1.msra.mxu0 %v373
        %1004 = vmatprep.subr.mxu0 %v378
        %1005 = vmatpush1.msra.mxu0 %v377
        %1006 = vmatprep.subr.mxu0 %v382
        %1007 = vmatpush1.msra.mxu0 %v381
        %1008 = vmatprep.subr.mxu0 %v386
        %1009 = vmatpush1.msra.mxu0 %v385
        %1010 = vmatprep.subr.mxu0 %v390
        %1011 = vmatpush1.msra.mxu0 %v389
        %1012 = vmatprep.subr.mxu0 %v394
        %1013 = vmatpush1.msra.mxu0 %v393
        %1014 = vmatprep.subr.mxu0 %v398
        %1015 = vmatpush1.msra.mxu0 %v397
        %1016 = vmatprep.subr.mxu0 %v402
        %1017 = vmatpush1.msra.mxu0 %v401
        %1018 = vmatprep.subr.mxu0 %v406
        %1019 = vmatpush1.msra.mxu0 %v405
        %1020 = vmatprep.subr.mxu0 %v410
        %1021 = vmatpush1.msra.mxu0 %v409
        %1022 = vmatprep.subr.mxu0 %v414
        %1023 = vmatpush1.msra.mxu0 %v413
        %1024 = vmatprep.subr.mxu0 %v418
        %1025 = vmatpush1.msra.mxu0 %v417
        %1026 = vmatprep.subr.mxu0 %v422
        %1027 = vmatpush1.msra.mxu0 %v421
        %1028 = vmatprep.subr.mxu0 %v426
        %1029 = vmatpush1.msra.mxu0 %v425
        %1030 = vmatprep.subr.mxu0 %v430
        %1031 = vmatpush1.msra.mxu0 %v429
        %1032 = vmatprep.subr.mxu0 %v434
        %1033 = vmatpush1.msra.mxu0 %v433
        %1034 = vmatprep.subr.mxu0 %v438
        %1035 = vmatpush1.msra.mxu0 %v437
        %1036 = vmatprep.subr.mxu0 %v442
        %1037 = vmatpush1.msra.mxu0 %v441
        %1038 = vmatprep.subr.mxu0 %v446
        %1039 = vmatpush1.msra.mxu0 %v445
        %1040 = vmatprep.subr.mxu0 %v450
        %1041 = vmatpush1.msra.mxu0 %v449
        %1042 = vmatprep.subr.mxu0 %v454
        %1043 = vmatpush1.msra.mxu0 %v453
        %1044 = vmatprep.subr.mxu0 %v458
        %1045 = vmatpush1.msra.mxu0 %v457
        %1046 = vmatprep.subr.mxu0 %v462
        %1047 = vmatpush1.msra.mxu0 %v461
        %1048 = vmatprep.subr.mxu0 %v466
        %1049 = vmatpush1.msra.mxu0 %v465
        %1050 = vmatprep.subr.mxu0 %v470
        %1051 = vmatpush1.msra.mxu0 %v469
        %1052 = vmatprep.subr.mxu0 %v474
        %1053 = vmatpush1.msra.mxu0 %v473
        %1054 = vmatprep.subr.mxu0 %v478
        %1055 = vmatpush1.msra.mxu0 %v477
        %1056 = vmatprep.subr.mxu0 %v482
        %1057 = vmatpush1.msra.mxu0 %v481
        %1058 = vmatprep.subr.mxu0 %v486
        %1059 = vmatpush1.msra.mxu0 %v485
        %1060 = vmatprep.subr.mxu0 %v490
        %1061 = vmatpush1.msra.mxu0 %v489
        %1062 = vmatprep.subr.mxu0 %v494
        %1063 = vmatpush1.msra.mxu0 %v493
        %1064 = vmatprep.mubr.f32.mxu0 %v178
        %1065 = vmatmul.mubr.f32.gmra.mrb[0].mxu0 %v177
        %v1066 = vpop.f32.mrb[0].mxu0
        %v1067 = vadd.f32 %v906, %v1066
        %v1068 = vpop.f32.mrb[0].mxu0
        %v1069 = vadd.f32 %v908, %v1068
        %1070 = vmatprep.mubr.f32.mxu0 %v182
        %1071 = vmatmul.mubr.f32.gmra.mrb[0].mxu0 %v181
        %v1072 = vpop.f32.mrb[0].mxu0
        %v1073 = vadd.f32 %v912, %v1072
        %v1074 = vpop.f32.mrb[0].mxu0
        %v1075 = vadd.f32 %v914, %v1074
        %1076 = vmatprep.mubr.f32.mxu0 %v186
        %1077 = vmatmul.mubr.f32.gmra.mrb[0].mxu0 %v185
        %v1078 = vpop.f32.mrb[0].mxu0
        %v1079 = vadd.f32 %v918, %v1078
        %v1080 = vpop.f32.mrb[0].mxu0
        %v1081 = vadd.f32 %v920, %v1080
        %1082 = vmatprep.mubr.f32.mxu0 %v190
        %1083 = vmatmul.mubr.f32.gmra.mrb[0].mxu0 %v189
        %v1084 = vpop.f32.mrb[0].mxu0
        %v1085 = vadd.f32 %v924, %v1084
        %v1086 = vpop.f32.mrb[0].mxu0
        %v1087 = vadd.f32 %v926, %v1086
        %1088 = vmatprep.mubr.f32.mxu0 %v194
        %1089 = vmatmul.mubr.f32.gmra.mrb[0].mxu0 %v193
        %v1090 = vpop.f32.mrb[0].mxu0
        %v1091 = vadd.f32 %v930, %v1090
        %v1092 = vpop.f32.mrb[0].mxu0
        %v1093 = vadd.f32 %v932, %v1092
        %1094 = vmatprep.mubr.f32.mxu0 %v198
        %1095 = vmatmul.mubr.f32.gmra.mrb[0].mxu0 %v197
        %v1096 = vpop.f32.mrb[0].mxu0
        %v1097 = vadd.f32 %v936, %v1096
        %v1098 = vpop.f32.mrb[0].mxu0
        %v1099 = vadd.f32 %v938, %v1098
        %1100 = vmatprep.mubr.f32.mxu0 %v202
        %1101 = vmatmul.mubr.f32.gmra.mrb[0].mxu0 %v201
        %v1102 = vpop.f32.mrb[0].mxu0
        %v1103 = vadd.f32 %v942, %v1102
        %v1104 = vpop.f32.mrb[0].mxu0
        %v1105 = vadd.f32 %v944, %v1104
        %1106 = vmatprep.mubr.f32.mxu0 %v206
        %1107 = vmatmul.mubr.f32.gmra.mrb[0].mxu0 %v205
        %v1108 = vpop.f32.mrb[0].mxu0
        %v1109 = vadd.f32 %v948, %v1108
        %v1110 = vpop.f32.mrb[0].mxu0
        %v1111 = vadd.f32 %v950, %v1110
        %1112 = vmatprep.mubr.f32.mxu0 %v210
        %1113 = vmatmul.mubr.f32.gmra.mrb[0].mxu0 %v209
        %v1114 = vpop.f32.mrb[0].mxu0
        %v1115 = vadd.f32 %v954, %v1114
        %v1116 = vpop.f32.mrb[0].mxu0
        %v1117 = vadd.f32 %v956, %v1116
        %1118 = vmatprep.mubr.f32.mxu0 %v214
        %1119 = vmatmul.mubr.f32.gmra.mrb[0].mxu0 %v213
        %v1120 = vpop.f32.mrb[0].mxu0
        %v1121 = vadd.f32 %v960, %v1120
        %v1122 = vpop.f32.mrb[0].mxu0
        %v1123 = vadd.f32 %v962, %v1122
        %1124 = vmatprep.mubr.f32.mxu0 %v218
        %1125 = vmatmul.mubr.f32.gmra.mrb[0].mxu0 %v217
        %v1126 = vpop.f32.mrb[0].mxu0
        %v1127 = vadd.f32 %v966, %v1126
        %v1128 = vpop.f32.mrb[0].mxu0
        %v1129 = vadd.f32 %v968, %v1128
        %1130 = vmatprep.mubr.f32.mxu0 %v222
        %1131 = vmatmul.mubr.f32.gmra.mrb[0].mxu0 %v221
        %v1132 = vpop.f32.mrb[0].mxu0
        %v1133 = vadd.f32 %v972, %v1132
        %v1134 = vpop.f32.mrb[0].mxu0
        %v1135 = vadd.f32 %v974, %v1134
        %1136 = vmatprep.mubr.f32.mxu0 %v226
        %1137 = vmatmul.mubr.f32.gmra.mrb[0].mxu0 %v225
        %v1138 = vpop.f32.mrb[0].mxu0
        %v1139 = vadd.f32 %v978, %v1138
        %v1140 = vpop.f32.mrb[0].mxu0
        %v1141 = vadd.f32 %v980, %v1140
        %1142 = vmatprep.mubr.f32.mxu0 %v230
        %1143 = vmatmul.mubr.f32.gmra.mrb[0].mxu0 %v229
        %v1144 = vpop.f32.mrb[0].mxu0
        %v1145 = vadd.f32 %v984, %v1144
        %v1146 = vpop.f32.mrb[0].mxu0
        %v1147 = vadd.f32 %v986, %v1146
        %1148 = vmatprep.mubr.f32.mxu0 %v234
        %1149 = vmatmul.mubr.f32.gmra.mrb[0].mxu0 %v233
        %v1150 = vpop.f32.mrb[0].mxu0
        %v1151 = vadd.f32 %v990, %v1150
        %v1152 = vpop.f32.mrb[0].mxu0
        %v1153 = vadd.f32 %v992, %v1152
        %1154 = vmatprep.mubr.f32.mxu0 %v238
        %1155 = vmatmul.mubr.f32.gmra.mrb[0].mxu0 %v237
        %v1156 = vpop.f32.mrb[0].mxu0
        %v1157 = vadd.f32 %v996, %v1156
        %v1158 = vpop.f32.mrb[0].mxu0
        %v1159 = vadd.f32 %v998, %v1158
        %1160 = vdwg.mxu0
        %1161 = vst [vmem:[%s166] sm:$0xff] %v745
        %1162 = vst [vmem:[%s166 + $0x8] sm:$0xff] %v747
        %1163 = vst [vmem:[%s166 + $0x10] sm:$0xff] %v1067
        %1164 = vst [vmem:[%s166 + $0x18] sm:$0xff] %v1069
        %1165 = vst [vmem:[%s166 + $0x20] sm:$0xff] %v751
        %1166 = vst [vmem:[%s166 + $0x28] sm:$0xff] %v753
        %1167 = vst [vmem:[%s166 + $0x30] sm:$0xff] %v1073
        %1168 = vst [vmem:[%s166 + $0x38] sm:$0xff] %v1075
        %1169 = vst [vmem:[%s166 + $0x40] sm:$0xff] %v757
        %1170 = vst [vmem:[%s166 + $0x48] sm:$0xff] %v759
        %1171 = vst [vmem:[%s166 + $0x50] sm:$0xff] %v1079
        %1172 = vst [vmem:[%s166 + $0x58] sm:$0xff] %v1081
        %1173 = vst [vmem:[%s166 + $0x60] sm:$0xff] %v763
        %1174 = vst [vmem:[%s166 + $0x68] sm:$0xff] %v765
        %1175 = vst [vmem:[%s166 + $0x70] sm:$0xff] %v1085
        %1176 = vst [vmem:[%s166 + $0x78] sm:$0xff] %v1087
        %1177 = vst [vmem:[%s166 + $0x80] sm:$0xff] %v769
        %1178 = vst [vmem:[%s166 + $0x88] sm:$0xff] %v771
        %1179 = vst [vmem:[%s166 + $0x90] sm:$0xff] %v1091
        %1180 = vst [vmem:[%s166 + $0x98] sm:$0xff] %v1093
        %1181 = vst [vmem:[%s166 + $0xa0] sm:$0xff] %v775
        %1182 = vst [vmem:[%s166 + $0xa8] sm:$0xff] %v777
        %1183 = vst [vmem:[%s166 + $0xb0] sm:$0xff] %v1097
        %1184 = vst [vmem:[%s166 + $0xb8] sm:$0xff] %v1099
        %1185 = vst [vmem:[%s166 + $0xc0] sm:$0xff] %v781
        %1186 = vst [vmem:[%s166 + $0xc8] sm:$0xff] %v783
        %1187 = vst [vmem:[%s166 + $0xd0] sm:$0xff] %v1103
        %1188 = vst [vmem:[%s166 + $0xd8] sm:$0xff] %v1105
        %1189 = vst [vmem:[%s166 + $0xe0] sm:$0xff] %v787
        %1190 = vst [vmem:[%s166 + $0xe8] sm:$0xff] %v789
        %1191 = vst [vmem:[%s166 + $0xf0] sm:$0xff] %v1109
        %1192 = vst [vmem:[%s166 + $0xf8] sm:$0xff] %v1111
        %1193 = vst [vmem:[%s166 + $0x100] sm:$0xff] %v793
        %1194 = vst [vmem:[%s166 + $0x108] sm:$0xff] %v795
        %1195 = vst [vmem:[%s166 + $0x110] sm:$0xff] %v1115
        %1196 = vst [vmem:[%s166 + $0x118] sm:$0xff] %v1117
        %1197 = vst [vmem:[%s166 + $0x120] sm:$0xff] %v799
        %1198 = vst [vmem:[%s166 + $0x128] sm:$0xff] %v801
        %1199 = vst [vmem:[%s166 + $0x130] sm:$0xff] %v1121
        %1200 = vst [vmem:[%s166 + $0x138] sm:$0xff] %v1123
        %1201 = vst [vmem:[%s166 + $0x140] sm:$0xff] %v805
        %1202 = vst [vmem:[%s166 + $0x148] sm:$0xff] %v807
        %1203 = vst [vmem:[%s166 + $0x150] sm:$0xff] %v1127
        %1204 = vst [vmem:[%s166 + $0x158] sm:$0xff] %v1129
        %1205 = vst [vmem:[%s166 + $0x160] sm:$0xff] %v811
        %1206 = vst [vmem:[%s166 + $0x168] sm:$0xff] %v813
        %1207 = vst [vmem:[%s166 + $0x170] sm:$0xff] %v1133
        %1208 = vst [vmem:[%s166 + $0x178] sm:$0xff] %v1135
        %1209 = vst [vmem:[%s166 + $0x180] sm:$0xff] %v817
        %1210 = vst [vmem:[%s166 + $0x188] sm:$0xff] %v819
        %1211 = vst [vmem:[%s166 + $0x190] sm:$0xff] %v1139
        %1212 = vst [vmem:[%s166 + $0x198] sm:$0xff] %v1141
        %1213 = vst [vmem:[%s166 + $0x1a0] sm:$0xff] %v823
        %1214 = vst [vmem:[%s166 + $0x1a8] sm:$0xff] %v825
        %1215 = vst [vmem:[%s166 + $0x1b0] sm:$0xff] %v1145
        %1216 = vst [vmem:[%s166 + $0x1b8] sm:$0xff] %v1147
        %1217 = vst [vmem:[%s166 + $0x1c0] sm:$0xff] %v829
        %1218 = vst [vmem:[%s166 + $0x1c8] sm:$0xff] %v831
        %1219 = vst [vmem:[%s166 + $0x1d0] sm:$0xff] %v1151
        %1220 = vst [vmem:[%s166 + $0x1d8] sm:$0xff] %v1153
        %1221 = vst [vmem:[%s166 + $0x1e0] sm:$0xff] %v835
        %1222 = vst [vmem:[%s166 + $0x1e8] sm:$0xff] %v837
        %1223 = vst [vmem:[%s166 + $0x1f0] sm:$0xff] %v1157
        %1224 = vst [vmem:[%s166 + $0x1f8] sm:$0xff] %v1159
        %s1225 = sand.u32 %s93, 1
        %s1226 = scalar_lea.sflag [#allocation3], %s1225
        %s1227 = sand.u32 %s93, 1
        %s1228 = smul.addr %s1227, 512
        %s1229 = scalar_lea.vmem [#allocation2], %s1228
        // Predicated region
        $region33: #{multi_head_attention.3} parent=31 // pred_check
          %p1230 = pneg %p103
        $region34: #{multi_head_attention.3} parent=31 // pred_check_branch
          %1232 = sbr.rel (%p1230) target = $region36
        $region35: #{multi_head_attention.3} parent=31 // pred_region
          %s1233 = smul.u32 16, %s17
          %s1235 = ssub.s32 8192, 8192
          %1236 = vsyncadd %s1226, %s1235
          %s1237 = smul.addr %s1233, 4
          %s1238 = smul.addr %s1237, 128
          %s1239 = scalar_lea.hbm %s3, %s1238
          %s1240 = sshll.u32 %s1229, 4
          %s1241 = int_to_ptr.vmem [resolvable:$true] %s1240
          %1246 = dma.vmem_to_hbm [thread:$0]  %s1241, 8192, %s1239, %s1226, 512, 512, 32
        $region36: #{multi_head_attention.3} parent=31 // pred_fallthru
          _
      $region32: #{multi_head_attention.3} parent=5 // pred_fallthru
        _
      %p1247 = scmp.le.s32.totalorder 2, %s12
      // Predicated region
      $region37: #{multi_head_attention.3} parent=5 // pred_check
        %p1248 = pneg %p1247
      $region38: #{multi_head_attention.3} parent=5 // pred_check_branch
        %1250 = sbr.rel (%p1248) target = $region40
      $region39: #{multi_head_attention.3} parent=5 // pred_region
        %s1251 = ssub.s32 %s12, 2
        // Predicated region
        $region41: #{multi_head_attention.3} parent=39 // pred_check
          %p1252 = pneg %p109
        $region42: #{multi_head_attention.3} parent=39 // pred_check_branch
          %1254 = sbr.rel (%p1252) target = $region44
        $region43: #{multi_head_attention.3} parent=39 // pred_region
          %s1255 = sand.u32 %s94, 1
          %s1256 = scalar_lea.sflag [#allocation3], %s1255
          %s1257 = sand.u32 %s94, 1
          %s1258 = smul.addr %s1257, 512
          %s1259 = scalar_lea.vmem [#allocation2], %s1258
          %1260 = dma.done %s1256, 8192
        $region44: #{multi_head_attention.3} parent=39 // pred_fallthru
          _
      $region40: #{multi_head_attention.3} parent=5 // pred_fallthru
        _
    $region6: #{multi_head_attention.3} parent=1 // loop_footer
      %s16 = sadd.s32 1, %s12
    $region7: #{multi_head_attention.3} parent=1 // loop_footer_branch
      %11 = sbr.rel target = $region3
    $region8: #{multi_head_attention.3} parent=1 // loop_exit
      _
    %1261 = vsyncpa [#allocation3], 1
    %s1262 = scalar_lea.sflag [#allocation3], 1
    %1263 = vsyncpa %s1262, 1

// kernel: multi_head_attention.2
$region0: #{multi_head_attention.2}
  #allocation0 [shape = 'u32[]', space=smem, size = 0x4, offset = 0x4, fixed_abs, tag = 'smem constant byte address 0x4 - core index']
  #allocation1 [shape = 'u32[144,128]{1,0:T(1,128)}', space=vmem, size = 0x12000, scoped, tag = 'internal scratch']
  %s0 = inlined_call_operand.vmem [shape: f32[2,128,512], index: 0, kind: input, shape index: {}]
  %s1 = inlined_call_operand.vmem [shape: f32[512,1536], index: 1, kind: input, shape index: {}]
  %s2 = inlined_call_operand.vmem [shape: f32[1,1536], index: 2, kind: input, shape index: {}]
  %s3 = inlined_call_operand.vmem [shape: f32[2,4,128,128], index: 3, kind: output, shape index: {}]
  %s4 = sld [smem:[#allocation0]]
  $region68: #{multi_head_attention.2} parent=0
    _
  %s6 = ssub.s32 1, %s4
  %s7 = scalar_select 0, %s6, %s4
  $region1: #{multi_head_attention.2} parent=0
    #allocation2 [shape = 'u8[3145728]{0}', space=vmem, size = 0x300000, scoped, tag = 'input window, operand 1']
    loop: start=0, step=1, limit=6
    $region2: #{multi_head_attention.2} parent=1 // loop_pre_header
      _
    $region3: #{multi_head_attention.2} parent=1 // loop_header
      %s9 = sphi 0, %s13
      %p10 = scmp.ge.s32.totalorder %s9, 6
      %s16 = sphi 0, %s28
      %s17 = sphi 0, %s24
      %s18 = sphi 0, %s16
      %s19 = sphi 0, %s17
      %s20 = sphi 0, %s18
      %s21 = sphi 0, %s19
      %s31 = sphi 0, %s33
      %s34 = sphi 0, %s31
      %s35 = sphi 0, %s34
      %s51 = sphi 0, %s35
      %s57 = sphi 0, %s59
      %s60 = sphi 0, %s57
      %s61 = sphi 0, %s60
      %s77 = sphi 0, %s61
      %s83 = sphi 0, %s85
      %s86 = sphi 0, %s83
      %s87 = sphi 0, %s86
      %s103 = sphi 0, %s87
      %s111 = sphi 0, %s113
      %s114 = sphi 0, %s111
      %s115 = sphi 0, %s114
      %s131 = sphi 0, %s115
    $region4: #{multi_head_attention.2} parent=1 // loop_header_branch
      %12 = sbr.rel (%p10) target = $region8
    $region5: #{multi_head_attention.2} parent=1 // loop_body
      %s14 = ssub.s32 %s9, 1
      %s15 = ssub.s32 %s9, 2
      %s22 = sadd.s32 1, %s17
      %p23 = scmp.ge.s32.totalorder %s22, 2
      %s24 = scalar_select %p23, 0, %s22
      %s25 = sadd.s32 1, %s16
      %s26 = scalar_select %p23, %s25, %s16
      %p27 = scmp.ge.s32.totalorder %s26, 2
      %s28 = scalar_select %p27, 0, %s26
      %s29 = ssub.s32 %s17, %s24
      %p30 = scmp.eq.s32.totalorder %s29, 0
      %s32 = sadd.s32 %s31, 1
      %s33 = scalar_select %p30, %s31, %s32
      %p36 = pneg %p30
      %p37 = scmp.eq.s32.totalorder %s9, 3
      %p38 = por %p36, %p37
      %p39 = scmp.ne.s32.totalorder %s31, %s34
      %p40 = scmp.eq.s32.totalorder %s9, 0
      %p41 = por %p39, %p40
      %p42 = scmp.ne.s32.totalorder %s31, %s34
      %p43 = scmp.eq.s32.totalorder %s14, 3
      %p44 = por %p42, %p43
      %p45 = scmp.ne.s32.totalorder %s34, %s35
      %p46 = scmp.eq.s32.totalorder %s14, 0
      %p47 = por %p45, %p46
      %p48 = scmp.ne.s32.totalorder %s34, %s35
      %p49 = scmp.eq.s32.totalorder %s15, 3
      %p50 = por %p48, %p49
      %p52 = scmp.ne.s32.totalorder %s35, %s51
      %p53 = scmp.eq.s32.totalorder %s15, 0
      %p54 = por %p52, %p53
      %s55 = ssub.s32 %s16, %s28
      %p56 = scmp.eq.s32.totalorder %s55, 0
      %s58 = sadd.s32 %s57, 1
      %s59 = scalar_select %p56, %s57, %s58
      %p62 = pneg %p56
      %p63 = scmp.eq.s32.totalorder %s9, 3
      %p64 = por %p62, %p63
      %p65 = scmp.ne.s32.totalorder %s57, %s60
      %p66 = scmp.eq.s32.totalorder %s9, 0
      %p67 = por %p65, %p66
      %p68 = scmp.ne.s32.totalorder %s57, %s60
      %p69 = scmp.eq.s32.totalorder %s14, 3
      %p70 = por %p68, %p69
      %p71 = scmp.ne.s32.totalorder %s60, %s61
      %p72 = scmp.eq.s32.totalorder %s14, 0
      %p73 = por %p71, %p72
      %p74 = scmp.ne.s32.totalorder %s60, %s61
      %p75 = scmp.eq.s32.totalorder %s15, 3
      %p76 = por %p74, %p75
      %p78 = scmp.ne.s32.totalorder %s61, %s77
      %p79 = scmp.eq.s32.totalorder %s15, 0
      %p80 = por %p78, %p79
      %s81 = ssub.s32 %s16, %s28
      %p82 = scmp.eq.s32.totalorder %s81, 0
      %s84 = sadd.s32 %s83, 1
      %s85 = scalar_select %p82, %s83, %s84
      %p88 = pneg %p82
      %p89 = scmp.eq.s32.totalorder %s9, 3
      %p90 = por %p88, %p89
      %p91 = scmp.ne.s32.totalorder %s83, %s86
      %p92 = scmp.eq.s32.totalorder %s9, 0
      %p93 = por %p91, %p92
      %p94 = scmp.ne.s32.totalorder %s83, %s86
      %p95 = scmp.eq.s32.totalorder %s14, 3
      %p96 = por %p94, %p95
      %p97 = scmp.ne.s32.totalorder %s86, %s87
      %p98 = scmp.eq.s32.totalorder %s14, 0
      %p99 = por %p97, %p98
      %p100 = scmp.ne.s32.totalorder %s86, %s87
      %p101 = scmp.eq.s32.totalorder %s15, 3
      %p102 = por %p100, %p101
      %p104 = scmp.ne.s32.totalorder %s87, %s103
      %p105 = scmp.eq.s32.totalorder %s15, 0
      %p106 = por %p104, %p105
      %s107 = ssub.s32 %s17, %s24
      %s108 = ssub.s32 %s16, %s28
      %s109 = sor.u32 %s107, %s108
      %p110 = scmp.eq.s32.totalorder %s109, 0
      %s112 = sadd.s32 %s111, 1
      %s113 = scalar_select %p110, %s111, %s112
      %p116 = pneg %p110
      %p117 = scmp.eq.s32.totalorder %s9, 3
      %p118 = por %p116, %p117
      %p119 = scmp.ne.s32.totalorder %s111, %s114
      %p120 = scmp.eq.s32.totalorder %s9, 0
      %p121 = por %p119, %p120
      %p122 = scmp.ne.s32.totalorder %s111, %s114
      %p123 = scmp.eq.s32.totalorder %s14, 3
      %p124 = por %p122, %p123
      %p125 = scmp.ne.s32.totalorder %s114, %s115
      %p126 = scmp.eq.s32.totalorder %s14, 0
      %p127 = por %p125, %p126
      %p128 = scmp.ne.s32.totalorder %s114, %s115
      %p129 = scmp.eq.s32.totalorder %s15, 3
      %p130 = por %p128, %p129
      %p132 = scmp.ne.s32.totalorder %s115, %s131
      %p133 = scmp.eq.s32.totalorder %s15, 0
      %p134 = por %p132, %p133
      %p135 = scmp.le.s32.totalorder 1, %s9
      %p136 = scmp.lt.s32.totalorder %s9, 5
      %p137 = pnand %p135, %p136
      %p138 = pneg %p137
      // Predicated region
      $region9: #{multi_head_attention.2} parent=5 // pred_check
        _
      $region10: #{multi_head_attention.2} parent=5 // pred_check_branch
        %140 = sbr.rel (%p137) target = $region12
      $region11: #{multi_head_attention.2} parent=5 // pred_region
        %s141 = ssub.s32 %s9, 1
      $region12: #{multi_head_attention.2} parent=5 // pred_fallthru
        _
      %p142 = scmp.lt.s32.totalorder %s9, 4
      // Predicated region
      $region13: #{multi_head_attention.2} parent=5 // pred_check
        %p143 = pneg %p142
      $region14: #{multi_head_attention.2} parent=5 // pred_check_branch
        %145 = sbr.rel (%p143) target = $region16
      $region15: #{multi_head_attention.2} parent=5 // pred_region
        // Predicated region
        $region17: #{multi_head_attention.2} parent=15 // pred_check
          %p146 = pneg %p41
        $region18: #{multi_head_attention.2} parent=15 // pred_check_branch
          %148 = sbr.rel (%p146) target = $region20
        $region19: #{multi_head_attention.2} parent=15 // pred_region
          %p149 = scmp.lt.s32.totalorder %s17, 1
          %s150 = scalar_select %p149, %s17, 1
          %s151 = smul.addr %s150, 64
          %s152 = smul.addr %s151, 8
          %s153 = scalar_lea.vmem %s0, %s152
        $region20: #{multi_head_attention.2} parent=15 // pred_fallthru
          _
        // Predicated region
        $region21: #{multi_head_attention.2} parent=15 // pred_check
          %p154 = pneg %p67
        $region22: #{multi_head_attention.2} parent=15 // pred_check_branch
          %156 = sbr.rel (%p154) target = $region24
        $region23: #{multi_head_attention.2} parent=15 // pred_region
          %s157 = sand.u32 %s57, 1
          %s158 = sand.u32 %s57, 1
          %s159 = smul.addr %s158, 3072
          %s160 = scalar_lea.vmem [#allocation2], %s159
          %s161 = smul.u32 6, %s16
          %s162 = smul.addr %s161, 8
          %s163 = scalar_lea.vmem %s1, %s162
          // Predicated region
          $region25: #{multi_head_attention.2} parent=23 // pred_check
            _
          $region26: #{multi_head_attention.2} parent=23 // pred_check_branch
            %165 = sbr.rel (0) target = $region28
          $region27: #{multi_head_attention.2} parent=23 // pred_region
            // Predicated region
            $region29: #{multi_head_attention.2} parent=27 // pred_check
              _
            $region30: #{multi_head_attention.2} parent=27 // pred_check_branch
              %167 = sbr.rel (0) target = $region32
            $region31: #{multi_head_attention.2} parent=27 // pred_region
              loop: start=0, step=1, limit=1
              $region33: #{multi_head_attention.2} parent=31 // loop_pre_header
                _
              $region34: #{multi_head_attention.2} parent=31 // loop_header
                %s169 = sphi 0, %s173
                %p170 = scmp.ge.s32.totalorder %s169, 1
                %s174 = sphi %s163, %s163
                %s175 = sphi %s160, %s160
              $region35: #{multi_head_attention.2} parent=31 // loop_header_branch
                %172 = sbr.rel (%p170) target = $region39
              $region36: #{multi_head_attention.2} parent=31 // loop_body
                %v176 = vld [vmem:[%s174] sm:$0xff]
                %177 = vst [vmem:[%s175] sm:$0xff] %v176
                %v178 = vld [vmem:[%s174 + $0x8] sm:$0xff]
                %179 = vst [vmem:[%s175 + $0x8] sm:$0xff] %v178
                %v180 = vld [vmem:[%s174 + $0x10] sm:$0xff]
                %181 = vst [vmem:[%s175 + $0x10] sm:$0xff] %v180
                %v182 = vld [vmem:[%s174 + $0x18] sm:$0xff]
                %183 = vst [vmem:[%s175 + $0x18] sm:$0xff] %v182
                %v184 = vld [vmem:[%s174 + $0x20] sm:$0xff]
                %185 = vst [vmem:[%s175 + $0x20] sm:$0xff] %v184
                %v186 = vld [vmem:[%s174 + $0x28] sm:$0xff]
                %187 = vst [vmem:[%s175 + $0x28] sm:$0xff] %v186
                %v188 = vld [vmem:[%s174 + $0x60] sm:$0xff]
                %189 = vst [vmem:[%s175 + $0x30] sm:$0xff] %v188
                %v190 = vld [vmem:[%s174 + $0x68] sm:$0xff]
                %191 = vst [vmem:[%s175 + $0x38] sm:$0xff] %v190
                %v192 = vld [vmem:[%s174 + $0x70] sm:$0xff]
                %193 = vst [vmem:[%s175 + $0x40] sm:$0xff] %v192
                %v194 = vld [vmem:[%s174 + $0x78] sm:$0xff]
                %195 = vst [vmem:[%s175 + $0x48] sm:$0xff] %v194
                %v196 = vld [vmem:[%s174 + $0x80] sm:$0xff]
                %197 = vst [vmem:[%s175 + $0x50] sm:$0xff] %v196
                %v198 = vld [vmem:[%s174 + $0x88] sm:$0xff]
                %199 = vst [vmem:[%s175 + $0x58] sm:$0xff] %v198
                %v200 = vld [vmem:[%s174 + $0xc0] sm:$0xff]
                %201 = vst [vmem:[%s175 + $0x60] sm:$0xff] %v200
                %v202 = vld [vmem:[%s174 + $0xc8] sm:$0xff]
                %203 = vst [vmem:[%s175 + $0x68] sm:$0xff] %v202
                %v204 = vld [vmem:[%s174 + $0xd0] sm:$0xff]
                %205 = vst [vmem:[%s175 + $0x70] sm:$0xff] %v204
                %v206 = vld [vmem:[%s174 + $0xd8] sm:$0xff]
                %207 = vst [vmem:[%s175 + $0x78] sm:$0xff] %v206
                %v208 = vld [vmem:[%s174 + $0xe0] sm:$0xff]
                %209 = vst [vmem:[%s175 + $0x80] sm:$0xff] %v208
                %v210 = vld [vmem:[%s174 + $0xe8] sm:$0xff]
                %211 = vst [vmem:[%s175 + $0x88] sm:$0xff] %v210
                %v212 = vld [vmem:[%s174 + $0x120] sm:$0xff]
                %213 = vst [vmem:[%s175 + $0x90] sm:$0xff] %v212
                %v214 = vld [vmem:[%s174 + $0x128] sm:$0xff]
                %215 = vst [vmem:[%s175 + $0x98] sm:$0xff] %v214
                %v216 = vld [vmem:[%s174 + $0x130] sm:$0xff]
                %217 = vst [vmem:[%s175 + $0xa0] sm:$0xff] %v216
                %v218 = vld [vmem:[%s174 + $0x138] sm:$0xff]
                %219 = vst [vmem:[%s175 + $0xa8] sm:$0xff] %v218
                %v220 = vld [vmem:[%s174 + $0x140] sm:$0xff]
                %221 = vst [vmem:[%s175 + $0xb0] sm:$0xff] %v220
                %v222 = vld [vmem:[%s174 + $0x148] sm:$0xff]
                %223 = vst [vmem:[%s175 + $0xb8] sm:$0xff] %v222
                %v224 = vld [vmem:[%s174 + $0x180] sm:$0xff]
                %225 = vst [vmem:[%s175 + $0xc0] sm:$0xff] %v224
                %v226 = vld [vmem:[%s174 + $0x188] sm:$0xff]
                %227 = vst [vmem:[%s175 + $0xc8] sm:$0xff] %v226
                %v228 = vld [vmem:[%s174 + $0x190] sm:$0xff]
                %229 = vst [vmem:[%s175 + $0xd0] sm:$0xff] %v228
                %v230 = vld [vmem:[%s174 + $0x198] sm:$0xff]
                %231 = vst [vmem:[%s175 + $0xd8] sm:$0xff] %v230
                %v232 = vld [vmem:[%s174 + $0x1a0] sm:$0xff]
                %233 = vst [vmem:[%s175 + $0xe0] sm:$0xff] %v232
                %v234 = vld [vmem:[%s174 + $0x1a8] sm:$0xff]
                %235 = vst [vmem:[%s175 + $0xe8] sm:$0xff] %v234
                %v236 = vld [vmem:[%s174 + $0x1e0] sm:$0xff]
                %237 = vst [vmem:[%s175 + $0xf0] sm:$0xff] %v236
                %v238 = vld [vmem:[%s174 + $0x1e8] sm:$0xff]
                %239 = vst [vmem:[%s175 + $0xf8] sm:$0xff] %v238
                %v240 = vld [vmem:[%s174 + $0x1f0] sm:$0xff]
                %241 = vst [vmem:[%s175 + $0x100] sm:$0xff] %v240
                %v242 = vld [vmem:[%s174 + $0x1f8] sm:$0xff]
                %243 = vst [vmem:[%s175 + $0x108] sm:$0xff] %v242
                %v244 = vld [vmem:[%s174 + $0x200] sm:$0xff]
                %245 = vst [vmem:[%s175 + $0x110] sm:$0xff] %v244
                %v246 = vld [vmem:[%s174 + $0x208] sm:$0xff]
                %247 = vst [vmem:[%s175 + $0x118] sm:$0xff] %v246
                %v248 = vld [vmem:[%s174 + $0x240] sm:$0xff]
                %249 = vst [vmem:[%s175 + $0x120] sm:$0xff] %v248
                %v250 = vld [vmem:[%s174 + $0x248] sm:$0xff]
                %251 = vst [vmem:[%s175 + $0x128] sm:$0xff] %v250
                %v252 = vld [vmem:[%s174 + $0x250] sm:$0xff]
                %253 = vst [vmem:[%s175 + $0x130] sm:$0xff] %v252
                %v254 = vld [vmem:[%s174 + $0x258] sm:$0xff]
                %255 = vst [vmem:[%s175 + $0x138] sm:$0xff] %v254
                %v256 = vld [vmem:[%s174 + $0x260] sm:$0xff]
                %257 = vst [vmem:[%s175 + $0x140] sm:$0xff] %v256
                %v258 = vld [vmem:[%s174 + $0x268] sm:$0xff]
                %259 = vst [vmem:[%s175 + $0x148] sm:$0xff] %v258
                %v260 = vld [vmem:[%s174 + $0x2a0] sm:$0xff]
                %261 = vst [vmem:[%s175 + $0x150] sm:$0xff] %v260
                %v262 = vld [vmem:[%s174 + $0x2a8] sm:$0xff]
                %263 = vst [vmem:[%s175 + $0x158] sm:$0xff] %v262
                %v264 = vld [vmem:[%s174 + $0x2b0] sm:$0xff]
                %265 = vst [vmem:[%s175 + $0x160] sm:$0xff] %v264
                %v266 = vld [vmem:[%s174 + $0x2b8] sm:$0xff]
                %267 = vst [vmem:[%s175 + $0x168] sm:$0xff] %v266
                %v268 = vld [vmem:[%s174 + $0x2c0] sm:$0xff]
                %269 = vst [vmem:[%s175 + $0x170] sm:$0xff] %v268
                %v270 = vld [vmem:[%s174 + $0x2c8] sm:$0xff]
                %271 = vst [vmem:[%s175 + $0x178] sm:$0xff] %v270
                %v272 = vld [vmem:[%s174 + $0x300] sm:$0xff]
                %273 = vst [vmem:[%s175 + $0x180] sm:$0xff] %v272
                %v274 = vld [vmem:[%s174 + $0x308] sm:$0xff]
                %275 = vst [vmem:[%s175 + $0x188] sm:$0xff] %v274
                %v276 = vld [vmem:[%s174 + $0x310] sm:$0xff]
                %277 = vst [vmem:[%s175 + $0x190] sm:$0xff] %v276
                %v278 = vld [vmem:[%s174 + $0x318] sm:$0xff]
                %279 = vst [vmem:[%s175 + $0x198] sm:$0xff] %v278
                %v280 = vld [vmem:[%s174 + $0x320] sm:$0xff]
                %281 = vst [vmem:[%s175 + $0x1a0] sm:$0xff] %v280
                %v282 = vld [vmem:[%s174 + $0x328] sm:$0xff]
                %283 = vst [vmem:[%s175 + $0x1a8] sm:$0xff] %v282
                %v284 = vld [vmem:[%s174 + $0x360] sm:$0xff]
                %285 = vst [vmem:[%s175 + $0x1b0] sm:$0xff] %v284
                %v286 = vld [vmem:[%s174 + $0x368] sm:$0xff]
                %287 = vst [vmem:[%s175 + $0x1b8] sm:$0xff] %v286
                %v288 = vld [vmem:[%s174 + $0x370] sm:$0xff]
                %289 = vst [vmem:[%s175 + $0x1c0] sm:$0xff] %v288
                %v290 = vld [vmem:[%s174 + $0x378] sm:$0xff]
                %291 = vst [vmem:[%s175 + $0x1c8] sm:$0xff] %v290
                %v292 = vld [vmem:[%s174 + $0x380] sm:$0xff]
                %293 = vst [vmem:[%s175 + $0x1d0] sm:$0xff] %v292
                %v294 = vld [vmem:[%s174 + $0x388] sm:$0xff]
                %295 = vst [vmem:[%s175 + $0x1d8] sm:$0xff] %v294
                %v296 = vld [vmem:[%s174 + $0x3c0] sm:$0xff]
                %297 = vst [vmem:[%s175 + $0x1e0] sm:$0xff] %v296
                %v298 = vld [vmem:[%s174 + $0x3c8] sm:$0xff]
                %299 = vst [vmem:[%s175 + $0x1e8] sm:$0xff] %v298
                %v300 = vld [vmem:[%s174 + $0x3d0] sm:$0xff]
                %301 = vst [vmem:[%s175 + $0x1f0] sm:$0xff] %v300
                %v302 = vld [vmem:[%s174 + $0x3d8] sm:$0xff]
                %303 = vst [vmem:[%s175 + $0x1f8] sm:$0xff] %v302
                %v304 = vld [vmem:[%s174 + $0x3e0] sm:$0xff]
                %305 = vst [vmem:[%s175 + $0x200] sm:$0xff] %v304
                %v306 = vld [vmem:[%s174 + $0x3e8] sm:$0xff]
                %307 = vst [vmem:[%s175 + $0x208] sm:$0xff] %v306
                %v308 = vld [vmem:[%s174 + $0x420] sm:$0xff]
                %309 = vst [vmem:[%s175 + $0x210] sm:$0xff] %v308
                %v310 = vld [vmem:[%s174 + $0x428] sm:$0xff]
                %311 = vst [vmem:[%s175 + $0x218] sm:$0xff] %v310
                %v312 = vld [vmem:[%s174 + $0x430] sm:$0xff]
                %313 = vst [vmem:[%s175 + $0x220] sm:$0xff] %v312
                %v314 = vld [vmem:[%s174 + $0x438] sm:$0xff]
                %315 = vst [vmem:[%s175 + $0x228] sm:$0xff] %v314
                %v316 = vld [vmem:[%s174 + $0x440] sm:$0xff]
                %317 = vst [vmem:[%s175 + $0x230] sm:$0xff] %v316
                %v318 = vld [vmem:[%s174 + $0x448] sm:$0xff]
                %319 = vst [vmem:[%s175 + $0x238] sm:$0xff] %v318
                %v320 = vld [vmem:[%s174 + $0x480] sm:$0xff]
                %321 = vst [vmem:[%s175 + $0x240] sm:$0xff] %v320
                %v322 = vld [vmem:[%s174 + $0x488] sm:$0xff]
                %323 = vst [vmem:[%s175 + $0x248] sm:$0xff] %v322
                %v324 = vld [vmem:[%s174 + $0x490] sm:$0xff]
                %325 = vst [vmem:[%s175 + $0x250] sm:$0xff] %v324
                %v326 = vld [vmem:[%s174 + $0x498] sm:$0xff]
                %327 = vst [vmem:[%s175 + $0x258] sm:$0xff] %v326
                %v328 = vld [vmem:[%s174 + $0x4a0] sm:$0xff]
                %329 = vst [vmem:[%s175 + $0x260] sm:$0xff] %v328
                %v330 = vld [vmem:[%s174 + $0x4a8] sm:$0xff]
                %331 = vst [vmem:[%s175 + $0x268] sm:$0xff] %v330
                %v332 = vld [vmem:[%s174 + $0x4e0] sm:$0xff]
                %333 = vst [vmem:[%s175 + $0x270] sm:$0xff] %v332
                %v334 = vld [vmem:[%s174 + $0x4e8] sm:$0xff]
                %335 = vst [vmem:[%s175 + $0x278] sm:$0xff] %v334
                %v336 = vld [vmem:[%s174 + $0x4f0] sm:$0xff]
                %337 = vst [vmem:[%s175 + $0x280] sm:$0xff] %v336
                %v338 = vld [vmem:[%s174 + $0x4f8] sm:$0xff]
                %339 = vst [vmem:[%s175 + $0x288] sm:$0xff] %v338
                %v340 = vld [vmem:[%s174 + $0x500] sm:$0xff]
                %341 = vst [vmem:[%s175 + $0x290] sm:$0xff] %v340
                %v342 = vld [vmem:[%s174 + $0x508] sm:$0xff]
                %343 = vst [vmem:[%s175 + $0x298] sm:$0xff] %v342
                %v344 = vld [vmem:[%s174 + $0x540] sm:$0xff]
                %345 = vst [vmem:[%s175 + $0x2a0] sm:$0xff] %v344
                %v346 = vld [vmem:[%s174 + $0x548] sm:$0xff]
                %347 = vst [vmem:[%s175 + $0x2a8] sm:$0xff] %v346
                %v348 = vld [vmem:[%s174 + $0x550] sm:$0xff]
                %349 = vst [vmem:[%s175 + $0x2b0] sm:$0xff] %v348
                %v350 = vld [vmem:[%s174 + $0x558] sm:$0xff]
                %351 = vst [vmem:[%s175 + $0x2b8] sm:$0xff] %v350
                %v352 = vld [vmem:[%s174 + $0x560] sm:$0xff]
                %353 = vst [vmem:[%s175 + $0x2c0] sm:$0xff] %v352
                %v354 = vld [vmem:[%s174 + $0x568] sm:$0xff]
                %355 = vst [vmem:[%s175 + $0x2c8] sm:$0xff] %v354
                %v356 = vld [vmem:[%s174 + $0x5a0] sm:$0xff]
                %357 = vst [vmem:[%s175 + $0x2d0] sm:$0xff] %v356
                %v358 = vld [vmem:[%s174 + $0x5a8] sm:$0xff]
                %359 = vst [vmem:[%s175 + $0x2d8] sm:$0xff] %v358
                %v360 = vld [vmem:[%s174 + $0x5b0] sm:$0xff]
                %361 = vst [vmem:[%s175 + $0x2e0] sm:$0xff] %v360
                %v362 = vld [vmem:[%s174 + $0x5b8] sm:$0xff]
                %363 = vst [vmem:[%s175 + $0x2e8] sm:$0xff] %v362
                %v364 = vld [vmem:[%s174 + $0x5c0] sm:$0xff]
                %365 = vst [vmem:[%s175 + $0x2f0] sm:$0xff] %v364
                %v366 = vld [vmem:[%s174 + $0x5c8] sm:$0xff]
                %367 = vst [vmem:[%s175 + $0x2f8] sm:$0xff] %v366
                %v368 = vld [vmem:[%s174 + $0x600] sm:$0xff]
                %369 = vst [vmem:[%s175 + $0x300] sm:$0xff] %v368
                %v370 = vld [vmem:[%s174 + $0x608] sm:$0xff]
                %371 = vst [vmem:[%s175 + $0x308] sm:$0xff] %v370
                %v372 = vld [vmem:[%s174 + $0x610] sm:$0xff]
                %373 = vst [vmem:[%s175 + $0x310] sm:$0xff] %v372
                %v374 = vld [vmem:[%s174 + $0x618] sm:$0xff]
                %375 = vst [vmem:[%s175 + $0x318] sm:$0xff] %v374
                %v376 = vld [vmem:[%s174 + $0x620] sm:$0xff]
                %377 = vst [vmem:[%s175 + $0x320] sm:$0xff] %v376
                %v378 = vld [vmem:[%s174 + $0x628] sm:$0xff]
                %379 = vst [vmem:[%s175 + $0x328] sm:$0xff] %v378
                %v380 = vld [vmem:[%s174 + $0x660] sm:$0xff]
                %381 = vst [vmem:[%s175 + $0x330] sm:$0xff] %v380
                %v382 = vld [vmem:[%s174 + $0x668] sm:$0xff]
                %383 = vst [vmem:[%s175 + $0x338] sm:$0xff] %v382
                %v384 = vld [vmem:[%s174 + $0x670] sm:$0xff]
                %385 = vst [vmem:[%s175 + $0x340] sm:$0xff] %v384
                %v386 = vld [vmem:[%s174 + $0x678] sm:$0xff]
                %387 = vst [vmem:[%s175 + $0x348] sm:$0xff] %v386
                %v388 = vld [vmem:[%s174 + $0x680] sm:$0xff]
                %389 = vst [vmem:[%s175 + $0x350] sm:$0xff] %v388
                %v390 = vld [vmem:[%s174 + $0x688] sm:$0xff]
                %391 = vst [vmem:[%s175 + $0x358] sm:$0xff] %v390
                %v392 = vld [vmem:[%s174 + $0x6c0] sm:$0xff]
                %393 = vst [vmem:[%s175 + $0x360] sm:$0xff] %v392
                %v394 = vld [vmem:[%s174 + $0x6c8] sm:$0xff]
                %395 = vst [vmem:[%s175 + $0x368] sm:$0xff] %v394
                %v396 = vld [vmem:[%s174 + $0x6d0] sm:$0xff]
                %397 = vst [vmem:[%s175 + $0x370] sm:$0xff] %v396
                %v398 = vld [vmem:[%s174 + $0x6d8] sm:$0xff]
                %399 = vst [vmem:[%s175 + $0x378] sm:$0xff] %v398
                %v400 = vld [vmem:[%s174 + $0x6e0] sm:$0xff]
                %401 = vst [vmem:[%s175 + $0x380] sm:$0xff] %v400
                %v402 = vld [vmem:[%s174 + $0x6e8] sm:$0xff]
                %403 = vst [vmem:[%s175 + $0x388] sm:$0xff] %v402
                %v404 = vld [vmem:[%s174 + $0x720] sm:$0xff]
                %405 = vst [vmem:[%s175 + $0x390] sm:$0xff] %v404
                %v406 = vld [vmem:[%s174 + $0x728] sm:$0xff]
                %407 = vst [vmem:[%s175 + $0x398] sm:$0xff] %v406
                %v408 = vld [vmem:[%s174 + $0x730] sm:$0xff]
                %409 = vst [vmem:[%s175 + $0x3a0] sm:$0xff] %v408
                %v410 = vld [vmem:[%s174 + $0x738] sm:$0xff]
                %411 = vst [vmem:[%s175 + $0x3a8] sm:$0xff] %v410
                %v412 = vld [vmem:[%s174 + $0x740] sm:$0xff]
                %413 = vst [vmem:[%s175 + $0x3b0] sm:$0xff] %v412
                %v414 = vld [vmem:[%s174 + $0x748] sm:$0xff]
                %415 = vst [vmem:[%s175 + $0x3b8] sm:$0xff] %v414
                %v416 = vld [vmem:[%s174 + $0x780] sm:$0xff]
                %417 = vst [vmem:[%s175 + $0x3c0] sm:$0xff] %v416
                %v418 = vld [vmem:[%s174 + $0x788] sm:$0xff]
                %419 = vst [vmem:[%s175 + $0x3c8] sm:$0xff] %v418
                %v420 = vld [vmem:[%s174 + $0x790] sm:$0xff]
                %421 = vst [vmem:[%s175 + $0x3d0] sm:$0xff] %v420
                %v422 = vld [vmem:[%s174 + $0x798] sm:$0xff]
                %423 = vst [vmem:[%s175 + $0x3d8] sm:$0xff] %v422
                %v424 = vld [vmem:[%s174 + $0x7a0] sm:$0xff]
                %425 = vst [vmem:[%s175 + $0x3e0] sm:$0xff] %v424
                %v426 = vld [vmem:[%s174 + $0x7a8] sm:$0xff]
                %427 = vst [vmem:[%s175 + $0x3e8] sm:$0xff] %v426
                %v428 = vld [vmem:[%s174 + $0x7e0] sm:$0xff]
                %429 = vst [vmem:[%s175 + $0x3f0] sm:$0xff] %v428
                %v430 = vld [vmem:[%s174 + $0x7e8] sm:$0xff]
                %431 = vst [vmem:[%s175 + $0x3f8] sm:$0xff] %v430
                %v432 = vld [vmem:[%s174 + $0x7f0] sm:$0xff]
                %433 = vst [vmem:[%s175 + $0x400] sm:$0xff] %v432
                %v434 = vld [vmem:[%s174 + $0x7f8] sm:$0xff]
                %435 = vst [vmem:[%s175 + $0x408] sm:$0xff] %v434
                %v436 = vld [vmem:[%s174 + $0x800] sm:$0xff]
                %437 = vst [vmem:[%s175 + $0x410] sm:$0xff] %v436
                %v438 = vld [vmem:[%s174 + $0x808] sm:$0xff]
                %439 = vst [vmem:[%s175 + $0x418] sm:$0xff] %v438
                %v440 = vld [vmem:[%s174 + $0x840] sm:$0xff]
                %441 = vst [vmem:[%s175 + $0x420] sm:$0xff] %v440
                %v442 = vld [vmem:[%s174 + $0x848] sm:$0xff]
                %443 = vst [vmem:[%s175 + $0x428] sm:$0xff] %v442
                %v444 = vld [vmem:[%s174 + $0x850] sm:$0xff]
                %445 = vst [vmem:[%s175 + $0x430] sm:$0xff] %v444
                %v446 = vld [vmem:[%s174 + $0x858] sm:$0xff]
                %447 = vst [vmem:[%s175 + $0x438] sm:$0xff] %v446
                %v448 = vld [vmem:[%s174 + $0x860] sm:$0xff]
                %449 = vst [vmem:[%s175 + $0x440] sm:$0xff] %v448
                %v450 = vld [vmem:[%s174 + $0x868] sm:$0xff]
                %451 = vst [vmem:[%s175 + $0x448] sm:$0xff] %v450
                %v452 = vld [vmem:[%s174 + $0x8a0] sm:$0xff]
                %453 = vst [vmem:[%s175 + $0x450] sm:$0xff] %v452
                %v454 = vld [vmem:[%s174 + $0x8a8] sm:$0xff]
                %455 = vst [vmem:[%s175 + $0x458] sm:$0xff] %v454
                %v456 = vld [vmem:[%s174 + $0x8b0] sm:$0xff]
                %457 = vst [vmem:[%s175 + $0x460] sm:$0xff] %v456
                %v458 = vld [vmem:[%s174 + $0x8b8] sm:$0xff]
                %459 = vst [vmem:[%s175 + $0x468] sm:$0xff] %v458
                %v460 = vld [vmem:[%s174 + $0x8c0] sm:$0xff]
                %461 = vst [vmem:[%s175 + $0x470] sm:$0xff] %v460
                %v462 = vld [vmem:[%s174 + $0x8c8] sm:$0xff]
                %463 = vst [vmem:[%s175 + $0x478] sm:$0xff] %v462
                %v464 = vld [vmem:[%s174 + $0x900] sm:$0xff]
                %465 = vst [vmem:[%s175 + $0x480] sm:$0xff] %v464
                %v466 = vld [vmem:[%s174 + $0x908] sm:$0xff]
                %467 = vst [vmem:[%s175 + $0x488] sm:$0xff] %v466
                %v468 = vld [vmem:[%s174 + $0x910] sm:$0xff]
                %469 = vst [vmem:[%s175 + $0x490] sm:$0xff] %v468
                %v470 = vld [vmem:[%s174 + $0x918] sm:$0xff]
                %471 = vst [vmem:[%s175 + $0x498] sm:$0xff] %v470
                %v472 = vld [vmem:[%s174 + $0x920] sm:$0xff]
                %473 = vst [vmem:[%s175 + $0x4a0] sm:$0xff] %v472
                %v474 = vld [vmem:[%s174 + $0x928] sm:$0xff]
                %475 = vst [vmem:[%s175 + $0x4a8] sm:$0xff] %v474
                %v476 = vld [vmem:[%s174 + $0x960] sm:$0xff]
                %477 = vst [vmem:[%s175 + $0x4b0] sm:$0xff] %v476
                %v478 = vld [vmem:[%s174 + $0x968] sm:$0xff]
                %479 = vst [vmem:[%s175 + $0x4b8] sm:$0xff] %v478
                %v480 = vld [vmem:[%s174 + $0x970] sm:$0xff]
                %481 = vst [vmem:[%s175 + $0x4c0] sm:$0xff] %v480
                %v482 = vld [vmem:[%s174 + $0x978] sm:$0xff]
                %483 = vst [vmem:[%s175 + $0x4c8] sm:$0xff] %v482
                %v484 = vld [vmem:[%s174 + $0x980] sm:$0xff]
                %485 = vst [vmem:[%s175 + $0x4d0] sm:$0xff] %v484
                %v486 = vld [vmem:[%s174 + $0x988] sm:$0xff]
                %487 = vst [vmem:[%s175 + $0x4d8] sm:$0xff] %v486
                %v488 = vld [vmem:[%s174 + $0x9c0] sm:$0xff]
                %489 = vst [vmem:[%s175 + $0x4e0] sm:$0xff] %v488
                %v490 = vld [vmem:[%s174 + $0x9c8] sm:$0xff]
                %491 = vst [vmem:[%s175 + $0x4e8] sm:$0xff] %v490
                %v492 = vld [vmem:[%s174 + $0x9d0] sm:$0xff]
                %493 = vst [vmem:[%s175 + $0x4f0] sm:$0xff] %v492
                %v494 = vld [vmem:[%s174 + $0x9d8] sm:$0xff]
                %495 = vst [vmem:[%s175 + $0x4f8] sm:$0xff] %v494
                %v496 = vld [vmem:[%s174 + $0x9e0] sm:$0xff]
                %497 = vst [vmem:[%s175 + $0x500] sm:$0xff] %v496
                %v498 = vld [vmem:[%s174 + $0x9e8] sm:$0xff]
                %499 = vst [vmem:[%s175 + $0x508] sm:$0xff] %v498
                %v500 = vld [vmem:[%s174 + $0xa20] sm:$0xff]
                %501 = vst [vmem:[%s175 + $0x510] sm:$0xff] %v500
                %v502 = vld [vmem:[%s174 + $0xa28] sm:$0xff]
                %503 = vst [vmem:[%s175 + $0x518] sm:$0xff] %v502
                %v504 = vld [vmem:[%s174 + $0xa30] sm:$0xff]
                %505 = vst [vmem:[%s175 + $0x520] sm:$0xff] %v504
                %v506 = vld [vmem:[%s174 + $0xa38] sm:$0xff]
                %507 = vst [vmem:[%s175 + $0x528] sm:$0xff] %v506
                %v508 = vld [vmem:[%s174 + $0xa40] sm:$0xff]
                %509 = vst [vmem:[%s175 + $0x530] sm:$0xff] %v508
                %v510 = vld [vmem:[%s174 + $0xa48] sm:$0xff]
                %511 = vst [vmem:[%s175 + $0x538] sm:$0xff] %v510
                %v512 = vld [vmem:[%s174 + $0xa80] sm:$0xff]
                %513 = vst [vmem:[%s175 + $0x540] sm:$0xff] %v512
                %v514 = vld [vmem:[%s174 + $0xa88] sm:$0xff]
                %515 = vst [vmem:[%s175 + $0x548] sm:$0xff] %v514
                %v516 = vld [vmem:[%s174 + $0xa90] sm:$0xff]
                %517 = vst [vmem:[%s175 + $0x550] sm:$0xff] %v516
                %v518 = vld [vmem:[%s174 + $0xa98] sm:$0xff]
                %519 = vst [vmem:[%s175 + $0x558] sm:$0xff] %v518
                %v520 = vld [vmem:[%s174 + $0xaa0] sm:$0xff]
                %521 = vst [vmem:[%s175 + $0x560] sm:$0xff] %v520
                %v522 = vld [vmem:[%s174 + $0xaa8] sm:$0xff]
                %523 = vst [vmem:[%s175 + $0x568] sm:$0xff] %v522
                %v524 = vld [vmem:[%s174 + $0xae0] sm:$0xff]
                %525 = vst [vmem:[%s175 + $0x570] sm:$0xff] %v524
                %v526 = vld [vmem:[%s174 + $0xae8] sm:$0xff]
                %527 = vst [vmem:[%s175 + $0x578] sm:$0xff] %v526
                %v528 = vld [vmem:[%s174 + $0xaf0] sm:$0xff]
                %529 = vst [vmem:[%s175 + $0x580] sm:$0xff] %v528
                %v530 = vld [vmem:[%s174 + $0xaf8] sm:$0xff]
                %531 = vst [vmem:[%s175 + $0x588] sm:$0xff] %v530
                %v532 = vld [vmem:[%s174 + $0xb00] sm:$0xff]
                %533 = vst [vmem:[%s175 + $0x590] sm:$0xff] %v532
                %v534 = vld [vmem:[%s174 + $0xb08] sm:$0xff]
                %535 = vst [vmem:[%s175 + $0x598] sm:$0xff] %v534
                %v536 = vld [vmem:[%s174 + $0xb40] sm:$0xff]
                %537 = vst [vmem:[%s175 + $0x5a0] sm:$0xff] %v536
                %v538 = vld [vmem:[%s174 + $0xb48] sm:$0xff]
                %539 = vst [vmem:[%s175 + $0x5a8] sm:$0xff] %v538
                %v540 = vld [vmem:[%s174 + $0xb50] sm:$0xff]
                %541 = vst [vmem:[%s175 + $0x5b0] sm:$0xff] %v540
                %v542 = vld [vmem:[%s174 + $0xb58] sm:$0xff]
                %543 = vst [vmem:[%s175 + $0x5b8] sm:$0xff] %v542
                %v544 = vld [vmem:[%s174 + $0xb60] sm:$0xff]
                %545 = vst [vmem:[%s175 + $0x5c0] sm:$0xff] %v544
                %v546 = vld [vmem:[%s174 + $0xb68] sm:$0xff]
                %547 = vst [vmem:[%s175 + $0x5c8] sm:$0xff] %v546
                %v548 = vld [vmem:[%s174 + $0xba0] sm:$0xff]
                %549 = vst [vmem:[%s175 + $0x5d0] sm:$0xff] %v548
                %v550 = vld [vmem:[%s174 + $0xba8] sm:$0xff]
                %551 = vst [vmem:[%s175 + $0x5d8] sm:$0xff] %v550
                %v552 = vld [vmem:[%s174 + $0xbb0] sm:$0xff]
                %553 = vst [vmem:[%s175 + $0x5e0] sm:$0xff] %v552
                %v554 = vld [vmem:[%s174 + $0xbb8] sm:$0xff]
                %555 = vst [vmem:[%s175 + $0x5e8] sm:$0xff] %v554
                %v556 = vld [vmem:[%s174 + $0xbc0] sm:$0xff]
                %557 = vst [vmem:[%s175 + $0x5f0] sm:$0xff] %v556
                %v558 = vld [vmem:[%s174 + $0xbc8] sm:$0xff]
                %559 = vst [vmem:[%s175 + $0x5f8] sm:$0xff] %v558
                %v560 = vld [vmem:[%s174 + $0xc00] sm:$0xff]
                %561 = vst [vmem:[%s175 + $0x600] sm:$0xff] %v560
                %v562 = vld [vmem:[%s174 + $0xc08] sm:$0xff]
                %563 = vst [vmem:[%s175 + $0x608] sm:$0xff] %v562
                %v564 = vld [vmem:[%s174 + $0xc10] sm:$0xff]
                %565 = vst [vmem:[%s175 + $0x610] sm:$0xff] %v564
                %v566 = vld [vmem:[%s174 + $0xc18] sm:$0xff]
                %567 = vst [vmem:[%s175 + $0x618] sm:$0xff] %v566
                %v568 = vld [vmem:[%s174 + $0xc20] sm:$0xff]
                %569 = vst [vmem:[%s175 + $0x620] sm:$0xff] %v568
                %v570 = vld [vmem:[%s174 + $0xc28] sm:$0xff]
                %571 = vst [vmem:[%s175 + $0x628] sm:$0xff] %v570
                %v572 = vld [vmem:[%s174 + $0xc60] sm:$0xff]
                %573 = vst [vmem:[%s175 + $0x630] sm:$0xff] %v572
                %v574 = vld [vmem:[%s174 + $0xc68] sm:$0xff]
                %575 = vst [vmem:[%s175 + $0x638] sm:$0xff] %v574
                %v576 = vld [vmem:[%s174 + $0xc70] sm:$0xff]
                %577 = vst [vmem:[%s175 + $0x640] sm:$0xff] %v576
                %v578 = vld [vmem:[%s174 + $0xc78] sm:$0xff]
                %579 = vst [vmem:[%s175 + $0x648] sm:$0xff] %v578
                %v580 = vld [vmem:[%s174 + $0xc80] sm:$0xff]
                %581 = vst [vmem:[%s175 + $0x650] sm:$0xff] %v580
                %v582 = vld [vmem:[%s174 + $0xc88] sm:$0xff]
                %583 = vst [vmem:[%s175 + $0x658] sm:$0xff] %v582
                %v584 = vld [vmem:[%s174 + $0xcc0] sm:$0xff]
                %585 = vst [vmem:[%s175 + $0x660] sm:$0xff] %v584
                %v586 = vld [vmem:[%s174 + $0xcc8] sm:$0xff]
                %587 = vst [vmem:[%s175 + $0x668] sm:$0xff] %v586
                %v588 = vld [vmem:[%s174 + $0xcd0] sm:$0xff]
                %589 = vst [vmem:[%s175 + $0x670] sm:$0xff] %v588
                %v590 = vld [vmem:[%s174 + $0xcd8] sm:$0xff]
                %591 = vst [vmem:[%s175 + $0x678] sm:$0xff] %v590
                %v592 = vld [vmem:[%s174 + $0xce0] sm:$0xff]
                %593 = vst [vmem:[%s175 + $0x680] sm:$0xff] %v592
                %v594 = vld [vmem:[%s174 + $0xce8] sm:$0xff]
                %595 = vst [vmem:[%s175 + $0x688] sm:$0xff] %v594
                %v596 = vld [vmem:[%s174 + $0xd20] sm:$0xff]
                %597 = vst [vmem:[%s175 + $0x690] sm:$0xff] %v596
                %v598 = vld [vmem:[%s174 + $0xd28] sm:$0xff]
                %599 = vst [vmem:[%s175 + $0x698] sm:$0xff] %v598
                %v600 = vld [vmem:[%s174 + $0xd30] sm:$0xff]
                %601 = vst [vmem:[%s175 + $0x6a0] sm:$0xff] %v600
                %v602 = vld [vmem:[%s174 + $0xd38] sm:$0xff]
                %603 = vst [vmem:[%s175 + $0x6a8] sm:$0xff] %v602
                %v604 = vld [vmem:[%s174 + $0xd40] sm:$0xff]
                %605 = vst [vmem:[%s175 + $0x6b0] sm:$0xff] %v604
                %v606 = vld [vmem:[%s174 + $0xd48] sm:$0xff]
                %607 = vst [vmem:[%s175 + $0x6b8] sm:$0xff] %v606
                %v608 = vld [vmem:[%s174 + $0xd80] sm:$0xff]
                %609 = vst [vmem:[%s175 + $0x6c0] sm:$0xff] %v608
                %v610 = vld [vmem:[%s174 + $0xd88] sm:$0xff]
                %611 = vst [vmem:[%s175 + $0x6c8] sm:$0xff] %v610
                %v612 = vld [vmem:[%s174 + $0xd90] sm:$0xff]
                %613 = vst [vmem:[%s175 + $0x6d0] sm:$0xff] %v612
                %v614 = vld [vmem:[%s174 + $0xd98] sm:$0xff]
                %615 = vst [vmem:[%s175 + $0x6d8] sm:$0xff] %v614
                %v616 = vld [vmem:[%s174 + $0xda0] sm:$0xff]
                %617 = vst [vmem:[%s175 + $0x6e0] sm:$0xff] %v616
                %v618 = vld [vmem:[%s174 + $0xda8] sm:$0xff]
                %619 = vst [vmem:[%s175 + $0x6e8] sm:$0xff] %v618
                %v620 = vld [vmem:[%s174 + $0xde0] sm:$0xff]
                %621 = vst [vmem:[%s175 + $0x6f0] sm:$0xff] %v620
                %v622 = vld [vmem:[%s174 + $0xde8] sm:$0xff]
                %623 = vst [vmem:[%s175 + $0x6f8] sm:$0xff] %v622
                %v624 = vld [vmem:[%s174 + $0xdf0] sm:$0xff]
                %625 = vst [vmem:[%s175 + $0x700] sm:$0xff] %v624
                %v626 = vld [vmem:[%s174 + $0xdf8] sm:$0xff]
                %627 = vst [vmem:[%s175 + $0x708] sm:$0xff] %v626
                %v628 = vld [vmem:[%s174 + $0xe00] sm:$0xff]
                %629 = vst [vmem:[%s175 + $0x710] sm:$0xff] %v628
                %v630 = vld [vmem:[%s174 + $0xe08] sm:$0xff]
                %631 = vst [vmem:[%s175 + $0x718] sm:$0xff] %v630
                %v632 = vld [vmem:[%s174 + $0xe40] sm:$0xff]
                %633 = vst [vmem:[%s175 + $0x720] sm:$0xff] %v632
                %v634 = vld [vmem:[%s174 + $0xe48] sm:$0xff]
                %635 = vst [vmem:[%s175 + $0x728] sm:$0xff] %v634
                %v636 = vld [vmem:[%s174 + $0xe50] sm:$0xff]
                %637 = vst [vmem:[%s175 + $0x730] sm:$0xff] %v636
                %v638 = vld [vmem:[%s174 + $0xe58] sm:$0xff]
                %639 = vst [vmem:[%s175 + $0x738] sm:$0xff] %v638
                %v640 = vld [vmem:[%s174 + $0xe60] sm:$0xff]
                %641 = vst [vmem:[%s175 + $0x740] sm:$0xff] %v640
                %v642 = vld [vmem:[%s174 + $0xe68] sm:$0xff]
                %643 = vst [vmem:[%s175 + $0x748] sm:$0xff] %v642
                %v644 = vld [vmem:[%s174 + $0xea0] sm:$0xff]
                %645 = vst [vmem:[%s175 + $0x750] sm:$0xff] %v644
                %v646 = vld [vmem:[%s174 + $0xea8] sm:$0xff]
                %647 = vst [vmem:[%s175 + $0x758] sm:$0xff] %v646
                %v648 = vld [vmem:[%s174 + $0xeb0] sm:$0xff]
                %649 = vst [vmem:[%s175 + $0x760] sm:$0xff] %v648
                %v650 = vld [vmem:[%s174 + $0xeb8] sm:$0xff]
                %651 = vst [vmem:[%s175 + $0x768] sm:$0xff] %v650
                %v652 = vld [vmem:[%s174 + $0xec0] sm:$0xff]
                %653 = vst [vmem:[%s175 + $0x770] sm:$0xff] %v652
                %v654 = vld [vmem:[%s174 + $0xec8] sm:$0xff]
                %655 = vst [vmem:[%s175 + $0x778] sm:$0xff] %v654
                %v656 = vld [vmem:[%s174 + $0xf00] sm:$0xff]
                %657 = vst [vmem:[%s175 + $0x780] sm:$0xff] %v656
                %v658 = vld [vmem:[%s174 + $0xf08] sm:$0xff]
                %659 = vst [vmem:[%s175 + $0x788] sm:$0xff] %v658
                %v660 = vld [vmem:[%s174 + $0xf10] sm:$0xff]
                %661 = vst [vmem:[%s175 + $0x790] sm:$0xff] %v660
                %v662 = vld [vmem:[%s174 + $0xf18] sm:$0xff]
                %663 = vst [vmem:[%s175 + $0x798] sm:$0xff] %v662
                %v664 = vld [vmem:[%s174 + $0xf20] sm:$0xff]
                %665 = vst [vmem:[%s175 + $0x7a0] sm:$0xff] %v664
                %v666 = vld [vmem:[%s174 + $0xf28] sm:$0xff]
                %667 = vst [vmem:[%s175 + $0x7a8] sm:$0xff] %v666
                %v668 = vld [vmem:[%s174 + $0xf60] sm:$0xff]
                %669 = vst [vmem:[%s175 + $0x7b0] sm:$0xff] %v668
                %v670 = vld [vmem:[%s174 + $0xf68] sm:$0xff]
                %671 = vst [vmem:[%s175 + $0x7b8] sm:$0xff] %v670
                %v672 = vld [vmem:[%s174 + $0xf70] sm:$0xff]
                %673 = vst [vmem:[%s175 + $0x7c0] sm:$0xff] %v672
                %v674 = vld [vmem:[%s174 + $0xf78] sm:$0xff]
                %675 = vst [vmem:[%s175 + $0x7c8] sm:$0xff] %v674
                %v676 = vld [vmem:[%s174 + $0xf80] sm:$0xff]
                %677 = vst [vmem:[%s175 + $0x7d0] sm:$0xff] %v676
                %v678 = vld [vmem:[%s174 + $0xf88] sm:$0xff]
                %679 = vst [vmem:[%s175 + $0x7d8] sm:$0xff] %v678
                %v680 = vld [vmem:[%s174 + $0xfc0] sm:$0xff]
                %681 = vst [vmem:[%s175 + $0x7e0] sm:$0xff] %v680
                %v682 = vld [vmem:[%s174 + $0xfc8] sm:$0xff]
                %683 = vst [vmem:[%s175 + $0x7e8] sm:$0xff] %v682
                %v684 = vld [vmem:[%s174 + $0xfd0] sm:$0xff]
                %685 = vst [vmem:[%s175 + $0x7f0] sm:$0xff] %v684
                %v686 = vld [vmem:[%s174 + $0xfd8] sm:$0xff]
                %687 = vst [vmem:[%s175 + $0x7f8] sm:$0xff] %v686
                %v688 = vld [vmem:[%s174 + $0xfe0] sm:$0xff]
                %689 = vst [vmem:[%s175 + $0x800] sm:$0xff] %v688
                %v690 = vld [vmem:[%s174 + $0xfe8] sm:$0xff]
                %691 = vst [vmem:[%s175 + $0x808] sm:$0xff] %v690
                %v692 = vld [vmem:[%s174 + $0x1020] sm:$0xff]
                %693 = vst [vmem:[%s175 + $0x810] sm:$0xff] %v692
                %v694 = vld [vmem:[%s174 + $0x1028] sm:$0xff]
                %695 = vst [vmem:[%s175 + $0x818] sm:$0xff] %v694
                %v696 = vld [vmem:[%s174 + $0x1030] sm:$0xff]
                %697 = vst [vmem:[%s175 + $0x820] sm:$0xff] %v696
                %v698 = vld [vmem:[%s174 + $0x1038] sm:$0xff]
                %699 = vst [vmem:[%s175 + $0x828] sm:$0xff] %v698
                %v700 = vld [vmem:[%s174 + $0x1040] sm:$0xff]
                %701 = vst [vmem:[%s175 + $0x830] sm:$0xff] %v700
                %v702 = vld [vmem:[%s174 + $0x1048] sm:$0xff]
                %703 = vst [vmem:[%s175 + $0x838] sm:$0xff] %v702
                %v704 = vld [vmem:[%s174 + $0x1080] sm:$0xff]
                %705 = vst [vmem:[%s175 + $0x840] sm:$0xff] %v704
                %v706 = vld [vmem:[%s174 + $0x1088] sm:$0xff]
                %707 = vst [vmem:[%s175 + $0x848] sm:$0xff] %v706
                %v708 = vld [vmem:[%s174 + $0x1090] sm:$0xff]
                %709 = vst [vmem:[%s175 + $0x850] sm:$0xff] %v708
                %v710 = vld [vmem:[%s174 + $0x1098] sm:$0xff]
                %711 = vst [vmem:[%s175 + $0x858] sm:$0xff] %v710
                %v712 = vld [vmem:[%s174 + $0x10a0] sm:$0xff]
                %713 = vst [vmem:[%s175 + $0x860] sm:$0xff] %v712
                %v714 = vld [vmem:[%s174 + $0x10a8] sm:$0xff]
                %715 = vst [vmem:[%s175 + $0x868] sm:$0xff] %v714
                %v716 = vld [vmem:[%s174 + $0x10e0] sm:$0xff]
                %717 = vst [vmem:[%s175 + $0x870] sm:$0xff] %v716
                %v718 = vld [vmem:[%s174 + $0x10e8] sm:$0xff]
                %719 = vst [vmem:[%s175 + $0x878] sm:$0xff] %v718
                %v720 = vld [vmem:[%s174 + $0x10f0] sm:$0xff]
                %721 = vst [vmem:[%s175 + $0x880] sm:$0xff] %v720
                %v722 = vld [vmem:[%s174 + $0x10f8] sm:$0xff]
                %723 = vst [vmem:[%s175 + $0x888] sm:$0xff] %v722
                %v724 = vld [vmem:[%s174 + $0x1100] sm:$0xff]
                %725 = vst [vmem:[%s175 + $0x890] sm:$0xff] %v724
                %v726 = vld [vmem:[%s174 + $0x1108] sm:$0xff]
                %727 = vst [vmem:[%s175 + $0x898] sm:$0xff] %v726
                %v728 = vld [vmem:[%s174 + $0x1140] sm:$0xff]
                %729 = vst [vmem:[%s175 + $0x8a0] sm:$0xff] %v728
                %v730 = vld [vmem:[%s174 + $0x1148] sm:$0xff]
                %731 = vst [vmem:[%s175 + $0x8a8] sm:$0xff] %v730
                %v732 = vld [vmem:[%s174 + $0x1150] sm:$0xff]
                %733 = vst [vmem:[%s175 + $0x8b0] sm:$0xff] %v732
                %v734 = vld [vmem:[%s174 + $0x1158] sm:$0xff]
                %735 = vst [vmem:[%s175 + $0x8b8] sm:$0xff] %v734
                %v736 = vld [vmem:[%s174 + $0x1160] sm:$0xff]
                %737 = vst [vmem:[%s175 + $0x8c0] sm:$0xff] %v736
                %v738 = vld [vmem:[%s174 + $0x1168] sm:$0xff]
                %739 = vst [vmem:[%s175 + $0x8c8] sm:$0xff] %v738
                %v740 = vld [vmem:[%s174 + $0x11a0] sm:$0xff]
                %741 = vst [vmem:[%s175 + $0x8d0] sm:$0xff] %v740
                %v742 = vld [vmem:[%s174 + $0x11a8] sm:$0xff]
                %743 = vst [vmem:[%s175 + $0x8d8] sm:$0xff] %v742
                %v744 = vld [vmem:[%s174 + $0x11b0] sm:$0xff]
                %745 = vst [vmem:[%s175 + $0x8e0] sm:$0xff] %v744
                %v746 = vld [vmem:[%s174 + $0x11b8] sm:$0xff]
                %747 = vst [vmem:[%s175 + $0x8e8] sm:$0xff] %v746
                %v748 = vld [vmem:[%s174 + $0x11c0] sm:$0xff]
                %749 = vst [vmem:[%s175 + $0x8f0] sm:$0xff] %v748
                %v750 = vld [vmem:[%s174 + $0x11c8] sm:$0xff]
                %751 = vst [vmem:[%s175 + $0x8f8] sm:$0xff] %v750
                %v752 = vld [vmem:[%s174 + $0x1200] sm:$0xff]
                %753 = vst [vmem:[%s175 + $0x900] sm:$0xff] %v752
                %v754 = vld [vmem:[%s174 + $0x1208] sm:$0xff]
                %755 = vst [vmem:[%s175 + $0x908] sm:$0xff] %v754
                %v756 = vld [vmem:[%s174 + $0x1210] sm:$0xff]
                %757 = vst [vmem:[%s175 + $0x910] sm:$0xff] %v756
                %v758 = vld [vmem:[%s174 + $0x1218] sm:$0xff]
                %759 = vst [vmem:[%s175 + $0x918] sm:$0xff] %v758
                %v760 = vld [vmem:[%s174 + $0x1220] sm:$0xff]
                %761 = vst [vmem:[%s175 + $0x920] sm:$0xff] %v760
                %v762 = vld [vmem:[%s174 + $0x1228] sm:$0xff]
                %763 = vst [vmem:[%s175 + $0x928] sm:$0xff] %v762
                %v764 = vld [vmem:[%s174 + $0x1260] sm:$0xff]
                %765 = vst [vmem:[%s175 + $0x930] sm:$0xff] %v764
                %v766 = vld [vmem:[%s174 + $0x1268] sm:$0xff]
                %767 = vst [vmem:[%s175 + $0x938] sm:$0xff] %v766
                %v768 = vld [vmem:[%s174 + $0x1270] sm:$0xff]
                %769 = vst [vmem:[%s175 + $0x940] sm:$0xff] %v768
                %v770 = vld [vmem:[%s174 + $0x1278] sm:$0xff]
                %771 = vst [vmem:[%s175 + $0x948] sm:$0xff] %v770
                %v772 = vld [vmem:[%s174 + $0x1280] sm:$0xff]
                %773 = vst [vmem:[%s175 + $0x950] sm:$0xff] %v772
                %v774 = vld [vmem:[%s174 + $0x1288] sm:$0xff]
                %775 = vst [vmem:[%s175 + $0x958] sm:$0xff] %v774
                %v776 = vld [vmem:[%s174 + $0x12c0] sm:$0xff]
                %777 = vst [vmem:[%s175 + $0x960] sm:$0xff] %v776
                %v778 = vld [vmem:[%s174 + $0x12c8] sm:$0xff]
                %779 = vst [vmem:[%s175 + $0x968] sm:$0xff] %v778
                %v780 = vld [vmem:[%s174 + $0x12d0] sm:$0xff]
                %781 = vst [vmem:[%s175 + $0x970] sm:$0xff] %v780
                %v782 = vld [vmem:[%s174 + $0x12d8] sm:$0xff]
                %783 = vst [vmem:[%s175 + $0x978] sm:$0xff] %v782
                %v784 = vld [vmem:[%s174 + $0x12e0] sm:$0xff]
                %785 = vst [vmem:[%s175 + $0x980] sm:$0xff] %v784
                %v786 = vld [vmem:[%s174 + $0x12e8] sm:$0xff]
                %787 = vst [vmem:[%s175 + $0x988] sm:$0xff] %v786
                %v788 = vld [vmem:[%s174 + $0x1320] sm:$0xff]
                %789 = vst [vmem:[%s175 + $0x990] sm:$0xff] %v788
                %v790 = vld [vmem:[%s174 + $0x1328] sm:$0xff]
                %791 = vst [vmem:[%s175 + $0x998] sm:$0xff] %v790
                %v792 = vld [vmem:[%s174 + $0x1330] sm:$0xff]
                %793 = vst [vmem:[%s175 + $0x9a0] sm:$0xff] %v792
                %v794 = vld [vmem:[%s174 + $0x1338] sm:$0xff]
                %795 = vst [vmem:[%s175 + $0x9a8] sm:$0xff] %v794
                %v796 = vld [vmem:[%s174 + $0x1340] sm:$0xff]
                %797 = vst [vmem:[%s175 + $0x9b0] sm:$0xff] %v796
                %v798 = vld [vmem:[%s174 + $0x1348] sm:$0xff]
                %799 = vst [vmem:[%s175 + $0x9b8] sm:$0xff] %v798
                %v800 = vld [vmem:[%s174 + $0x1380] sm:$0xff]
                %801 = vst [vmem:[%s175 + $0x9c0] sm:$0xff] %v800
                %v802 = vld [vmem:[%s174 + $0x1388] sm:$0xff]
                %803 = vst [vmem:[%s175 + $0x9c8] sm:$0xff] %v802
                %v804 = vld [vmem:[%s174 + $0x1390] sm:$0xff]
                %805 = vst [vmem:[%s175 + $0x9d0] sm:$0xff] %v804
                %v806 = vld [vmem:[%s174 + $0x1398] sm:$0xff]
                %807 = vst [vmem:[%s175 + $0x9d8] sm:$0xff] %v806
                %v808 = vld [vmem:[%s174 + $0x13a0] sm:$0xff]
                %809 = vst [vmem:[%s175 + $0x9e0] sm:$0xff] %v808
                %v810 = vld [vmem:[%s174 + $0x13a8] sm:$0xff]
                %811 = vst [vmem:[%s175 + $0x9e8] sm:$0xff] %v810
                %v812 = vld [vmem:[%s174 + $0x13e0] sm:$0xff]
                %813 = vst [vmem:[%s175 + $0x9f0] sm:$0xff] %v812
                %v814 = vld [vmem:[%s174 + $0x13e8] sm:$0xff]
                %815 = vst [vmem:[%s175 + $0x9f8] sm:$0xff] %v814
                %v816 = vld [vmem:[%s174 + $0x13f0] sm:$0xff]
                %817 = vst [vmem:[%s175 + $0xa00] sm:$0xff] %v816
                %v818 = vld [vmem:[%s174 + $0x13f8] sm:$0xff]
                %819 = vst [vmem:[%s175 + $0xa08] sm:$0xff] %v818
                %v820 = vld [vmem:[%s174 + $0x1400] sm:$0xff]
                %821 = vst [vmem:[%s175 + $0xa10] sm:$0xff] %v820
                %v822 = vld [vmem:[%s174 + $0x1408] sm:$0xff]
                %823 = vst [vmem:[%s175 + $0xa18] sm:$0xff] %v822
                %v824 = vld [vmem:[%s174 + $0x1440] sm:$0xff]
                %825 = vst [vmem:[%s175 + $0xa20] sm:$0xff] %v824
                %v826 = vld [vmem:[%s174 + $0x1448] sm:$0xff]
                %827 = vst [vmem:[%s175 + $0xa28] sm:$0xff] %v826
                %v828 = vld [vmem:[%s174 + $0x1450] sm:$0xff]
                %829 = vst [vmem:[%s175 + $0xa30] sm:$0xff] %v828
                %v830 = vld [vmem:[%s174 + $0x1458] sm:$0xff]
                %831 = vst [vmem:[%s175 + $0xa38] sm:$0xff] %v830
                %v832 = vld [vmem:[%s174 + $0x1460] sm:$0xff]
                %833 = vst [vmem:[%s175 + $0xa40] sm:$0xff] %v832
                %v834 = vld [vmem:[%s174 + $0x1468] sm:$0xff]
                %835 = vst [vmem:[%s175 + $0xa48] sm:$0xff] %v834
                %v836 = vld [vmem:[%s174 + $0x14a0] sm:$0xff]
                %837 = vst [vmem:[%s175 + $0xa50] sm:$0xff] %v836
                %v838 = vld [vmem:[%s174 + $0x14a8] sm:$0xff]
                %839 = vst [vmem:[%s175 + $0xa58] sm:$0xff] %v838
                %v840 = vld [vmem:[%s174 + $0x14b0] sm:$0xff]
                %841 = vst [vmem:[%s175 + $0xa60] sm:$0xff] %v840
                %v842 = vld [vmem:[%s174 + $0x14b8] sm:$0xff]
                %843 = vst [vmem:[%s175 + $0xa68] sm:$0xff] %v842
                %v844 = vld [vmem:[%s174 + $0x14c0] sm:$0xff]
                %845 = vst [vmem:[%s175 + $0xa70] sm:$0xff] %v844
                %v846 = vld [vmem:[%s174 + $0x14c8] sm:$0xff]
                %847 = vst [vmem:[%s175 + $0xa78] sm:$0xff] %v846
                %v848 = vld [vmem:[%s174 + $0x1500] sm:$0xff]
                %849 = vst [vmem:[%s175 + $0xa80] sm:$0xff] %v848
                %v850 = vld [vmem:[%s174 + $0x1508] sm:$0xff]
                %851 = vst [vmem:[%s175 + $0xa88] sm:$0xff] %v850
                %v852 = vld [vmem:[%s174 + $0x1510] sm:$0xff]
                %853 = vst [vmem:[%s175 + $0xa90] sm:$0xff] %v852
                %v854 = vld [vmem:[%s174 + $0x1518] sm:$0xff]
                %855 = vst [vmem:[%s175 + $0xa98] sm:$0xff] %v854
                %v856 = vld [vmem:[%s174 + $0x1520] sm:$0xff]
                %857 = vst [vmem:[%s175 + $0xaa0] sm:$0xff] %v856
                %v858 = vld [vmem:[%s174 + $0x1528] sm:$0xff]
                %859 = vst [vmem:[%s175 + $0xaa8] sm:$0xff] %v858
                %v860 = vld [vmem:[%s174 + $0x1560] sm:$0xff]
                %861 = vst [vmem:[%s175 + $0xab0] sm:$0xff] %v860
                %v862 = vld [vmem:[%s174 + $0x1568] sm:$0xff]
                %863 = vst [vmem:[%s175 + $0xab8] sm:$0xff] %v862
                %v864 = vld [vmem:[%s174 + $0x1570] sm:$0xff]
                %865 = vst [vmem:[%s175 + $0xac0] sm:$0xff] %v864
                %v866 = vld [vmem:[%s174 + $0x1578] sm:$0xff]
                %867 = vst [vmem:[%s175 + $0xac8] sm:$0xff] %v866
                %v868 = vld [vmem:[%s174 + $0x1580] sm:$0xff]
                %869 = vst [vmem:[%s175 + $0xad0] sm:$0xff] %v868
                %v870 = vld [vmem:[%s174 + $0x1588] sm:$0xff]
                %871 = vst [vmem:[%s175 + $0xad8] sm:$0xff] %v870
                %v872 = vld [vmem:[%s174 + $0x15c0] sm:$0xff]
                %873 = vst [vmem:[%s175 + $0xae0] sm:$0xff] %v872
                %v874 = vld [vmem:[%s174 + $0x15c8] sm:$0xff]
                %875 = vst [vmem:[%s175 + $0xae8] sm:$0xff] %v874
                %v876 = vld [vmem:[%s174 + $0x15d0] sm:$0xff]
                %877 = vst [vmem:[%s175 + $0xaf0] sm:$0xff] %v876
                %v878 = vld [vmem:[%s174 + $0x15d8] sm:$0xff]
                %879 = vst [vmem:[%s175 + $0xaf8] sm:$0xff] %v878
                %v880 = vld [vmem:[%s174 + $0x15e0] sm:$0xff]
                %881 = vst [vmem:[%s175 + $0xb00] sm:$0xff] %v880
                %v882 = vld [vmem:[%s174 + $0x15e8] sm:$0xff]
                %883 = vst [vmem:[%s175 + $0xb08] sm:$0xff] %v882
                %v884 = vld [vmem:[%s174 + $0x1620] sm:$0xff]
                %885 = vst [vmem:[%s175 + $0xb10] sm:$0xff] %v884
                %v886 = vld [vmem:[%s174 + $0x1628] sm:$0xff]
                %887 = vst [vmem:[%s175 + $0xb18] sm:$0xff] %v886
                %v888 = vld [vmem:[%s174 + $0x1630] sm:$0xff]
                %889 = vst [vmem:[%s175 + $0xb20] sm:$0xff] %v888
                %v890 = vld [vmem:[%s174 + $0x1638] sm:$0xff]
                %891 = vst [vmem:[%s175 + $0xb28] sm:$0xff] %v890
                %v892 = vld [vmem:[%s174 + $0x1640] sm:$0xff]
                %893 = vst [vmem:[%s175 + $0xb30] sm:$0xff] %v892
                %v894 = vld [vmem:[%s174 + $0x1648] sm:$0xff]
                %895 = vst [vmem:[%s175 + $0xb38] sm:$0xff] %v894
                %v896 = vld [vmem:[%s174 + $0x1680] sm:$0xff]
                %897 = vst [vmem:[%s175 + $0xb40] sm:$0xff] %v896
                %v898 = vld [vmem:[%s174 + $0x1688] sm:$0xff]
                %899 = vst [vmem:[%s175 + $0xb48] sm:$0xff] %v898
                %v900 = vld [vmem:[%s174 + $0x1690] sm:$0xff]
                %901 = vst [vmem:[%s175 + $0xb50] sm:$0xff] %v900
                %v902 = vld [vmem:[%s174 + $0x1698] sm:$0xff]
                %903 = vst [vmem:[%s175 + $0xb58] sm:$0xff] %v902
                %v904 = vld [vmem:[%s174 + $0x16a0] sm:$0xff]
                %905 = vst [vmem:[%s175 + $0xb60] sm:$0xff] %v904
                %v906 = vld [vmem:[%s174 + $0x16a8] sm:$0xff]
                %907 = vst [vmem:[%s175 + $0xb68] sm:$0xff] %v906
                %v908 = vld [vmem:[%s174 + $0x16e0] sm:$0xff]
                %909 = vst [vmem:[%s175 + $0xb70] sm:$0xff] %v908
                %v910 = vld [vmem:[%s174 + $0x16e8] sm:$0xff]
                %911 = vst [vmem:[%s175 + $0xb78] sm:$0xff] %v910
                %v912 = vld [vmem:[%s174 + $0x16f0] sm:$0xff]
                %913 = vst [vmem:[%s175 + $0xb80] sm:$0xff] %v912
                %v914 = vld [vmem:[%s174 + $0x16f8] sm:$0xff]
                %915 = vst [vmem:[%s175 + $0xb88] sm:$0xff] %v914
                %v916 = vld [vmem:[%s174 + $0x1700] sm:$0xff]
                %917 = vst [vmem:[%s175 + $0xb90] sm:$0xff] %v916
                %v918 = vld [vmem:[%s174 + $0x1708] sm:$0xff]
                %919 = vst [vmem:[%s175 + $0xb98] sm:$0xff] %v918
                %v920 = vld [vmem:[%s174 + $0x1740] sm:$0xff]
                %921 = vst [vmem:[%s175 + $0xba0] sm:$0xff] %v920
                %v922 = vld [vmem:[%s174 + $0x1748] sm:$0xff]
                %923 = vst [vmem:[%s175 + $0xba8] sm:$0xff] %v922
                %v924 = vld [vmem:[%s174 + $0x1750] sm:$0xff]
                %925 = vst [vmem:[%s175 + $0xbb0] sm:$0xff] %v924
                %v926 = vld [vmem:[%s174 + $0x1758] sm:$0xff]
                %927 = vst [vmem:[%s175 + $0xbb8] sm:$0xff] %v926
                %v928 = vld [vmem:[%s174 + $0x1760] sm:$0xff]
                %929 = vst [vmem:[%s175 + $0xbc0] sm:$0xff] %v928
                %v930 = vld [vmem:[%s174 + $0x1768] sm:$0xff]
                %931 = vst [vmem:[%s175 + $0xbc8] sm:$0xff] %v930
                %v932 = vld [vmem:[%s174 + $0x17a0] sm:$0xff]
                %933 = vst [vmem:[%s175 + $0xbd0] sm:$0xff] %v932
                %v934 = vld [vmem:[%s174 + $0x17a8] sm:$0xff]
                %935 = vst [vmem:[%s175 + $0xbd8] sm:$0xff] %v934
                %v936 = vld [vmem:[%s174 + $0x17b0] sm:$0xff]
                %937 = vst [vmem:[%s175 + $0xbe0] sm:$0xff] %v936
                %v938 = vld [vmem:[%s174 + $0x17b8] sm:$0xff]
                %939 = vst [vmem:[%s175 + $0xbe8] sm:$0xff] %v938
                %v940 = vld [vmem:[%s174 + $0x17c0] sm:$0xff]
                %941 = vst [vmem:[%s175 + $0xbf0] sm:$0xff] %v940
                %v942 = vld [vmem:[%s174 + $0x17c8] sm:$0xff]
                %943 = vst [vmem:[%s175 + $0xbf8] sm:$0xff] %v942
              $region37: #{multi_head_attention.2} parent=31 // loop_footer
                %s173 = sadd.s32 1, %s169
              $region38: #{multi_head_attention.2} parent=31 // loop_footer_branch
                %168 = sbr.rel target = $region34
              $region39: #{multi_head_attention.2} parent=31 // loop_exit
                _
            $region32: #{multi_head_attention.2} parent=27 // pred_fallthru
              _
            // Predicated region
            $region40: #{multi_head_attention.2} parent=27 // pred_check
              _
            $region41: #{multi_head_attention.2} parent=27 // pred_check_branch
              %945 = sbr.rel target = $region43
            $region42: #{multi_head_attention.2} parent=27 // pred_region
              _
            $region43: #{multi_head_attention.2} parent=27 // pred_fallthru
              _
          $region28: #{multi_head_attention.2} parent=23 // pred_fallthru
            _
          %946 = vnop
        $region24: #{multi_head_attention.2} parent=15 // pred_fallthru
          _
        // Predicated region
        $region44: #{multi_head_attention.2} parent=15 // pred_check
          %p947 = pneg %p93
        $region45: #{multi_head_attention.2} parent=15 // pred_check_branch
          %949 = sbr.rel (%p947) target = $region47
        $region46: #{multi_head_attention.2} parent=15 // pred_region
          %s950 = smul.u32 6, %s16
          %p951 = scmp.lt.s32.totalorder %s950, 11
          %s952 = scalar_select %p951, %s950, 11
          %s953 = scalar_lea.vmem %s2, %s952
          %s954 = smul.u32 6, %s16
        $region47: #{multi_head_attention.2} parent=15 // pred_fallthru
          _
      $region16: #{multi_head_attention.2} parent=5 // pred_fallthru
        _
      %p955 = scmp.le.s32.totalorder 1, %s9
      %p956 = scmp.lt.s32.totalorder %s9, 5
      %p957 = pnand %p955, %p956
      %p958 = pneg %p957
      // Predicated region
      $region48: #{multi_head_attention.2} parent=5 // pred_check
        _
      $region49: #{multi_head_attention.2} parent=5 // pred_check_branch
        %960 = sbr.rel (%p957) target = $region51
      $region50: #{multi_head_attention.2} parent=5 // pred_region
        %s961 = ssub.s32 %s9, 1
        %s962 = sand.u32 %s60, 1
        %s963 = sand.u32 %s60, 1
        %s964 = smul.addr %s963, 3072
        %s965 = scalar_lea.vmem [#allocation2], %s964
        // Predicated region
        $region52: #{multi_head_attention.2} parent=50 // pred_check
          %p966 = pneg %p73
        $region53: #{multi_head_attention.2} parent=50 // pred_check_branch
          %968 = sbr.rel (%p966) target = $region55
        $region54: #{multi_head_attention.2} parent=50 // pred_region
          _
        $region55: #{multi_head_attention.2} parent=50 // pred_fallthru
          _
        %p969 = scmp.lt.s32.totalorder %s19, 1
        %s970 = scalar_select %p969, %s19, 1
        %s971 = smul.addr %s970, 64
        %s972 = smul.addr %s971, 8
        %s973 = scalar_lea.vmem %s0, %s972
        %p974 = pneg %p47
        %p975 = pneg %p44
        %s976 = sand.u32 %s60, 1
        %s977 = sand.u32 %s60, 1
        %s978 = smul.addr %s977, 3072
        %s979 = scalar_lea.vmem [#allocation2], %s978
        %p980 = pneg %p73
        %p981 = pneg %p70
        %s982 = smul.u32 6, %s18
        %p983 = scmp.lt.s32.totalorder %s982, 11
        %s984 = scalar_select %p983, %s982, 11
        %s985 = scalar_lea.vmem %s2, %s984
        %p986 = pneg %p99
        %p987 = pneg %p96
        %p988 = pneg %p127
        %p989 = pneg %p124
        %s990 = smul.u32 2, %s18
        %p991 = scmp.lt.s32.totalorder %s19, 1
        %s992 = scalar_select %p991, %s19, 1
        %p993 = scmp.lt.s32.totalorder %s990, 3
        %s994 = scalar_select %p993, %s990, 3
        %s995 = smul.addr %s994, 16
        %s996 = smul.addr %s992, 64
        %s997 = sadd.s32 %s995, %s996
        %s998 = smul.addr %s997, 8
        %s999 = scalar_lea.vmem %s3, %s998
        %p1000 = scmp.lt.s32.totalorder %s19, 1
        %s1001 = scalar_select %p1000, %s19, 1
        %s1002 = smul.addr %s1001, 64
        %s1003 = smul.addr %s1002, 8
        %s1004 = scalar_lea.vmem %s0, %s1003
        %s1005 = smul.u32 6, %s18
        %s1006 = smul.u32 6, %s18
        %p1007 = scmp.lt.s32.totalorder %s1006, 11
        %s1008 = scalar_select %p1007, %s1006, 11
        %s1009 = scalar_lea.vmem %s2, %s1008
        %s1010 = smul.u32 6, %s18
        %s1011 = smul.u32 2, %s18
        %p1012 = scmp.lt.s32.totalorder %s19, 1
        %s1013 = scalar_select %p1012, %s19, 1
        %p1014 = scmp.lt.s32.totalorder %s1011, 3
        %s1015 = scalar_select %p1014, %s1011, 3
        %s1016 = smul.addr %s1015, 16
        %s1017 = smul.addr %s1013, 64
        %s1018 = sadd.s32 %s1016, %s1017
        %s1019 = smul.addr %s1018, 8
        %s1020 = scalar_lea.vmem %s3, %s1019
        %s1021 = smul.u32 2, %s18
        %v1022 = vld [vmem:[%s1004] sm:$0xff]
        %v1023 = vld [vmem:[%s1004 + $0x8] sm:$0xff]
        %v1024 = vld [vmem:[%s1004 + $0x10] sm:$0xff]
        %v1025 = vld [vmem:[%s1004 + $0x18] sm:$0xff]
        %v1026 = vld [vmem:[%s1004 + $0x20] sm:$0xff]
        %v1027 = vld [vmem:[%s1004 + $0x28] sm:$0xff]
        %v1028 = vld [vmem:[%s1004 + $0x30] sm:$0xff]
        %v1029 = vld [vmem:[%s1004 + $0x38] sm:$0xff]
        %v1030 = vld [vmem:[%s1004 + $0x40] sm:$0xff]
        %v1031 = vld [vmem:[%s1004 + $0x48] sm:$0xff]
        %v1032 = vld [vmem:[%s1004 + $0x50] sm:$0xff]
        %v1033 = vld [vmem:[%s1004 + $0x58] sm:$0xff]
        %v1034 = vld [vmem:[%s1004 + $0x60] sm:$0xff]
        %v1035 = vld [vmem:[%s1004 + $0x68] sm:$0xff]
        %v1036 = vld [vmem:[%s1004 + $0x70] sm:$0xff]
        %v1037 = vld [vmem:[%s1004 + $0x78] sm:$0xff]
        %v1038 = vld [vmem:[%s1004 + $0x80] sm:$0xff]
        %v1039 = vld [vmem:[%s1004 + $0x88] sm:$0xff]
        %v1040 = vld [vmem:[%s1004 + $0x90] sm:$0xff]
        %v1041 = vld [vmem:[%s1004 + $0x98] sm:$0xff]
        %v1042 = vld [vmem:[%s1004 + $0xa0] sm:$0xff]
        %v1043 = vld [vmem:[%s1004 + $0xa8] sm:$0xff]
        %v1044 = vld [vmem:[%s1004 + $0xb0] sm:$0xff]
        %v1045 = vld [vmem:[%s1004 + $0xb8] sm:$0xff]
        %v1046 = vld [vmem:[%s1004 + $0xc0] sm:$0xff]
        %v1047 = vld [vmem:[%s1004 + $0xc8] sm:$0xff]
        %v1048 = vld [vmem:[%s1004 + $0xd0] sm:$0xff]
        %v1049 = vld [vmem:[%s1004 + $0xd8] sm:$0xff]
        %v1050 = vld [vmem:[%s1004 + $0xe0] sm:$0xff]
        %v1051 = vld [vmem:[%s1004 + $0xe8] sm:$0xff]
        %v1052 = vld [vmem:[%s1004 + $0xf0] sm:$0xff]
        %v1053 = vld [vmem:[%s1004 + $0xf8] sm:$0xff]
        %v1054 = vld [vmem:[%s1004 + $0x100] sm:$0xff]
        %v1055 = vld [vmem:[%s1004 + $0x108] sm:$0xff]
        %v1056 = vld [vmem:[%s1004 + $0x110] sm:$0xff]
        %v1057 = vld [vmem:[%s1004 + $0x118] sm:$0xff]
        %v1058 = vld [vmem:[%s1004 + $0x120] sm:$0xff]
        %v1059 = vld [vmem:[%s1004 + $0x128] sm:$0xff]
        %v1060 = vld [vmem:[%s1004 + $0x130] sm:$0xff]
        %v1061 = vld [vmem:[%s1004 + $0x138] sm:$0xff]
        %v1062 = vld [vmem:[%s1004 + $0x140] sm:$0xff]
        %v1063 = vld [vmem:[%s1004 + $0x148] sm:$0xff]
        %v1064 = vld [vmem:[%s1004 + $0x150] sm:$0xff]
        %v1065 = vld [vmem:[%s1004 + $0x158] sm:$0xff]
        %v1066 = vld [vmem:[%s1004 + $0x160] sm:$0xff]
        %v1067 = vld [vmem:[%s1004 + $0x168] sm:$0xff]
        %v1068 = vld [vmem:[%s1004 + $0x170] sm:$0xff]
        %v1069 = vld [vmem:[%s1004 + $0x178] sm:$0xff]
        %v1070 = vld [vmem:[%s1004 + $0x180] sm:$0xff]
        %v1071 = vld [vmem:[%s1004 + $0x188] sm:$0xff]
        %v1072 = vld [vmem:[%s1004 + $0x190] sm:$0xff]
        %v1073 = vld [vmem:[%s1004 + $0x198] sm:$0xff]
        %v1074 = vld [vmem:[%s1004 + $0x1a0] sm:$0xff]
        %v1075 = vld [vmem:[%s1004 + $0x1a8] sm:$0xff]
        %v1076 = vld [vmem:[%s1004 + $0x1b0] sm:$0xff]
        %v1077 = vld [vmem:[%s1004 + $0x1b8] sm:$0xff]
        %v1078 = vld [vmem:[%s1004 + $0x1c0] sm:$0xff]
        %v1079 = vld [vmem:[%s1004 + $0x1c8] sm:$0xff]
        %v1080 = vld [vmem:[%s1004 + $0x1d0] sm:$0xff]
        %v1081 = vld [vmem:[%s1004 + $0x1d8] sm:$0xff]
        %v1082 = vld [vmem:[%s1004 + $0x1e0] sm:$0xff]
        %v1083 = vld [vmem:[%s1004 + $0x1e8] sm:$0xff]
        %v1084 = vld [vmem:[%s1004 + $0x1f0] sm:$0xff]
        %v1085 = vld [vmem:[%s1004 + $0x1f8] sm:$0xff]
        %v1086 = vld [vmem:[%s965] sm:$0xff]
        %v1087 = vld [vmem:[%s965 + $0x8] sm:$0xff]
        %v1088 = vld [vmem:[%s965 + $0x10] sm:$0xff]
        %v1089 = vld [vmem:[%s965 + $0x18] sm:$0xff]
        %v1090 = vld [vmem:[%s965 + $0x20] sm:$0xff]
        %v1091 = vld [vmem:[%s965 + $0x28] sm:$0xff]
        %v1092 = vld [vmem:[%s965 + $0x30] sm:$0xff]
        %v1093 = vld [vmem:[%s965 + $0x38] sm:$0xff]
        %v1094 = vld [vmem:[%s965 + $0x40] sm:$0xff]
        %v1095 = vld [vmem:[%s965 + $0x48] sm:$0xff]
        %v1096 = vld [vmem:[%s965 + $0x50] sm:$0xff]
        %v1097 = vld [vmem:[%s965 + $0x58] sm:$0xff]
        %v1098 = vld [vmem:[%s965 + $0x60] sm:$0xff]
        %v1099 = vld [vmem:[%s965 + $0x68] sm:$0xff]
        %v1100 = vld [vmem:[%s965 + $0x70] sm:$0xff]
        %v1101 = vld [vmem:[%s965 + $0x78] sm:$0xff]
        %v1102 = vld [vmem:[%s965 + $0x80] sm:$0xff]
        %v1103 = vld [vmem:[%s965 + $0x88] sm:$0xff]
        %v1104 = vld [vmem:[%s965 + $0x90] sm:$0xff]
        %v1105 = vld [vmem:[%s965 + $0x98] sm:$0xff]
        %v1106 = vld [vmem:[%s965 + $0xa0] sm:$0xff]
        %v1107 = vld [vmem:[%s965 + $0xa8] sm:$0xff]
        %v1108 = vld [vmem:[%s965 + $0xb0] sm:$0xff]
        %v1109 = vld [vmem:[%s965 + $0xb8] sm:$0xff]
        %v1110 = vld [vmem:[%s965 + $0xc0] sm:$0xff]
        %v1111 = vld [vmem:[%s965 + $0xc8] sm:$0xff]
        %v1112 = vld [vmem:[%s965 + $0xd0] sm:$0xff]
        %v1113 = vld [vmem:[%s965 + $0xd8] sm:$0xff]
        %v1114 = vld [vmem:[%s965 + $0xe0] sm:$0xff]
        %v1115 = vld [vmem:[%s965 + $0xe8] sm:$0xff]
        %v1116 = vld [vmem:[%s965 + $0xf0] sm:$0xff]
        %v1117 = vld [vmem:[%s965 + $0xf8] sm:$0xff]
        %v1118 = vld [vmem:[%s965 + $0x100] sm:$0xff]
        %v1119 = vld [vmem:[%s965 + $0x108] sm:$0xff]
        %v1120 = vld [vmem:[%s965 + $0x110] sm:$0xff]
        %v1121 = vld [vmem:[%s965 + $0x118] sm:$0xff]
        %v1122 = vld [vmem:[%s965 + $0x120] sm:$0xff]
        %v1123 = vld [vmem:[%s965 + $0x128] sm:$0xff]
        %v1124 = vld [vmem:[%s965 + $0x130] sm:$0xff]
        %v1125 = vld [vmem:[%s965 + $0x138] sm:$0xff]
        %v1126 = vld [vmem:[%s965 + $0x140] sm:$0xff]
        %v1127 = vld [vmem:[%s965 + $0x148] sm:$0xff]
        %v1128 = vld [vmem:[%s965 + $0x150] sm:$0xff]
        %v1129 = vld [vmem:[%s965 + $0x158] sm:$0xff]
        %v1130 = vld [vmem:[%s965 + $0x160] sm:$0xff]
        %v1131 = vld [vmem:[%s965 + $0x168] sm:$0xff]
        %v1132 = vld [vmem:[%s965 + $0x170] sm:$0xff]
        %v1133 = vld [vmem:[%s965 + $0x178] sm:$0xff]
        %v1134 = vld [vmem:[%s965 + $0x180] sm:$0xff]
        %v1135 = vld [vmem:[%s965 + $0x188] sm:$0xff]
        %v1136 = vld [vmem:[%s965 + $0x190] sm:$0xff]
        %v1137 = vld [vmem:[%s965 + $0x198] sm:$0xff]
        %v1138 = vld [vmem:[%s965 + $0x1a0] sm:$0xff]
        %v1139 = vld [vmem:[%s965 + $0x1a8] sm:$0xff]
        %v1140 = vld [vmem:[%s965 + $0x1b0] sm:$0xff]
        %v1141 = vld [vmem:[%s965 + $0x1b8] sm:$0xff]
        %v1142 = vld [vmem:[%s965 + $0x1c0] sm:$0xff]
        %v1143 = vld [vmem:[%s965 + $0x1c8] sm:$0xff]
        %v1144 = vld [vmem:[%s965 + $0x1d0] sm:$0xff]
        %v1145 = vld [vmem:[%s965 + $0x1d8] sm:$0xff]
        %v1146 = vld [vmem:[%s965 + $0x1e0] sm:$0xff]
        %v1147 = vld [vmem:[%s965 + $0x1e8] sm:$0xff]
        %v1148 = vld [vmem:[%s965 + $0x1f0] sm:$0xff]
        %v1149 = vld [vmem:[%s965 + $0x1f8] sm:$0xff]
        %v1150 = vld [vmem:[%s965 + $0x200] sm:$0xff]
        %v1151 = vld [vmem:[%s965 + $0x208] sm:$0xff]
        %v1152 = vld [vmem:[%s965 + $0x210] sm:$0xff]
        %v1153 = vld [vmem:[%s965 + $0x218] sm:$0xff]
        %v1154 = vld [vmem:[%s965 + $0x220] sm:$0xff]
        %v1155 = vld [vmem:[%s965 + $0x228] sm:$0xff]
        %v1156 = vld [vmem:[%s965 + $0x230] sm:$0xff]
        %v1157 = vld [vmem:[%s965 + $0x238] sm:$0xff]
        %v1158 = vld [vmem:[%s965 + $0x240] sm:$0xff]
        %v1159 = vld [vmem:[%s965 + $0x248] sm:$0xff]
        %v1160 = vld [vmem:[%s965 + $0x250] sm:$0xff]
        %v1161 = vld [vmem:[%s965 + $0x258] sm:$0xff]
        %v1162 = vld [vmem:[%s965 + $0x260] sm:$0xff]
        %v1163 = vld [vmem:[%s965 + $0x268] sm:$0xff]
        %v1164 = vld [vmem:[%s965 + $0x270] sm:$0xff]
        %v1165 = vld [vmem:[%s965 + $0x278] sm:$0xff]
        %v1166 = vld [vmem:[%s965 + $0x280] sm:$0xff]
        %v1167 = vld [vmem:[%s965 + $0x288] sm:$0xff]
        %v1168 = vld [vmem:[%s965 + $0x290] sm:$0xff]
        %v1169 = vld [vmem:[%s965 + $0x298] sm:$0xff]
        %v1170 = vld [vmem:[%s965 + $0x2a0] sm:$0xff]
        %v1171 = vld [vmem:[%s965 + $0x2a8] sm:$0xff]
        %v1172 = vld [vmem:[%s965 + $0x2b0] sm:$0xff]
        %v1173 = vld [vmem:[%s965 + $0x2b8] sm:$0xff]
        %v1174 = vld [vmem:[%s965 + $0x2c0] sm:$0xff]
        %v1175 = vld [vmem:[%s965 + $0x2c8] sm:$0xff]
        %v1176 = vld [vmem:[%s965 + $0x2d0] sm:$0xff]
        %v1177 = vld [vmem:[%s965 + $0x2d8] sm:$0xff]
        %v1178 = vld [vmem:[%s965 + $0x2e0] sm:$0xff]
        %v1179 = vld [vmem:[%s965 + $0x2e8] sm:$0xff]
        %v1180 = vld [vmem:[%s965 + $0x2f0] sm:$0xff]
        %v1181 = vld [vmem:[%s965 + $0x2f8] sm:$0xff]
        %v1182 = vld [vmem:[%s965 + $0x300] sm:$0xff]
        %v1183 = vld [vmem:[%s965 + $0x308] sm:$0xff]
        %v1184 = vld [vmem:[%s965 + $0x310] sm:$0xff]
        %v1185 = vld [vmem:[%s965 + $0x318] sm:$0xff]
        %v1186 = vld [vmem:[%s965 + $0x320] sm:$0xff]
        %v1187 = vld [vmem:[%s965 + $0x328] sm:$0xff]
        %v1188 = vld [vmem:[%s965 + $0x330] sm:$0xff]
        %v1189 = vld [vmem:[%s965 + $0x338] sm:$0xff]
        %v1190 = vld [vmem:[%s965 + $0x340] sm:$0xff]
        %v1191 = vld [vmem:[%s965 + $0x348] sm:$0xff]
        %v1192 = vld [vmem:[%s965 + $0x350] sm:$0xff]
        %v1193 = vld [vmem:[%s965 + $0x358] sm:$0xff]
        %v1194 = vld [vmem:[%s965 + $0x360] sm:$0xff]
        %v1195 = vld [vmem:[%s965 + $0x368] sm:$0xff]
        %v1196 = vld [vmem:[%s965 + $0x370] sm:$0xff]
        %v1197 = vld [vmem:[%s965 + $0x378] sm:$0xff]
        %v1198 = vld [vmem:[%s965 + $0x380] sm:$0xff]
        %v1199 = vld [vmem:[%s965 + $0x388] sm:$0xff]
        %v1200 = vld [vmem:[%s965 + $0x390] sm:$0xff]
        %v1201 = vld [vmem:[%s965 + $0x398] sm:$0xff]
        %v1202 = vld [vmem:[%s965 + $0x3a0] sm:$0xff]
        %v1203 = vld [vmem:[%s965 + $0x3a8] sm:$0xff]
        %v1204 = vld [vmem:[%s965 + $0x3b0] sm:$0xff]
        %v1205 = vld [vmem:[%s965 + $0x3b8] sm:$0xff]
        %v1206 = vld [vmem:[%s965 + $0x3c0] sm:$0xff]
        %v1207 = vld [vmem:[%s965 + $0x3c8] sm:$0xff]
        %v1208 = vld [vmem:[%s965 + $0x3d0] sm:$0xff]
        %v1209 = vld [vmem:[%s965 + $0x3d8] sm:$0xff]
        %v1210 = vld [vmem:[%s965 + $0x3e0] sm:$0xff]
        %v1211 = vld [vmem:[%s965 + $0x3e8] sm:$0xff]
        %v1212 = vld [vmem:[%s965 + $0x3f0] sm:$0xff]
        %v1213 = vld [vmem:[%s965 + $0x3f8] sm:$0xff]
        %v1214 = vld [vmem:[%s965 + $0x400] sm:$0xff]
        %v1215 = vld [vmem:[%s965 + $0x408] sm:$0xff]
        %v1216 = vld [vmem:[%s965 + $0x410] sm:$0xff]
        %v1217 = vld [vmem:[%s965 + $0x418] sm:$0xff]
        %v1218 = vld [vmem:[%s965 + $0x420] sm:$0xff]
        %v1219 = vld [vmem:[%s965 + $0x428] sm:$0xff]
        %v1220 = vld [vmem:[%s965 + $0x430] sm:$0xff]
        %v1221 = vld [vmem:[%s965 + $0x438] sm:$0xff]
        %v1222 = vld [vmem:[%s965 + $0x440] sm:$0xff]
        %v1223 = vld [vmem:[%s965 + $0x448] sm:$0xff]
        %v1224 = vld [vmem:[%s965 + $0x450] sm:$0xff]
        %v1225 = vld [vmem:[%s965 + $0x458] sm:$0xff]
        %v1226 = vld [vmem:[%s965 + $0x460] sm:$0xff]
        %v1227 = vld [vmem:[%s965 + $0x468] sm:$0xff]
        %v1228 = vld [vmem:[%s965 + $0x470] sm:$0xff]
        %v1229 = vld [vmem:[%s965 + $0x478] sm:$0xff]
        %v1230 = vld [vmem:[%s965 + $0x480] sm:$0xff]
        %v1231 = vld [vmem:[%s965 + $0x488] sm:$0xff]
        %v1232 = vld [vmem:[%s965 + $0x490] sm:$0xff]
        %v1233 = vld [vmem:[%s965 + $0x498] sm:$0xff]
        %v1234 = vld [vmem:[%s965 + $0x4a0] sm:$0xff]
        %v1235 = vld [vmem:[%s965 + $0x4a8] sm:$0xff]
        %v1236 = vld [vmem:[%s965 + $0x4b0] sm:$0xff]
        %v1237 = vld [vmem:[%s965 + $0x4b8] sm:$0xff]
        %v1238 = vld [vmem:[%s965 + $0x4c0] sm:$0xff]
        %v1239 = vld [vmem:[%s965 + $0x4c8] sm:$0xff]
        %v1240 = vld [vmem:[%s965 + $0x4d0] sm:$0xff]
        %v1241 = vld [vmem:[%s965 + $0x4d8] sm:$0xff]
        %v1242 = vld [vmem:[%s965 + $0x4e0] sm:$0xff]
        %v1243 = vld [vmem:[%s965 + $0x4e8] sm:$0xff]
        %v1244 = vld [vmem:[%s965 + $0x4f0] sm:$0xff]
        %v1245 = vld [vmem:[%s965 + $0x4f8] sm:$0xff]
        %v1246 = vld [vmem:[%s965 + $0x500] sm:$0xff]
        %v1247 = vld [vmem:[%s965 + $0x508] sm:$0xff]
        %v1248 = vld [vmem:[%s965 + $0x510] sm:$0xff]
        %v1249 = vld [vmem:[%s965 + $0x518] sm:$0xff]
        %v1250 = vld [vmem:[%s965 + $0x520] sm:$0xff]
        %v1251 = vld [vmem:[%s965 + $0x528] sm:$0xff]
        %v1252 = vld [vmem:[%s965 + $0x530] sm:$0xff]
        %v1253 = vld [vmem:[%s965 + $0x538] sm:$0xff]
        %v1254 = vld [vmem:[%s965 + $0x540] sm:$0xff]
        %v1255 = vld [vmem:[%s965 + $0x548] sm:$0xff]
        %v1256 = vld [vmem:[%s965 + $0x550] sm:$0xff]
        %v1257 = vld [vmem:[%s965 + $0x558] sm:$0xff]
        %v1258 = vld [vmem:[%s965 + $0x560] sm:$0xff]
        %v1259 = vld [vmem:[%s965 + $0x568] sm:$0xff]
        %v1260 = vld [vmem:[%s965 + $0x570] sm:$0xff]
        %v1261 = vld [vmem:[%s965 + $0x578] sm:$0xff]
        %v1262 = vld [vmem:[%s965 + $0x580] sm:$0xff]
        %v1263 = vld [vmem:[%s965 + $0x588] sm:$0xff]
        %v1264 = vld [vmem:[%s965 + $0x590] sm:$0xff]
        %v1265 = vld [vmem:[%s965 + $0x598] sm:$0xff]
        %v1266 = vld [vmem:[%s965 + $0x5a0] sm:$0xff]
        %v1267 = vld [vmem:[%s965 + $0x5a8] sm:$0xff]
        %v1268 = vld [vmem:[%s965 + $0x5b0] sm:$0xff]
        %v1269 = vld [vmem:[%s965 + $0x5b8] sm:$0xff]
        %v1270 = vld [vmem:[%s965 + $0x5c0] sm:$0xff]
        %v1271 = vld [vmem:[%s965 + $0x5c8] sm:$0xff]
        %v1272 = vld [vmem:[%s965 + $0x5d0] sm:$0xff]
        %v1273 = vld [vmem:[%s965 + $0x5d8] sm:$0xff]
        %v1274 = vld [vmem:[%s965 + $0x5e0] sm:$0xff]
        %v1275 = vld [vmem:[%s965 + $0x5e8] sm:$0xff]
        %v1276 = vld [vmem:[%s965 + $0x5f0] sm:$0xff]
        %v1277 = vld [vmem:[%s965 + $0x5f8] sm:$0xff]
        %v1278 = vld [vmem:[%s965 + $0x600] sm:$0xff]
        %v1279 = vld [vmem:[%s965 + $0x608] sm:$0xff]
        %v1280 = vld [vmem:[%s965 + $0x610] sm:$0xff]
        %v1281 = vld [vmem:[%s965 + $0x618] sm:$0xff]
        %v1282 = vld [vmem:[%s965 + $0x620] sm:$0xff]
        %v1283 = vld [vmem:[%s965 + $0x628] sm:$0xff]
        %v1284 = vld [vmem:[%s965 + $0x630] sm:$0xff]
        %v1285 = vld [vmem:[%s965 + $0x638] sm:$0xff]
        %v1286 = vld [vmem:[%s965 + $0x640] sm:$0xff]
        %v1287 = vld [vmem:[%s965 + $0x648] sm:$0xff]
        %v1288 = vld [vmem:[%s965 + $0x650] sm:$0xff]
        %v1289 = vld [vmem:[%s965 + $0x658] sm:$0xff]
        %v1290 = vld [vmem:[%s965 + $0x660] sm:$0xff]
        %v1291 = vld [vmem:[%s965 + $0x668] sm:$0xff]
        %v1292 = vld [vmem:[%s965 + $0x670] sm:$0xff]
        %v1293 = vld [vmem:[%s965 + $0x678] sm:$0xff]
        %v1294 = vld [vmem:[%s965 + $0x680] sm:$0xff]
        %v1295 = vld [vmem:[%s965 + $0x688] sm:$0xff]
        %v1296 = vld [vmem:[%s965 + $0x690] sm:$0xff]
        %v1297 = vld [vmem:[%s965 + $0x698] sm:$0xff]
        %v1298 = vld [vmem:[%s965 + $0x6a0] sm:$0xff]
        %v1299 = vld [vmem:[%s965 + $0x6a8] sm:$0xff]
        %v1300 = vld [vmem:[%s965 + $0x6b0] sm:$0xff]
        %v1301 = vld [vmem:[%s965 + $0x6b8] sm:$0xff]
        %v1302 = vld [vmem:[%s965 + $0x6c0] sm:$0xff]
        %v1303 = vld [vmem:[%s965 + $0x6c8] sm:$0xff]
        %v1304 = vld [vmem:[%s965 + $0x6d0] sm:$0xff]
        %v1305 = vld [vmem:[%s965 + $0x6d8] sm:$0xff]
        %v1306 = vld [vmem:[%s965 + $0x6e0] sm:$0xff]
        %v1307 = vld [vmem:[%s965 + $0x6e8] sm:$0xff]
        %v1308 = vld [vmem:[%s965 + $0x6f0] sm:$0xff]
        %v1309 = vld [vmem:[%s965 + $0x6f8] sm:$0xff]
        %v1310 = vld [vmem:[%s965 + $0x700] sm:$0xff]
        %v1311 = vld [vmem:[%s965 + $0x708] sm:$0xff]
        %v1312 = vld [vmem:[%s965 + $0x710] sm:$0xff]
        %v1313 = vld [vmem:[%s965 + $0x718] sm:$0xff]
        %v1314 = vld [vmem:[%s965 + $0x720] sm:$0xff]
        %v1315 = vld [vmem:[%s965 + $0x728] sm:$0xff]
        %v1316 = vld [vmem:[%s965 + $0x730] sm:$0xff]
        %v1317 = vld [vmem:[%s965 + $0x738] sm:$0xff]
        %v1318 = vld [vmem:[%s965 + $0x740] sm:$0xff]
        %v1319 = vld [vmem:[%s965 + $0x748] sm:$0xff]
        %v1320 = vld [vmem:[%s965 + $0x750] sm:$0xff]
        %v1321 = vld [vmem:[%s965 + $0x758] sm:$0xff]
        %v1322 = vld [vmem:[%s965 + $0x760] sm:$0xff]
        %v1323 = vld [vmem:[%s965 + $0x768] sm:$0xff]
        %v1324 = vld [vmem:[%s965 + $0x770] sm:$0xff]
        %v1325 = vld [vmem:[%s965 + $0x778] sm:$0xff]
        %v1326 = vld [vmem:[%s965 + $0x780] sm:$0xff]
        %v1327 = vld [vmem:[%s965 + $0x788] sm:$0xff]
        %v1328 = vld [vmem:[%s965 + $0x790] sm:$0xff]
        %v1329 = vld [vmem:[%s965 + $0x798] sm:$0xff]
        %v1330 = vld [vmem:[%s965 + $0x7a0] sm:$0xff]
        %v1331 = vld [vmem:[%s965 + $0x7a8] sm:$0xff]
        %v1332 = vld [vmem:[%s965 + $0x7b0] sm:$0xff]
        %v1333 = vld [vmem:[%s965 + $0x7b8] sm:$0xff]
        %v1334 = vld [vmem:[%s965 + $0x7c0] sm:$0xff]
        %v1335 = vld [vmem:[%s965 + $0x7c8] sm:$0xff]
        %v1336 = vld [vmem:[%s965 + $0x7d0] sm:$0xff]
        %v1337 = vld [vmem:[%s965 + $0x7d8] sm:$0xff]
        %v1338 = vld [vmem:[%s965 + $0x7e0] sm:$0xff]
        %v1339 = vld [vmem:[%s965 + $0x7e8] sm:$0xff]
        %v1340 = vld [vmem:[%s965 + $0x7f0] sm:$0xff]
        %v1341 = vld [vmem:[%s965 + $0x7f8] sm:$0xff]
        %v1342 = vld [vmem:[%s965 + $0x800] sm:$0xff]
        %v1343 = vld [vmem:[%s965 + $0x808] sm:$0xff]
        %v1344 = vld [vmem:[%s965 + $0x810] sm:$0xff]
        %v1345 = vld [vmem:[%s965 + $0x818] sm:$0xff]
        %v1346 = vld [vmem:[%s965 + $0x820] sm:$0xff]
        %v1347 = vld [vmem:[%s965 + $0x828] sm:$0xff]
        %v1348 = vld [vmem:[%s965 + $0x830] sm:$0xff]
        %v1349 = vld [vmem:[%s965 + $0x838] sm:$0xff]
        %v1350 = vld [vmem:[%s965 + $0x840] sm:$0xff]
        %v1351 = vld [vmem:[%s965 + $0x848] sm:$0xff]
        %v1352 = vld [vmem:[%s965 + $0x850] sm:$0xff]
        %v1353 = vld [vmem:[%s965 + $0x858] sm:$0xff]
        %v1354 = vld [vmem:[%s965 + $0x860] sm:$0xff]
        %v1355 = vld [vmem:[%s965 + $0x868] sm:$0xff]
        %v1356 = vld [vmem:[%s965 + $0x870] sm:$0xff]
        %v1357 = vld [vmem:[%s965 + $0x878] sm:$0xff]
        %v1358 = vld [vmem:[%s965 + $0x880] sm:$0xff]
        %v1359 = vld [vmem:[%s965 + $0x888] sm:$0xff]
        %v1360 = vld [vmem:[%s965 + $0x890] sm:$0xff]
        %v1361 = vld [vmem:[%s965 + $0x898] sm:$0xff]
        %v1362 = vld [vmem:[%s965 + $0x8a0] sm:$0xff]
        %v1363 = vld [vmem:[%s965 + $0x8a8] sm:$0xff]
        %v1364 = vld [vmem:[%s965 + $0x8b0] sm:$0xff]
        %v1365 = vld [vmem:[%s965 + $0x8b8] sm:$0xff]
        %v1366 = vld [vmem:[%s965 + $0x8c0] sm:$0xff]
        %v1367 = vld [vmem:[%s965 + $0x8c8] sm:$0xff]
        %v1368 = vld [vmem:[%s965 + $0x8d0] sm:$0xff]
        %v1369 = vld [vmem:[%s965 + $0x8d8] sm:$0xff]
        %v1370 = vld [vmem:[%s965 + $0x8e0] sm:$0xff]
        %v1371 = vld [vmem:[%s965 + $0x8e8] sm:$0xff]
        %v1372 = vld [vmem:[%s965 + $0x8f0] sm:$0xff]
        %v1373 = vld [vmem:[%s965 + $0x8f8] sm:$0xff]
        %v1374 = vld [vmem:[%s965 + $0x900] sm:$0xff]
        %v1375 = vld [vmem:[%s965 + $0x908] sm:$0xff]
        %v1376 = vld [vmem:[%s965 + $0x910] sm:$0xff]
        %v1377 = vld [vmem:[%s965 + $0x918] sm:$0xff]
        %v1378 = vld [vmem:[%s965 + $0x920] sm:$0xff]
        %v1379 = vld [vmem:[%s965 + $0x928] sm:$0xff]
        %v1380 = vld [vmem:[%s965 + $0x930] sm:$0xff]
        %v1381 = vld [vmem:[%s965 + $0x938] sm:$0xff]
        %v1382 = vld [vmem:[%s965 + $0x940] sm:$0xff]
        %v1383 = vld [vmem:[%s965 + $0x948] sm:$0xff]
        %v1384 = vld [vmem:[%s965 + $0x950] sm:$0xff]
        %v1385 = vld [vmem:[%s965 + $0x958] sm:$0xff]
        %v1386 = vld [vmem:[%s965 + $0x960] sm:$0xff]
        %v1387 = vld [vmem:[%s965 + $0x968] sm:$0xff]
        %v1388 = vld [vmem:[%s965 + $0x970] sm:$0xff]
        %v1389 = vld [vmem:[%s965 + $0x978] sm:$0xff]
        %v1390 = vld [vmem:[%s965 + $0x980] sm:$0xff]
        %v1391 = vld [vmem:[%s965 + $0x988] sm:$0xff]
        %v1392 = vld [vmem:[%s965 + $0x990] sm:$0xff]
        %v1393 = vld [vmem:[%s965 + $0x998] sm:$0xff]
        %v1394 = vld [vmem:[%s965 + $0x9a0] sm:$0xff]
        %v1395 = vld [vmem:[%s965 + $0x9a8] sm:$0xff]
        %v1396 = vld [vmem:[%s965 + $0x9b0] sm:$0xff]
        %v1397 = vld [vmem:[%s965 + $0x9b8] sm:$0xff]
        %v1398 = vld [vmem:[%s965 + $0x9c0] sm:$0xff]
        %v1399 = vld [vmem:[%s965 + $0x9c8] sm:$0xff]
        %v1400 = vld [vmem:[%s965 + $0x9d0] sm:$0xff]
        %v1401 = vld [vmem:[%s965 + $0x9d8] sm:$0xff]
        %v1402 = vld [vmem:[%s965 + $0x9e0] sm:$0xff]
        %v1403 = vld [vmem:[%s965 + $0x9e8] sm:$0xff]
        %v1404 = vld [vmem:[%s965 + $0x9f0] sm:$0xff]
        %v1405 = vld [vmem:[%s965 + $0x9f8] sm:$0xff]
        %v1406 = vld [vmem:[%s965 + $0xa00] sm:$0xff]
        %v1407 = vld [vmem:[%s965 + $0xa08] sm:$0xff]
        %v1408 = vld [vmem:[%s965 + $0xa10] sm:$0xff]
        %v1409 = vld [vmem:[%s965 + $0xa18] sm:$0xff]
        %v1410 = vld [vmem:[%s965 + $0xa20] sm:$0xff]
        %v1411 = vld [vmem:[%s965 + $0xa28] sm:$0xff]
        %v1412 = vld [vmem:[%s965 + $0xa30] sm:$0xff]
        %v1413 = vld [vmem:[%s965 + $0xa38] sm:$0xff]
        %v1414 = vld [vmem:[%s965 + $0xa40] sm:$0xff]
        %v1415 = vld [vmem:[%s965 + $0xa48] sm:$0xff]
        %v1416 = vld [vmem:[%s965 + $0xa50] sm:$0xff]
        %v1417 = vld [vmem:[%s965 + $0xa58] sm:$0xff]
        %v1418 = vld [vmem:[%s965 + $0xa60] sm:$0xff]
        %v1419 = vld [vmem:[%s965 + $0xa68] sm:$0xff]
        %v1420 = vld [vmem:[%s965 + $0xa70] sm:$0xff]
        %v1421 = vld [vmem:[%s965 + $0xa78] sm:$0xff]
        %v1422 = vld [vmem:[%s965 + $0xa80] sm:$0xff]
        %v1423 = vld [vmem:[%s965 + $0xa88] sm:$0xff]
        %v1424 = vld [vmem:[%s965 + $0xa90] sm:$0xff]
        %v1425 = vld [vmem:[%s965 + $0xa98] sm:$0xff]
        %v1426 = vld [vmem:[%s965 + $0xaa0] sm:$0xff]
        %v1427 = vld [vmem:[%s965 + $0xaa8] sm:$0xff]
        %v1428 = vld [vmem:[%s965 + $0xab0] sm:$0xff]
        %v1429 = vld [vmem:[%s965 + $0xab8] sm:$0xff]
        %v1430 = vld [vmem:[%s965 + $0xac0] sm:$0xff]
        %v1431 = vld [vmem:[%s965 + $0xac8] sm:$0xff]
        %v1432 = vld [vmem:[%s965 + $0xad0] sm:$0xff]
        %v1433 = vld [vmem:[%s965 + $0xad8] sm:$0xff]
        %v1434 = vld [vmem:[%s965 + $0xae0] sm:$0xff]
        %v1435 = vld [vmem:[%s965 + $0xae8] sm:$0xff]
        %v1436 = vld [vmem:[%s965 + $0xaf0] sm:$0xff]
        %v1437 = vld [vmem:[%s965 + $0xaf8] sm:$0xff]
        %v1438 = vld [vmem:[%s965 + $0xb00] sm:$0xff]
        %v1439 = vld [vmem:[%s965 + $0xb08] sm:$0xff]
        %v1440 = vld [vmem:[%s965 + $0xb10] sm:$0xff]
        %v1441 = vld [vmem:[%s965 + $0xb18] sm:$0xff]
        %v1442 = vld [vmem:[%s965 + $0xb20] sm:$0xff]
        %v1443 = vld [vmem:[%s965 + $0xb28] sm:$0xff]
        %v1444 = vld [vmem:[%s965 + $0xb30] sm:$0xff]
        %v1445 = vld [vmem:[%s965 + $0xb38] sm:$0xff]
        %v1446 = vld [vmem:[%s965 + $0xb40] sm:$0xff]
        %v1447 = vld [vmem:[%s965 + $0xb48] sm:$0xff]
        %v1448 = vld [vmem:[%s965 + $0xb50] sm:$0xff]
        %v1449 = vld [vmem:[%s965 + $0xb58] sm:$0xff]
        %v1450 = vld [vmem:[%s965 + $0xb60] sm:$0xff]
        %v1451 = vld [vmem:[%s965 + $0xb68] sm:$0xff]
        %v1452 = vld [vmem:[%s965 + $0xb70] sm:$0xff]
        %v1453 = vld [vmem:[%s965 + $0xb78] sm:$0xff]
        %v1454 = vld [vmem:[%s965 + $0xb80] sm:$0xff]
        %v1455 = vld [vmem:[%s965 + $0xb88] sm:$0xff]
        %v1456 = vld [vmem:[%s965 + $0xb90] sm:$0xff]
        %v1457 = vld [vmem:[%s965 + $0xb98] sm:$0xff]
        %v1458 = vld [vmem:[%s965 + $0xba0] sm:$0xff]
        %v1459 = vld [vmem:[%s965 + $0xba8] sm:$0xff]
        %v1460 = vld [vmem:[%s965 + $0xbb0] sm:$0xff]
        %v1461 = vld [vmem:[%s965 + $0xbb8] sm:$0xff]
        %v1462 = vld [vmem:[%s965 + $0xbc0] sm:$0xff]
        %v1463 = vld [vmem:[%s965 + $0xbc8] sm:$0xff]
        %v1464 = vld [vmem:[%s965 + $0xbd0] sm:$0xff]
        %v1465 = vld [vmem:[%s965 + $0xbd8] sm:$0xff]
        %v1466 = vld [vmem:[%s965 + $0xbe0] sm:$0xff]
        %v1467 = vld [vmem:[%s965 + $0xbe8] sm:$0xff]
        %v1468 = vld [vmem:[%s965 + $0xbf0] sm:$0xff]
        %v1469 = vld [vmem:[%s965 + $0xbf8] sm:$0xff]
        %v1470 = vld [vmem:[%s1009] sm:$0x3f]
        %v1472 = vlaneseq
        %v1473 = vshrl.u32 %v1472, 7
        %v1474 = vsub.s32 0, %v1473
        %v1475 = vrot.slane %v1470, %v1474
        %v1476 = vlaneseq
        %v1477 = vshrl.u32 %v1476, 7
        %v1478 = vsub.s32 1, %v1477
        %v1479 = vrot.slane %v1470, %v1478
        %v1480 = vlaneseq
        %v1481 = vshrl.u32 %v1480, 7
        %v1482 = vsub.s32 2, %v1481
        %v1483 = vrot.slane %v1470, %v1482
        %v1484 = vlaneseq
        %v1485 = vshrl.u32 %v1484, 7
        %v1486 = vsub.s32 3, %v1485
        %v1487 = vrot.slane %v1470, %v1486
        %v1488 = vlaneseq
        %v1489 = vshrl.u32 %v1488, 7
        %v1490 = vsub.s32 4, %v1489
        %v1491 = vrot.slane %v1470, %v1490
        %v1492 = vlaneseq
        %v1493 = vshrl.u32 %v1492, 7
        %v1494 = vsub.s32 5, %v1493
        %v1495 = vrot.slane %v1470, %v1494
        %1502 = vmatprep.subr.mxu0 %v1087
        %1503 = vmatpush1.msra.mxu0 %v1086
        %1504 = vmatprep.subr.mxu0 %v1093
        %1505 = vmatpush1.msra.mxu0 %v1092
        %1506 = vmatprep.subr.mxu0 %v1099
        %1507 = vmatpush1.msra.mxu0 %v1098
        %1508 = vmatprep.subr.mxu0 %v1105
        %1509 = vmatpush1.msra.mxu0 %v1104
        %1510 = vmatprep.subr.mxu0 %v1111
        %1511 = vmatpush1.msra.mxu0 %v1110
        %1512 = vmatprep.subr.mxu0 %v1117
        %1513 = vmatpush1.msra.mxu0 %v1116
        %1514 = vmatprep.subr.mxu0 %v1123
        %1515 = vmatpush1.msra.mxu0 %v1122
        %1516 = vmatprep.subr.mxu0 %v1129
        %1517 = vmatpush1.msra.mxu0 %v1128
        %1518 = vmatprep.subr.mxu0 %v1135
        %1519 = vmatpush1.msra.mxu0 %v1134
        %1520 = vmatprep.subr.mxu0 %v1141
        %1521 = vmatpush1.msra.mxu0 %v1140
        %1522 = vmatprep.subr.mxu0 %v1147
        %1523 = vmatpush1.msra.mxu0 %v1146
        %1524 = vmatprep.subr.mxu0 %v1153
        %1525 = vmatpush1.msra.mxu0 %v1152
        %1526 = vmatprep.subr.mxu0 %v1159
        %1527 = vmatpush1.msra.mxu0 %v1158
        %1528 = vmatprep.subr.mxu0 %v1165
        %1529 = vmatpush1.msra.mxu0 %v1164
        %1530 = vmatprep.subr.mxu0 %v1171
        %1531 = vmatpush1.msra.mxu0 %v1170
        %1532 = vmatprep.subr.mxu0 %v1177
        %1533 = vmatpush1.msra.mxu0 %v1176
        %1534 = vmatprep.subr.mxu0 %v1183
        %1535 = vmatpush1.msra.mxu0 %v1182
        %1536 = vmatprep.subr.mxu0 %v1189
        %1537 = vmatpush1.msra.mxu0 %v1188
        %1538 = vmatprep.subr.mxu0 %v1195
        %1539 = vmatpush1.msra.mxu0 %v1194
        %1540 = vmatprep.subr.mxu0 %v1201
        %1541 = vmatpush1.msra.mxu0 %v1200
        %1542 = vmatprep.subr.mxu0 %v1207
        %1543 = vmatpush1.msra.mxu0 %v1206
        %1544 = vmatprep.subr.mxu0 %v1213
        %1545 = vmatpush1.msra.mxu0 %v1212
        %1546 = vmatprep.subr.mxu0 %v1219
        %1547 = vmatpush1.msra.mxu0 %v1218
        %1548 = vmatprep.subr.mxu0 %v1225
        %1549 = vmatpush1.msra.mxu0 %v1224
        %1550 = vmatprep.subr.mxu0 %v1231
        %1551 = vmatpush1.msra.mxu0 %v1230
        %1552 = vmatprep.subr.mxu0 %v1237
        %1553 = vmatpush1.msra.mxu0 %v1236
        %1554 = vmatprep.subr.mxu0 %v1243
        %1555 = vmatpush1.msra.mxu0 %v1242
        %1556 = vmatprep.subr.mxu0 %v1249
        %1557 = vmatpush1.msra.mxu0 %v1248
        %1558 = vmatprep.subr.mxu0 %v1255
        %1559 = vmatpush1.msra.mxu0 %v1254
        %1560 = vmatprep.subr.mxu0 %v1261
        %1561 = vmatpush1.msra.mxu0 %v1260
        %1562 = vmatprep.subr.mxu0 %v1267
        %1563 = vmatpush1.msra.mxu0 %v1266
        %1564 = vmatprep.subr.mxu0 %v1273
        %1565 = vmatpush1.msra.mxu0 %v1272
        %1566 = vmatprep.mubr.f32.mxu0 %v1023
        %1567 = vmatmul.mubr.f32.gmra.mrb[0].mxu0 %v1022
        %v1568 = vpop.f32.mrb[0].mxu0
        %v1569 = vadd.f32 %v1475, %v1568
        %v1570 = vpop.f32.mrb[0].mxu0
        %v1571 = vadd.f32 %v1479, %v1570
        %1572 = vmatprep.mubr.f32.mxu0 %v1027
        %1573 = vmatmul.mubr.f32.gmra.mrb[0].mxu0 %v1026
        %v1574 = vpop.f32.mrb[0].mxu0
        %v1575 = vadd.f32 %v1475, %v1574
        %v1576 = vpop.f32.mrb[0].mxu0
        %v1577 = vadd.f32 %v1479, %v1576
        %1578 = vmatprep.mubr.f32.mxu0 %v1031
        %1579 = vmatmul.mubr.f32.gmra.mrb[0].mxu0 %v1030
        %v1580 = vpop.f32.mrb[0].mxu0
        %v1581 = vadd.f32 %v1475, %v1580
        %v1582 = vpop.f32.mrb[0].mxu0
        %v1583 = vadd.f32 %v1479, %v1582
        %1584 = vmatprep.mubr.f32.mxu0 %v1035
        %1585 = vmatmul.mubr.f32.gmra.mrb[0].mxu0 %v1034
        %v1586 = vpop.f32.mrb[0].mxu0
        %v1587 = vadd.f32 %v1475, %v1586
        %v1588 = vpop.f32.mrb[0].mxu0
        %v1589 = vadd.f32 %v1479, %v1588
        %1590 = vmatprep.mubr.f32.mxu0 %v1039
        %1591 = vmatmul.mubr.f32.gmra.mrb[0].mxu0 %v1038
        %v1592 = vpop.f32.mrb[0].mxu0
        %v1593 = vadd.f32 %v1475, %v1592
        %v1594 = vpop.f32.mrb[0].mxu0
        %v1595 = vadd.f32 %v1479, %v1594
        %1596 = vmatprep.mubr.f32.mxu0 %v1043
        %1597 = vmatmul.mubr.f32.gmra.mrb[0].mxu0 %v1042
        %v1598 = vpop.f32.mrb[0].mxu0
        %v1599 = vadd.f32 %v1475, %v1598
        %v1600 = vpop.f32.mrb[0].mxu0
        %v1601 = vadd.f32 %v1479, %v1600
        %1602 = vmatprep.mubr.f32.mxu0 %v1047
        %1603 = vmatmul.mubr.f32.gmra.mrb[0].mxu0 %v1046
        %v1604 = vpop.f32.mrb[0].mxu0
        %v1605 = vadd.f32 %v1475, %v1604
        %v1606 = vpop.f32.mrb[0].mxu0
        %v1607 = vadd.f32 %v1479, %v1606
        %1608 = vmatprep.mubr.f32.mxu0 %v1051
        %1609 = vmatmul.mubr.f32.gmra.mrb[0].mxu0 %v1050
        %v1610 = vpop.f32.mrb[0].mxu0
        %v1611 = vadd.f32 %v1475, %v1610
        %v1612 = vpop.f32.mrb[0].mxu0
        %v1613 = vadd.f32 %v1479, %v1612
        %1614 = vmatprep.mubr.f32.mxu0 %v1055
        %1615 = vmatmul.mubr.f32.gmra.mrb[0].mxu0 %v1054
        %v1616 = vpop.f32.mrb[0].mxu0
        %v1617 = vadd.f32 %v1475, %v1616
        %v1618 = vpop.f32.mrb[0].mxu0
        %v1619 = vadd.f32 %v1479, %v1618
        %1620 = vmatprep.mubr.f32.mxu0 %v1059
        %1621 = vmatmul.mubr.f32.gmra.mrb[0].mxu0 %v1058
        %v1622 = vpop.f32.mrb[0].mxu0
        %v1623 = vadd.f32 %v1475, %v1622
        %v1624 = vpop.f32.mrb[0].mxu0
        %v1625 = vadd.f32 %v1479, %v1624
        %1626 = vmatprep.mubr.f32.mxu0 %v1063
        %1627 = vmatmul.mubr.f32.gmra.mrb[0].mxu0 %v1062
        %v1628 = vpop.f32.mrb[0].mxu0
        %v1629 = vadd.f32 %v1475, %v1628
        %v1630 = vpop.f32.mrb[0].mxu0
        %v1631 = vadd.f32 %v1479, %v1630
        %1632 = vmatprep.mubr.f32.mxu0 %v1067
        %1633 = vmatmul.mubr.f32.gmra.mrb[0].mxu0 %v1066
        %v1634 = vpop.f32.mrb[0].mxu0
        %v1635 = vadd.f32 %v1475, %v1634
        %v1636 = vpop.f32.mrb[0].mxu0
        %v1637 = vadd.f32 %v1479, %v1636
        %1638 = vmatprep.mubr.f32.mxu0 %v1071
        %1639 = vmatmul.mubr.f32.gmra.mrb[0].mxu0 %v1070
        %v1640 = vpop.f32.mrb[0].mxu0
        %v1641 = vadd.f32 %v1475, %v1640
        %v1642 = vpop.f32.mrb[0].mxu0
        %v1643 = vadd.f32 %v1479, %v1642
        %1644 = vmatprep.mubr.f32.mxu0 %v1075
        %1645 = vmatmul.mubr.f32.gmra.mrb[0].mxu0 %v1074
        %v1646 = vpop.f32.mrb[0].mxu0
        %v1647 = vadd.f32 %v1475, %v1646
        %v1648 = vpop.f32.mrb[0].mxu0
        %v1649 = vadd.f32 %v1479, %v1648
        %1650 = vmatprep.mubr.f32.mxu0 %v1079
        %1651 = vmatmul.mubr.f32.gmra.mrb[0].mxu0 %v1078
        %v1652 = vpop.f32.mrb[0].mxu0
        %v1653 = vadd.f32 %v1475, %v1652
        %v1654 = vpop.f32.mrb[0].mxu0
        %v1655 = vadd.f32 %v1479, %v1654
        %1656 = vmatprep.mubr.f32.mxu0 %v1083
        %1657 = vmatmul.mubr.f32.gmra.mrb[0].mxu0 %v1082
        %v1658 = vpop.f32.mrb[0].mxu0
        %v1659 = vadd.f32 %v1475, %v1658
        %v1660 = vpop.f32.mrb[0].mxu0
        %v1661 = vadd.f32 %v1479, %v1660
        %1662 = vdwg.mxu0
        %1663 = vmatprep.subr.mxu0 %v1279
        %1664 = vmatpush1.msra.mxu0 %v1278
        %1665 = vmatprep.subr.mxu0 %v1285
        %1666 = vmatpush1.msra.mxu0 %v1284
        %1667 = vmatprep.subr.mxu0 %v1291
        %1668 = vmatpush1.msra.mxu0 %v1290
        %1669 = vmatprep.subr.mxu0 %v1297
        %1670 = vmatpush1.msra.mxu0 %v1296
        %1671 = vmatprep.subr.mxu0 %v1303
        %1672 = vmatpush1.msra.mxu0 %v1302
        %1673 = vmatprep.subr.mxu0 %v1309
        %1674 = vmatpush1.msra.mxu0 %v1308
        %1675 = vmatprep.subr.mxu0 %v1315
        %1676 = vmatpush1.msra.mxu0 %v1314
        %1677 = vmatprep.subr.mxu0 %v1321
        %1678 = vmatpush1.msra.mxu0 %v1320
        %1679 = vmatprep.subr.mxu0 %v1327
        %1680 = vmatpush1.msra.mxu0 %v1326
        %1681 = vmatprep.subr.mxu0 %v1333
        %1682 = vmatpush1.msra.mxu0 %v1332
        %1683 = vmatprep.subr.mxu0 %v1339
        %1684 = vmatpush1.msra.mxu0 %v1338
        %1685 = vmatprep.subr.mxu0 %v1345
        %1686 = vmatpush1.msra.mxu0 %v1344
        %1687 = vmatprep.subr.mxu0 %v1351
        %1688 = vmatpush1.msra.mxu0 %v1350
        %1689 = vmatprep.subr.mxu0 %v1357
        %1690 = vmatpush1.msra.mxu0 %v1356
        %1691 = vmatprep.subr.mxu0 %v1363
        %1692 = vmatpush1.msra.mxu0 %v1362
        %1693 = vmatprep.subr.mxu0 %v1369
        %1694 = vmatpush1.msra.mxu0 %v1368
        %1695 = vmatprep.subr.mxu0 %v1375
        %1696 = vmatpush1.msra.mxu0 %v1374
        %1697 = vmatprep.subr.mxu0 %v1381
        %1698 = vmatpush1.msra.mxu0 %v1380
        %1699 = vmatprep.subr.mxu0 %v1387
        %1700 = vmatpush1.msra.mxu0 %v1386
        %1701 = vmatprep.subr.mxu0 %v1393
        %1702 = vmatpush1.msra.mxu0 %v1392
        %1703 = vmatprep.subr.mxu0 %v1399
        %1704 = vmatpush1.msra.mxu0 %v1398
        %1705 = vmatprep.subr.mxu0 %v1405
        %1706 = vmatpush1.msra.mxu0 %v1404
        %1707 = vmatprep.subr.mxu0 %v1411
        %1708 = vmatpush1.msra.mxu0 %v1410
        %1709 = vmatprep.subr.mxu0 %v1417
        %1710 = vmatpush1.msra.mxu0 %v1416
        %1711 = vmatprep.subr.mxu0 %v1423
        %1712 = vmatpush1.msra.mxu0 %v1422
        %1713 = vmatprep.subr.mxu0 %v1429
        %1714 = vmatpush1.msra.mxu0 %v1428
        %1715 = vmatprep.subr.mxu0 %v1435
        %1716 = vmatpush1.msra.mxu0 %v1434
        %1717 = vmatprep.subr.mxu0 %v1441
        %1718 = vmatpush1.msra.mxu0 %v1440
        %1719 = vmatprep.subr.mxu0 %v1447
        %1720 = vmatpush1.msra.mxu0 %v1446
        %1721 = vmatprep.subr.mxu0 %v1453
        %1722 = vmatpush1.msra.mxu0 %v1452
        %1723 = vmatprep.subr.mxu0 %v1459
        %1724 = vmatpush1.msra.mxu0 %v1458
        %1725 = vmatprep.subr.mxu0 %v1465
        %1726 = vmatpush1.msra.mxu0 %v1464
        %1727 = vmatprep.mubr.f32.mxu0 %v1025
        %1728 = vmatmul.mubr.f32.gmra.mrb[0].mxu0 %v1024
        %v1729 = vpop.f32.mrb[0].mxu0
        %v1730 = vadd.f32 %v1569, %v1729
        %v1731 = vpop.f32.mrb[0].mxu0
        %v1732 = vadd.f32 %v1571, %v1731
        %1733 = vmatprep.mubr.f32.mxu0 %v1029
        %1734 = vmatmul.mubr.f32.gmra.mrb[0].mxu0 %v1028
        %v1735 = vpop.f32.mrb[0].mxu0
        %v1736 = vadd.f32 %v1575, %v1735
        %v1737 = vpop.f32.mrb[0].mxu0
        %v1738 = vadd.f32 %v1577, %v1737
        %1739 = vmatprep.mubr.f32.mxu0 %v1033
        %1740 = vmatmul.mubr.f32.gmra.mrb[0].mxu0 %v1032
        %v1741 = vpop.f32.mrb[0].mxu0
        %v1742 = vadd.f32 %v1581, %v1741
        %v1743 = vpop.f32.mrb[0].mxu0
        %v1744 = vadd.f32 %v1583, %v1743
        %1745 = vmatprep.mubr.f32.mxu0 %v1037
        %1746 = vmatmul.mubr.f32.gmra.mrb[0].mxu0 %v1036
        %v1747 = vpop.f32.mrb[0].mxu0
        %v1748 = vadd.f32 %v1587, %v1747
        %v1749 = vpop.f32.mrb[0].mxu0
        %v1750 = vadd.f32 %v1589, %v1749
        %1751 = vmatprep.mubr.f32.mxu0 %v1041
        %1752 = vmatmul.mubr.f32.gmra.mrb[0].mxu0 %v1040
        %v1753 = vpop.f32.mrb[0].mxu0
        %v1754 = vadd.f32 %v1593, %v1753
        %v1755 = vpop.f32.mrb[0].mxu0
        %v1756 = vadd.f32 %v1595, %v1755
        %1757 = vmatprep.mubr.f32.mxu0 %v1045
        %1758 = vmatmul.mubr.f32.gmra.mrb[0].mxu0 %v1044
        %v1759 = vpop.f32.mrb[0].mxu0
        %v1760 = vadd.f32 %v1599, %v1759
        %v1761 = vpop.f32.mrb[0].mxu0
        %v1762 = vadd.f32 %v1601, %v1761
        %1763 = vmatprep.mubr.f32.mxu0 %v1049
        %1764 = vmatmul.mubr.f32.gmra.mrb[0].mxu0 %v1048
        %v1765 = vpop.f32.mrb[0].mxu0
        %v1766 = vadd.f32 %v1605, %v1765
        %v1767 = vpop.f32.mrb[0].mxu0
        %v1768 = vadd.f32 %v1607, %v1767
        %1769 = vmatprep.mubr.f32.mxu0 %v1053
        %1770 = vmatmul.mubr.f32.gmra.mrb[0].mxu0 %v1052
        %v1771 = vpop.f32.mrb[0].mxu0
        %v1772 = vadd.f32 %v1611, %v1771
        %v1773 = vpop.f32.mrb[0].mxu0
        %v1774 = vadd.f32 %v1613, %v1773
        %1775 = vmatprep.mubr.f32.mxu0 %v1057
        %1776 = vmatmul.mubr.f32.gmra.mrb[0].mxu0 %v1056
        %v1777 = vpop.f32.mrb[0].mxu0
        %v1778 = vadd.f32 %v1617, %v1777
        %v1779 = vpop.f32.mrb[0].mxu0
        %v1780 = vadd.f32 %v1619, %v1779
        %1781 = vmatprep.mubr.f32.mxu0 %v1061
        %1782 = vmatmul.mubr.f32.gmra.mrb[0].mxu0 %v1060
        %v1783 = vpop.f32.mrb[0].mxu0
        %v1784 = vadd.f32 %v1623, %v1783
        %v1785 = vpop.f32.mrb[0].mxu0
        %v1786 = vadd.f32 %v1625, %v1785
        %1787 = vmatprep.mubr.f32.mxu0 %v1065
        %1788 = vmatmul.mubr.f32.gmra.mrb[0].mxu0 %v1064
        %v1789 = vpop.f32.mrb[0].mxu0
        %v1790 = vadd.f32 %v1629, %v1789
        %v1791 = vpop.f32.mrb[0].mxu0
        %v1792 = vadd.f32 %v1631, %v1791
        %1793 = vmatprep.mubr.f32.mxu0 %v1069
        %1794 = vmatmul.mubr.f32.gmra.mrb[0].mxu0 %v1068
        %v1795 = vpop.f32.mrb[0].mxu0
        %v1796 = vadd.f32 %v1635, %v1795
        %v1797 = vpop.f32.mrb[0].mxu0
        %v1798 = vadd.f32 %v1637, %v1797
        %1799 = vmatprep.mubr.f32.mxu0 %v1073
        %1800 = vmatmul.mubr.f32.gmra.mrb[0].mxu0 %v1072
        %v1801 = vpop.f32.mrb[0].mxu0
        %v1802 = vadd.f32 %v1641, %v1801
        %v1803 = vpop.f32.mrb[0].mxu0
        %v1804 = vadd.f32 %v1643, %v1803
        %1805 = vmatprep.mubr.f32.mxu0 %v1077
        %1806 = vmatmul.mubr.f32.gmra.mrb[0].mxu0 %v1076
        %v1807 = vpop.f32.mrb[0].mxu0
        %v1808 = vadd.f32 %v1647, %v1807
        %v1809 = vpop.f32.mrb[0].mxu0
        %v1810 = vadd.f32 %v1649, %v1809
        %1811 = vmatprep.mubr.f32.mxu0 %v1081
        %1812 = vmatmul.mubr.f32.gmra.mrb[0].mxu0 %v1080
        %v1813 = vpop.f32.mrb[0].mxu0
        %v1814 = vadd.f32 %v1653, %v1813
        %v1815 = vpop.f32.mrb[0].mxu0
        %v1816 = vadd.f32 %v1655, %v1815
        %1817 = vmatprep.mubr.f32.mxu0 %v1085
        %1818 = vmatmul.mubr.f32.gmra.mrb[0].mxu0 %v1084
        %v1819 = vpop.f32.mrb[0].mxu0
        %v1820 = vadd.f32 %v1659, %v1819
        %v1821 = vpop.f32.mrb[0].mxu0
        %v1822 = vadd.f32 %v1661, %v1821
        %1823 = vdwg.mxu0
        %1824 = vmatprep.subr.mxu0 %v1089
        %1825 = vmatpush1.msra.mxu0 %v1088
        %1826 = vmatprep.subr.mxu0 %v1095
        %1827 = vmatpush1.msra.mxu0 %v1094
        %1828 = vmatprep.subr.mxu0 %v1101
        %1829 = vmatpush1.msra.mxu0 %v1100
        %1830 = vmatprep.subr.mxu0 %v1107
        %1831 = vmatpush1.msra.mxu0 %v1106
        %1832 = vmatprep.subr.mxu0 %v1113
        %1833 = vmatpush1.msra.mxu0 %v1112
        %1834 = vmatprep.subr.mxu0 %v1119
        %1835 = vmatpush1.msra.mxu0 %v1118
        %1836 = vmatprep.subr.mxu0 %v1125
        %1837 = vmatpush1.msra.mxu0 %v1124
        %1838 = vmatprep.subr.mxu0 %v1131
        %1839 = vmatpush1.msra.mxu0 %v1130
        %1840 = vmatprep.subr.mxu0 %v1137
        %1841 = vmatpush1.msra.mxu0 %v1136
        %1842 = vmatprep.subr.mxu0 %v1143
        %1843 = vmatpush1.msra.mxu0 %v1142
        %1844 = vmatprep.subr.mxu0 %v1149
        %1845 = vmatpush1.msra.mxu0 %v1148
        %1846 = vmatprep.subr.mxu0 %v1155
        %1847 = vmatpush1.msra.mxu0 %v1154
        %1848 = vmatprep.subr.mxu0 %v1161
        %1849 = vmatpush1.msra.mxu0 %v1160
        %1850 = vmatprep.subr.mxu0 %v1167
        %1851 = vmatpush1.msra.mxu0 %v1166
        %1852 = vmatprep.subr.mxu0 %v1173
        %1853 = vmatpush1.msra.mxu0 %v1172
        %1854 = vmatprep.subr.mxu0 %v1179
        %1855 = vmatpush1.msra.mxu0 %v1178
        %1856 = vmatprep.subr.mxu0 %v1185
        %1857 = vmatpush1.msra.mxu0 %v1184
        %1858 = vmatprep.subr.mxu0 %v1191
        %1859 = vmatpush1.msra.mxu0 %v1190
        %1860 = vmatprep.subr.mxu0 %v1197
        %1861 = vmatpush1.msra.mxu0 %v1196
        %1862 = vmatprep.subr.mxu0 %v1203
        %1863 = vmatpush1.msra.mxu0 %v1202
        %1864 = vmatprep.subr.mxu0 %v1209
        %1865 = vmatpush1.msra.mxu0 %v1208
        %1866 = vmatprep.subr.mxu0 %v1215
        %1867 = vmatpush1.msra.mxu0 %v1214
        %1868 = vmatprep.subr.mxu0 %v1221
        %1869 = vmatpush1.msra.mxu0 %v1220
        %1870 = vmatprep.subr.mxu0 %v1227
        %1871 = vmatpush1.msra.mxu0 %v1226
        %1872 = vmatprep.subr.mxu0 %v1233
        %1873 = vmatpush1.msra.mxu0 %v1232
        %1874 = vmatprep.subr.mxu0 %v1239
        %1875 = vmatpush1.msra.mxu0 %v1238
        %1876 = vmatprep.subr.mxu0 %v1245
        %1877 = vmatpush1.msra.mxu0 %v1244
        %1878 = vmatprep.subr.mxu0 %v1251
        %1879 = vmatpush1.msra.mxu0 %v1250
        %1880 = vmatprep.subr.mxu0 %v1257
        %1881 = vmatpush1.msra.mxu0 %v1256
        %1882 = vmatprep.subr.mxu0 %v1263
        %1883 = vmatpush1.msra.mxu0 %v1262
        %1884 = vmatprep.subr.mxu0 %v1269
        %1885 = vmatpush1.msra.mxu0 %v1268
        %1886 = vmatprep.subr.mxu0 %v1275
        %1887 = vmatpush1.msra.mxu0 %v1274
        %1888 = vmatprep.mubr.f32.mxu0 %v1023
        %1889 = vmatmul.mubr.f32.gmra.mrb[0].mxu0 %v1022
        %v1890 = vpop.f32.mrb[0].mxu0
        %v1891 = vadd.f32 %v1483, %v1890
        %v1892 = vpop.f32.mrb[0].mxu0
        %v1893 = vadd.f32 %v1487, %v1892
        %1894 = vmatprep.mubr.f32.mxu0 %v1027
        %1895 = vmatmul.mubr.f32.gmra.mrb[0].mxu0 %v1026
        %v1896 = vpop.f32.mrb[0].mxu0
        %v1897 = vadd.f32 %v1483, %v1896
        %v1898 = vpop.f32.mrb[0].mxu0
        %v1899 = vadd.f32 %v1487, %v1898
        %1900 = vmatprep.mubr.f32.mxu0 %v1031
        %1901 = vmatmul.mubr.f32.gmra.mrb[0].mxu0 %v1030
        %v1902 = vpop.f32.mrb[0].mxu0
        %v1903 = vadd.f32 %v1483, %v1902
        %v1904 = vpop.f32.mrb[0].mxu0
        %v1905 = vadd.f32 %v1487, %v1904
        %1906 = vmatprep.mubr.f32.mxu0 %v1035
        %1907 = vmatmul.mubr.f32.gmra.mrb[0].mxu0 %v1034
        %v1908 = vpop.f32.mrb[0].mxu0
        %v1909 = vadd.f32 %v1483, %v1908
        %v1910 = vpop.f32.mrb[0].mxu0
        %v1911 = vadd.f32 %v1487, %v1910
        %1912 = vmatprep.mubr.f32.mxu0 %v1039
        %1913 = vmatmul.mubr.f32.gmra.mrb[0].mxu0 %v1038
        %v1914 = vpop.f32.mrb[0].mxu0
        %v1915 = vadd.f32 %v1483, %v1914
        %v1916 = vpop.f32.mrb[0].mxu0
        %v1917 = vadd.f32 %v1487, %v1916
        %1918 = vmatprep.mubr.f32.mxu0 %v1043
        %1919 = vmatmul.mubr.f32.gmra.mrb[0].mxu0 %v1042
        %v1920 = vpop.f32.mrb[0].mxu0
        %v1921 = vadd.f32 %v1483, %v1920
        %v1922 = vpop.f32.mrb[0].mxu0
        %v1923 = vadd.f32 %v1487, %v1922
        %1924 = vmatprep.mubr.f32.mxu0 %v1047
        %1925 = vmatmul.mubr.f32.gmra.mrb[0].mxu0 %v1046
        %v1926 = vpop.f32.mrb[0].mxu0
        %v1927 = vadd.f32 %v1483, %v1926
        %v1928 = vpop.f32.mrb[0].mxu0
        %v1929 = vadd.f32 %v1487, %v1928
        %1930 = vmatprep.mubr.f32.mxu0 %v1051
        %1931 = vmatmul.mubr.f32.gmra.mrb[0].mxu0 %v1050
        %v1932 = vpop.f32.mrb[0].mxu0
        %v1933 = vadd.f32 %v1483, %v1932
        %v1934 = vpop.f32.mrb[0].mxu0
        %v1935 = vadd.f32 %v1487, %v1934
        %1936 = vmatprep.mubr.f32.mxu0 %v1055
        %1937 = vmatmul.mubr.f32.gmra.mrb[0].mxu0 %v1054
        %v1938 = vpop.f32.mrb[0].mxu0
        %v1939 = vadd.f32 %v1483, %v1938
        %v1940 = vpop.f32.mrb[0].mxu0
        %v1941 = vadd.f32 %v1487, %v1940
        %1942 = vmatprep.mubr.f32.mxu0 %v1059
        %1943 = vmatmul.mubr.f32.gmra.mrb[0].mxu0 %v1058
        %v1944 = vpop.f32.mrb[0].mxu0
        %v1945 = vadd.f32 %v1483, %v1944
        %v1946 = vpop.f32.mrb[0].mxu0
        %v1947 = vadd.f32 %v1487, %v1946
        %1948 = vmatprep.mubr.f32.mxu0 %v1063
        %1949 = vmatmul.mubr.f32.gmra.mrb[0].mxu0 %v1062
        %v1950 = vpop.f32.mrb[0].mxu0
        %v1951 = vadd.f32 %v1483, %v1950
        %v1952 = vpop.f32.mrb[0].mxu0
        %v1953 = vadd.f32 %v1487, %v1952
        %1954 = vmatprep.mubr.f32.mxu0 %v1067
        %1955 = vmatmul.mubr.f32.gmra.mrb[0].mxu0 %v1066
        %v1956 = vpop.f32.mrb[0].mxu0
        %v1957 = vadd.f32 %v1483, %v1956
        %v1958 = vpop.f32.mrb[0].mxu0
        %v1959 = vadd.f32 %v1487, %v1958
        %1960 = vmatprep.mubr.f32.mxu0 %v1071
        %1961 = vmatmul.mubr.f32.gmra.mrb[0].mxu0 %v1070
        %v1962 = vpop.f32.mrb[0].mxu0
        %v1963 = vadd.f32 %v1483, %v1962
        %v1964 = vpop.f32.mrb[0].mxu0
        %v1965 = vadd.f32 %v1487, %v1964
        %1966 = vmatprep.mubr.f32.mxu0 %v1075
        %1967 = vmatmul.mubr.f32.gmra.mrb[0].mxu0 %v1074
        %v1968 = vpop.f32.mrb[0].mxu0
        %v1969 = vadd.f32 %v1483, %v1968
        %v1970 = vpop.f32.mrb[0].mxu0
        %v1971 = vadd.f32 %v1487, %v1970
        %1972 = vmatprep.mubr.f32.mxu0 %v1079
        %1973 = vmatmul.mubr.f32.gmra.mrb[0].mxu0 %v1078
        %v1974 = vpop.f32.mrb[0].mxu0
        %v1975 = vadd.f32 %v1483, %v1974
        %v1976 = vpop.f32.mrb[0].mxu0
        %v1977 = vadd.f32 %v1487, %v1976
        %1978 = vmatprep.mubr.f32.mxu0 %v1083
        %1979 = vmatmul.mubr.f32.gmra.mrb[0].mxu0 %v1082
        %v1980 = vpop.f32.mrb[0].mxu0
        %v1981 = vadd.f32 %v1483, %v1980
        %v1982 = vpop.f32.mrb[0].mxu0
        %v1983 = vadd.f32 %v1487, %v1982
        %1984 = vdwg.mxu0
        %1985 = vmatprep.subr.mxu0 %v1281
        %1986 = vmatpush1.msra.mxu0 %v1280
        %1987 = vmatprep.subr.mxu0 %v1287
        %1988 = vmatpush1.msra.mxu0 %v1286
        %1989 = vmatprep.subr.mxu0 %v1293
        %1990 = vmatpush1.msra.mxu0 %v1292
        %1991 = vmatprep.subr.mxu0 %v1299
        %1992 = vmatpush1.msra.mxu0 %v1298
        %1993 = vmatprep.subr.mxu0 %v1305
        %1994 = vmatpush1.msra.mxu0 %v1304
        %1995 = vmatprep.subr.mxu0 %v1311
        %1996 = vmatpush1.msra.mxu0 %v1310
        %1997 = vmatprep.subr.mxu0 %v1317
        %1998 = vmatpush1.msra.mxu0 %v1316
        %1999 = vmatprep.subr.mxu0 %v1323
        %2000 = vmatpush1.msra.mxu0 %v1322
        %2001 = vmatprep.subr.mxu0 %v1329
        %2002 = vmatpush1.msra.mxu0 %v1328
        %2003 = vmatprep.subr.mxu0 %v1335
        %2004 = vmatpush1.msra.mxu0 %v1334
        %2005 = vmatprep.subr.mxu0 %v1341
        %2006 = vmatpush1.msra.mxu0 %v1340
        %2007 = vmatprep.subr.mxu0 %v1347
        %2008 = vmatpush1.msra.mxu0 %v1346
        %2009 = vmatprep.subr.mxu0 %v1353
        %2010 = vmatpush1.msra.mxu0 %v1352
        %2011 = vmatprep.subr.mxu0 %v1359
        %2012 = vmatpush1.msra.mxu0 %v1358
        %2013 = vmatprep.subr.mxu0 %v1365
        %2014 = vmatpush1.msra.mxu0 %v1364
        %2015 = vmatprep.subr.mxu0 %v1371
        %2016 = vmatpush1.msra.mxu0 %v1370
        %2017 = vmatprep.subr.mxu0 %v1377
        %2018 = vmatpush1.msra.mxu0 %v1376
        %2019 = vmatprep.subr.mxu0 %v1383
        %2020 = vmatpush1.msra.mxu0 %v1382
        %2021 = vmatprep.subr.mxu0 %v1389
        %2022 = vmatpush1.msra.mxu0 %v1388
        %2023 = vmatprep.subr.mxu0 %v1395
        %2024 = vmatpush1.msra.mxu0 %v1394
        %2025 = vmatprep.subr.mxu0 %v1401
        %2026 = vmatpush1.msra.mxu0 %v1400
        %2027 = vmatprep.subr.mxu0 %v1407
        %2028 = vmatpush1.msra.mxu0 %v1406
        %2029 = vmatprep.subr.mxu0 %v1413
        %2030 = vmatpush1.msra.mxu0 %v1412
        %2031 = vmatprep.subr.mxu0 %v1419
        %2032 = vmatpush1.msra.mxu0 %v1418
        %2033 = vmatprep.subr.mxu0 %v1425
        %2034 = vmatpush1.msra.mxu0 %v1424
        %2035 = vmatprep.subr.mxu0 %v1431
        %2036 = vmatpush1.msra.mxu0 %v1430
        %2037 = vmatprep.subr.mxu0 %v1437
        %2038 = vmatpush1.msra.mxu0 %v1436
        %2039 = vmatprep.subr.mxu0 %v1443
        %2040 = vmatpush1.msra.mxu0 %v1442
        %2041 = vmatprep.subr.mxu0 %v1449
        %2042 = vmatpush1.msra.mxu0 %v1448
        %2043 = vmatprep.subr.mxu0 %v1455
        %2044 = vmatpush1.msra.mxu0 %v1454
        %2045 = vmatprep.subr.mxu0 %v1461
        %2046 = vmatpush1.msra.mxu0 %v1460
        %2047 = vmatprep.subr.mxu0 %v1467
        %2048 = vmatpush1.msra.mxu0 %v1466
        %2049 = vmatprep.mubr.f32.mxu0 %v1025
        %2050 = vmatmul.mubr.f32.gmra.mrb[0].mxu0 %v1024
        %v2051 = vpop.f32.mrb[0].mxu0
        %v2052 = vadd.f32 %v1891, %v2051
        %v2053 = vpop.f32.mrb[0].mxu0
        %v2054 = vadd.f32 %v1893, %v2053
        %2055 = vmatprep.mubr.f32.mxu0 %v1029
        %2056 = vmatmul.mubr.f32.gmra.mrb[0].mxu0 %v1028
        %v2057 = vpop.f32.mrb[0].mxu0
        %v2058 = vadd.f32 %v1897, %v2057
        %v2059 = vpop.f32.mrb[0].mxu0
        %v2060 = vadd.f32 %v1899, %v2059
        %2061 = vmatprep.mubr.f32.mxu0 %v1033
        %2062 = vmatmul.mubr.f32.gmra.mrb[0].mxu0 %v1032
        %v2063 = vpop.f32.mrb[0].mxu0
        %v2064 = vadd.f32 %v1903, %v2063
        %v2065 = vpop.f32.mrb[0].mxu0
        %v2066 = vadd.f32 %v1905, %v2065
        %2067 = vmatprep.mubr.f32.mxu0 %v1037
        %2068 = vmatmul.mubr.f32.gmra.mrb[0].mxu0 %v1036
        %v2069 = vpop.f32.mrb[0].mxu0
        %v2070 = vadd.f32 %v1909, %v2069
        %v2071 = vpop.f32.mrb[0].mxu0
        %v2072 = vadd.f32 %v1911, %v2071
        %2073 = vmatprep.mubr.f32.mxu0 %v1041
        %2074 = vmatmul.mubr.f32.gmra.mrb[0].mxu0 %v1040
        %v2075 = vpop.f32.mrb[0].mxu0
        %v2076 = vadd.f32 %v1915, %v2075
        %v2077 = vpop.f32.mrb[0].mxu0
        %v2078 = vadd.f32 %v1917, %v2077
        %2079 = vmatprep.mubr.f32.mxu0 %v1045
        %2080 = vmatmul.mubr.f32.gmra.mrb[0].mxu0 %v1044
        %v2081 = vpop.f32.mrb[0].mxu0
        %v2082 = vadd.f32 %v1921, %v2081
        %v2083 = vpop.f32.mrb[0].mxu0
        %v2084 = vadd.f32 %v1923, %v2083
        %2085 = vmatprep.mubr.f32.mxu0 %v1049
        %2086 = vmatmul.mubr.f32.gmra.mrb[0].mxu0 %v1048
        %v2087 = vpop.f32.mrb[0].mxu0
        %v2088 = vadd.f32 %v1927, %v2087
        %v2089 = vpop.f32.mrb[0].mxu0
        %v2090 = vadd.f32 %v1929, %v2089
        %2091 = vmatprep.mubr.f32.mxu0 %v1053
        %2092 = vmatmul.mubr.f32.gmra.mrb[0].mxu0 %v1052
        %v2093 = vpop.f32.mrb[0].mxu0
        %v2094 = vadd.f32 %v1933, %v2093
        %v2095 = vpop.f32.mrb[0].mxu0
        %v2096 = vadd.f32 %v1935, %v2095
        %2097 = vmatprep.mubr.f32.mxu0 %v1057
        %2098 = vmatmul.mubr.f32.gmra.mrb[0].mxu0 %v1056
        %v2099 = vpop.f32.mrb[0].mxu0
        %v2100 = vadd.f32 %v1939, %v2099
        %v2101 = vpop.f32.mrb[0].mxu0
        %v2102 = vadd.f32 %v1941, %v2101
        %2103 = vmatprep.mubr.f32.mxu0 %v1061
        %2104 = vmatmul.mubr.f32.gmra.mrb[0].mxu0 %v1060
        %v2105 = vpop.f32.mrb[0].mxu0
        %v2106 = vadd.f32 %v1945, %v2105
        %v2107 = vpop.f32.mrb[0].mxu0
        %v2108 = vadd.f32 %v1947, %v2107
        %2109 = vmatprep.mubr.f32.mxu0 %v1065
        %2110 = vmatmul.mubr.f32.gmra.mrb[0].mxu0 %v1064
        %v2111 = vpop.f32.mrb[0].mxu0
        %v2112 = vadd.f32 %v1951, %v2111
        %v2113 = vpop.f32.mrb[0].mxu0
        %v2114 = vadd.f32 %v1953, %v2113
        %2115 = vmatprep.mubr.f32.mxu0 %v1069
        %2116 = vmatmul.mubr.f32.gmra.mrb[0].mxu0 %v1068
        %v2117 = vpop.f32.mrb[0].mxu0
        %v2118 = vadd.f32 %v1957, %v2117
        %v2119 = vpop.f32.mrb[0].mxu0
        %v2120 = vadd.f32 %v1959, %v2119
        %2121 = vmatprep.mubr.f32.mxu0 %v1073
        %2122 = vmatmul.mubr.f32.gmra.mrb[0].mxu0 %v1072
        %v2123 = vpop.f32.mrb[0].mxu0
        %v2124 = vadd.f32 %v1963, %v2123
        %v2125 = vpop.f32.mrb[0].mxu0
        %v2126 = vadd.f32 %v1965, %v2125
        %2127 = vmatprep.mubr.f32.mxu0 %v1077
        %2128 = vmatmul.mubr.f32.gmra.mrb[0].mxu0 %v1076
        %v2129 = vpop.f32.mrb[0].mxu0
        %v2130 = vadd.f32 %v1969, %v2129
        %v2131 = vpop.f32.mrb[0].mxu0
        %v2132 = vadd.f32 %v1971, %v2131
        %2133 = vmatprep.mubr.f32.mxu0 %v1081
        %2134 = vmatmul.mubr.f32.gmra.mrb[0].mxu0 %v1080
        %v2135 = vpop.f32.mrb[0].mxu0
        %v2136 = vadd.f32 %v1975, %v2135
        %v2137 = vpop.f32.mrb[0].mxu0
        %v2138 = vadd.f32 %v1977, %v2137
        %2139 = vmatprep.mubr.f32.mxu0 %v1085
        %2140 = vmatmul.mubr.f32.gmra.mrb[0].mxu0 %v1084
        %v2141 = vpop.f32.mrb[0].mxu0
        %v2142 = vadd.f32 %v1981, %v2141
        %v2143 = vpop.f32.mrb[0].mxu0
        %v2144 = vadd.f32 %v1983, %v2143
        %2145 = vdwg.mxu0
        %2146 = vmatprep.subr.mxu0 %v1091
        %2147 = vmatpush1.msra.mxu0 %v1090
        %2148 = vmatprep.subr.mxu0 %v1097
        %2149 = vmatpush1.msra.mxu0 %v1096
        %2150 = vmatprep.subr.mxu0 %v1103
        %2151 = vmatpush1.msra.mxu0 %v1102
        %2152 = vmatprep.subr.mxu0 %v1109
        %2153 = vmatpush1.msra.mxu0 %v1108
        %2154 = vmatprep.subr.mxu0 %v1115
        %2155 = vmatpush1.msra.mxu0 %v1114
        %2156 = vmatprep.subr.mxu0 %v1121
        %2157 = vmatpush1.msra.mxu0 %v1120
        %2158 = vmatprep.subr.mxu0 %v1127
        %2159 = vmatpush1.msra.mxu0 %v1126
        %2160 = vmatprep.subr.mxu0 %v1133
        %2161 = vmatpush1.msra.mxu0 %v1132
        %2162 = vmatprep.subr.mxu0 %v1139
        %2163 = vmatpush1.msra.mxu0 %v1138
        %2164 = vmatprep.subr.mxu0 %v1145
        %2165 = vmatpush1.msra.mxu0 %v1144
        %2166 = vmatprep.subr.mxu0 %v1151
        %2167 = vmatpush1.msra.mxu0 %v1150
        %2168 = vmatprep.subr.mxu0 %v1157
        %2169 = vmatpush1.msra.mxu0 %v1156
        %2170 = vmatprep.subr.mxu0 %v1163
        %2171 = vmatpush1.msra.mxu0 %v1162
        %2172 = vmatprep.subr.mxu0 %v1169
        %2173 = vmatpush1.msra.mxu0 %v1168
        %2174 = vmatprep.subr.mxu0 %v1175
        %2175 = vmatpush1.msra.mxu0 %v1174
        %2176 = vmatprep.subr.mxu0 %v1181
        %2177 = vmatpush1.msra.mxu0 %v1180
        %2178 = vmatprep.subr.mxu0 %v1187
        %2179 = vmatpush1.msra.mxu0 %v1186
        %2180 = vmatprep.subr.mxu0 %v1193
        %2181 = vmatpush1.msra.mxu0 %v1192
        %2182 = vmatprep.subr.mxu0 %v1199
        %2183 = vmatpush1.msra.mxu0 %v1198
        %2184 = vmatprep.subr.mxu0 %v1205
        %2185 = vmatpush1.msra.mxu0 %v1204
        %2186 = vmatprep.subr.mxu0 %v1211
        %2187 = vmatpush1.msra.mxu0 %v1210
        %2188 = vmatprep.subr.mxu0 %v1217
        %2189 = vmatpush1.msra.mxu0 %v1216
        %2190 = vmatprep.subr.mxu0 %v1223
        %2191 = vmatpush1.msra.mxu0 %v1222
        %2192 = vmatprep.subr.mxu0 %v1229
        %2193 = vmatpush1.msra.mxu0 %v1228
        %2194 = vmatprep.subr.mxu0 %v1235
        %2195 = vmatpush1.msra.mxu0 %v1234
        %2196 = vmatprep.subr.mxu0 %v1241
        %2197 = vmatpush1.msra.mxu0 %v1240
        %2198 = vmatprep.subr.mxu0 %v1247
        %2199 = vmatpush1.msra.mxu0 %v1246
        %2200 = vmatprep.subr.mxu0 %v1253
        %2201 = vmatpush1.msra.mxu0 %v1252
        %2202 = vmatprep.subr.mxu0 %v1259
        %2203 = vmatpush1.msra.mxu0 %v1258
        %2204 = vmatprep.subr.mxu0 %v1265
        %2205 = vmatpush1.msra.mxu0 %v1264
        %2206 = vmatprep.subr.mxu0 %v1271
        %2207 = vmatpush1.msra.mxu0 %v1270
        %2208 = vmatprep.subr.mxu0 %v1277
        %2209 = vmatpush1.msra.mxu0 %v1276
        %2210 = vmatprep.mubr.f32.mxu0 %v1023
        %2211 = vmatmul.mubr.f32.gmra.mrb[0].mxu0 %v1022
        %v2212 = vpop.f32.mrb[0].mxu0
        %v2213 = vadd.f32 %v1491, %v2212
        %v2214 = vpop.f32.mrb[0].mxu0
        %v2215 = vadd.f32 %v1495, %v2214
        %2216 = vmatprep.mubr.f32.mxu0 %v1027
        %2217 = vmatmul.mubr.f32.gmra.mrb[0].mxu0 %v1026
        %v2218 = vpop.f32.mrb[0].mxu0
        %v2219 = vadd.f32 %v1491, %v2218
        %v2220 = vpop.f32.mrb[0].mxu0
        %v2221 = vadd.f32 %v1495, %v2220
        %2222 = vmatprep.mubr.f32.mxu0 %v1031
        %2223 = vmatmul.mubr.f32.gmra.mrb[0].mxu0 %v1030
        %v2224 = vpop.f32.mrb[0].mxu0
        %v2225 = vadd.f32 %v1491, %v2224
        %v2226 = vpop.f32.mrb[0].mxu0
        %v2227 = vadd.f32 %v1495, %v2226
        %2228 = vmatprep.mubr.f32.mxu0 %v1035
        %2229 = vmatmul.mubr.f32.gmra.mrb[0].mxu0 %v1034
        %v2230 = vpop.f32.mrb[0].mxu0
        %v2231 = vadd.f32 %v1491, %v2230
        %v2232 = vpop.f32.mrb[0].mxu0
        %v2233 = vadd.f32 %v1495, %v2232
        %2234 = vmatprep.mubr.f32.mxu0 %v1039
        %2235 = vmatmul.mubr.f32.gmra.mrb[0].mxu0 %v1038
        %v2236 = vpop.f32.mrb[0].mxu0
        %v2237 = vadd.f32 %v1491, %v2236
        %v2238 = vpop.f32.mrb[0].mxu0
        %v2239 = vadd.f32 %v1495, %v2238
        %2240 = vmatprep.mubr.f32.mxu0 %v1043
        %2241 = vmatmul.mubr.f32.gmra.mrb[0].mxu0 %v1042
        %v2242 = vpop.f32.mrb[0].mxu0
        %v2243 = vadd.f32 %v1491, %v2242
        %v2244 = vpop.f32.mrb[0].mxu0
        %v2245 = vadd.f32 %v1495, %v2244
        %2246 = vmatprep.mubr.f32.mxu0 %v1047
        %2247 = vmatmul.mubr.f32.gmra.mrb[0].mxu0 %v1046
        %v2248 = vpop.f32.mrb[0].mxu0
        %v2249 = vadd.f32 %v1491, %v2248
        %v2250 = vpop.f32.mrb[0].mxu0
        %v2251 = vadd.f32 %v1495, %v2250
        %2252 = vmatprep.mubr.f32.mxu0 %v1051
        %2253 = vmatmul.mubr.f32.gmra.mrb[0].mxu0 %v1050
        %v2254 = vpop.f32.mrb[0].mxu0
        %v2255 = vadd.f32 %v1491, %v2254
        %v2256 = vpop.f32.mrb[0].mxu0
        %v2257 = vadd.f32 %v1495, %v2256
        %2258 = vmatprep.mubr.f32.mxu0 %v1055
        %2259 = vmatmul.mubr.f32.gmra.mrb[0].mxu0 %v1054
        %v2260 = vpop.f32.mrb[0].mxu0
        %v2261 = vadd.f32 %v1491, %v2260
        %v2262 = vpop.f32.mrb[0].mxu0
        %v2263 = vadd.f32 %v1495, %v2262
        %2264 = vmatprep.mubr.f32.mxu0 %v1059
        %2265 = vmatmul.mubr.f32.gmra.mrb[0].mxu0 %v1058
        %v2266 = vpop.f32.mrb[0].mxu0
        %v2267 = vadd.f32 %v1491, %v2266
        %v2268 = vpop.f32.mrb[0].mxu0
        %v2269 = vadd.f32 %v1495, %v2268
        %2270 = vmatprep.mubr.f32.mxu0 %v1063
        %2271 = vmatmul.mubr.f32.gmra.mrb[0].mxu0 %v1062
        %v2272 = vpop.f32.mrb[0].mxu0
        %v2273 = vadd.f32 %v1491, %v2272
        %v2274 = vpop.f32.mrb[0].mxu0
        %v2275 = vadd.f32 %v1495, %v2274
        %2276 = vmatprep.mubr.f32.mxu0 %v1067
        %2277 = vmatmul.mubr.f32.gmra.mrb[0].mxu0 %v1066
        %v2278 = vpop.f32.mrb[0].mxu0
        %v2279 = vadd.f32 %v1491, %v2278
        %v2280 = vpop.f32.mrb[0].mxu0
        %v2281 = vadd.f32 %v1495, %v2280
        %2282 = vmatprep.mubr.f32.mxu0 %v1071
        %2283 = vmatmul.mubr.f32.gmra.mrb[0].mxu0 %v1070
        %v2284 = vpop.f32.mrb[0].mxu0
        %v2285 = vadd.f32 %v1491, %v2284
        %v2286 = vpop.f32.mrb[0].mxu0
        %v2287 = vadd.f32 %v1495, %v2286
        %2288 = vmatprep.mubr.f32.mxu0 %v1075
        %2289 = vmatmul.mubr.f32.gmra.mrb[0].mxu0 %v1074
        %v2290 = vpop.f32.mrb[0].mxu0
        %v2291 = vadd.f32 %v1491, %v2290
        %v2292 = vpop.f32.mrb[0].mxu0
        %v2293 = vadd.f32 %v1495, %v2292
        %2294 = vmatprep.mubr.f32.mxu0 %v1079
        %2295 = vmatmul.mubr.f32.gmra.mrb[0].mxu0 %v1078
        %v2296 = vpop.f32.mrb[0].mxu0
        %v2297 = vadd.f32 %v1491, %v2296
        %v2298 = vpop.f32.mrb[0].mxu0
        %v2299 = vadd.f32 %v1495, %v2298
        %2300 = vmatprep.mubr.f32.mxu0 %v1083
        %2301 = vmatmul.mubr.f32.gmra.mrb[0].mxu0 %v1082
        %v2302 = vpop.f32.mrb[0].mxu0
        %v2303 = vadd.f32 %v1491, %v2302
        %v2304 = vpop.f32.mrb[0].mxu0
        %v2305 = vadd.f32 %v1495, %v2304
        %2306 = vdwg.mxu0
        %2307 = vmatprep.subr.mxu0 %v1283
        %2308 = vmatpush1.msra.mxu0 %v1282
        %2309 = vmatprep.subr.mxu0 %v1289
        %2310 = vmatpush1.msra.mxu0 %v1288
        %2311 = vmatprep.subr.mxu0 %v1295
        %2312 = vmatpush1.msra.mxu0 %v1294
        %2313 = vmatprep.subr.mxu0 %v1301
        %2314 = vmatpush1.msra.mxu0 %v1300
        %2315 = vmatprep.subr.mxu0 %v1307
        %2316 = vmatpush1.msra.mxu0 %v1306
        %2317 = vmatprep.subr.mxu0 %v1313
        %2318 = vmatpush1.msra.mxu0 %v1312
        %2319 = vmatprep.subr.mxu0 %v1319
        %2320 = vmatpush1.msra.mxu0 %v1318
        %2321 = vmatprep.subr.mxu0 %v1325
        %2322 = vmatpush1.msra.mxu0 %v1324
        %2323 = vmatprep.subr.mxu0 %v1331
        %2324 = vmatpush1.msra.mxu0 %v1330
        %2325 = vmatprep.subr.mxu0 %v1337
        %2326 = vmatpush1.msra.mxu0 %v1336
        %2327 = vmatprep.subr.mxu0 %v1343
        %2328 = vmatpush1.msra.mxu0 %v1342
        %2329 = vmatprep.subr.mxu0 %v1349
        %2330 = vmatpush1.msra.mxu0 %v1348
        %2331 = vmatprep.subr.mxu0 %v1355
        %2332 = vmatpush1.msra.mxu0 %v1354
        %2333 = vmatprep.subr.mxu0 %v1361
        %2334 = vmatpush1.msra.mxu0 %v1360
        %2335 = vmatprep.subr.mxu0 %v1367
        %2336 = vmatpush1.msra.mxu0 %v1366
        %2337 = vmatprep.subr.mxu0 %v1373
        %2338 = vmatpush1.msra.mxu0 %v1372
        %2339 = vmatprep.subr.mxu0 %v1379
        %2340 = vmatpush1.msra.mxu0 %v1378
        %2341 = vmatprep.subr.mxu0 %v1385
        %2342 = vmatpush1.msra.mxu0 %v1384
        %2343 = vmatprep.subr.mxu0 %v1391
        %2344 = vmatpush1.msra.mxu0 %v1390
        %2345 = vmatprep.subr.mxu0 %v1397
        %2346 = vmatpush1.msra.mxu0 %v1396
        %2347 = vmatprep.subr.mxu0 %v1403
        %2348 = vmatpush1.msra.mxu0 %v1402
        %2349 = vmatprep.subr.mxu0 %v1409
        %2350 = vmatpush1.msra.mxu0 %v1408
        %2351 = vmatprep.subr.mxu0 %v1415
        %2352 = vmatpush1.msra.mxu0 %v1414
        %2353 = vmatprep.subr.mxu0 %v1421
        %2354 = vmatpush1.msra.mxu0 %v1420
        %2355 = vmatprep.subr.mxu0 %v1427
        %2356 = vmatpush1.msra.mxu0 %v1426
        %2357 = vmatprep.subr.mxu0 %v1433
        %2358 = vmatpush1.msra.mxu0 %v1432
        %2359 = vmatprep.subr.mxu0 %v1439
        %2360 = vmatpush1.msra.mxu0 %v1438
        %2361 = vmatprep.subr.mxu0 %v1445
        %2362 = vmatpush1.msra.mxu0 %v1444
        %2363 = vmatprep.subr.mxu0 %v1451
        %2364 = vmatpush1.msra.mxu0 %v1450
        %2365 = vmatprep.subr.mxu0 %v1457
        %2366 = vmatpush1.msra.mxu0 %v1456
        %2367 = vmatprep.subr.mxu0 %v1463
        %2368 = vmatpush1.msra.mxu0 %v1462
        %2369 = vmatprep.subr.mxu0 %v1469
        %2370 = vmatpush1.msra.mxu0 %v1468
        %2371 = vmatprep.mubr.f32.mxu0 %v1025
        %2372 = vmatmul.mubr.f32.gmra.mrb[0].mxu0 %v1024
        %v2373 = vpop.f32.mrb[0].mxu0
        %v2374 = vadd.f32 %v2213, %v2373
        %v2375 = vpop.f32.mrb[0].mxu0
        %v2376 = vadd.f32 %v2215, %v2375
        %2377 = vmatprep.mubr.f32.mxu0 %v1029
        %2378 = vmatmul.mubr.f32.gmra.mrb[0].mxu0 %v1028
        %v2379 = vpop.f32.mrb[0].mxu0
        %v2380 = vadd.f32 %v2219, %v2379
        %v2381 = vpop.f32.mrb[0].mxu0
        %v2382 = vadd.f32 %v2221, %v2381
        %2383 = vmatprep.mubr.f32.mxu0 %v1033
        %2384 = vmatmul.mubr.f32.gmra.mrb[0].mxu0 %v1032
        %v2385 = vpop.f32.mrb[0].mxu0
        %v2386 = vadd.f32 %v2225, %v2385
        %v2387 = vpop.f32.mrb[0].mxu0
        %v2388 = vadd.f32 %v2227, %v2387
        %2389 = vmatprep.mubr.f32.mxu0 %v1037
        %2390 = vmatmul.mubr.f32.gmra.mrb[0].mxu0 %v1036
        %v2391 = vpop.f32.mrb[0].mxu0
        %v2392 = vadd.f32 %v2231, %v2391
        %v2393 = vpop.f32.mrb[0].mxu0
        %v2394 = vadd.f32 %v2233, %v2393
        %2395 = vmatprep.mubr.f32.mxu0 %v1041
        %2396 = vmatmul.mubr.f32.gmra.mrb[0].mxu0 %v1040
        %v2397 = vpop.f32.mrb[0].mxu0
        %v2398 = vadd.f32 %v2237, %v2397
        %v2399 = vpop.f32.mrb[0].mxu0
        %v2400 = vadd.f32 %v2239, %v2399
        %2401 = vmatprep.mubr.f32.mxu0 %v1045
        %2402 = vmatmul.mubr.f32.gmra.mrb[0].mxu0 %v1044
        %v2403 = vpop.f32.mrb[0].mxu0
        %v2404 = vadd.f32 %v2243, %v2403
        %v2405 = vpop.f32.mrb[0].mxu0
        %v2406 = vadd.f32 %v2245, %v2405
        %2407 = vmatprep.mubr.f32.mxu0 %v1049
        %2408 = vmatmul.mubr.f32.gmra.mrb[0].mxu0 %v1048
        %v2409 = vpop.f32.mrb[0].mxu0
        %v2410 = vadd.f32 %v2249, %v2409
        %v2411 = vpop.f32.mrb[0].mxu0
        %v2412 = vadd.f32 %v2251, %v2411
        %2413 = vmatprep.mubr.f32.mxu0 %v1053
        %2414 = vmatmul.mubr.f32.gmra.mrb[0].mxu0 %v1052
        %v2415 = vpop.f32.mrb[0].mxu0
        %v2416 = vadd.f32 %v2255, %v2415
        %v2417 = vpop.f32.mrb[0].mxu0
        %v2418 = vadd.f32 %v2257, %v2417
        %2419 = vmatprep.mubr.f32.mxu0 %v1057
        %2420 = vmatmul.mubr.f32.gmra.mrb[0].mxu0 %v1056
        %v2421 = vpop.f32.mrb[0].mxu0
        %v2422 = vadd.f32 %v2261, %v2421
        %v2423 = vpop.f32.mrb[0].mxu0
        %v2424 = vadd.f32 %v2263, %v2423
        %2425 = vmatprep.mubr.f32.mxu0 %v1061
        %2426 = vmatmul.mubr.f32.gmra.mrb[0].mxu0 %v1060
        %v2427 = vpop.f32.mrb[0].mxu0
        %v2428 = vadd.f32 %v2267, %v2427
        %v2429 = vpop.f32.mrb[0].mxu0
        %v2430 = vadd.f32 %v2269, %v2429
        %2431 = vmatprep.mubr.f32.mxu0 %v1065
        %2432 = vmatmul.mubr.f32.gmra.mrb[0].mxu0 %v1064
        %v2433 = vpop.f32.mrb[0].mxu0
        %v2434 = vadd.f32 %v2273, %v2433
        %v2435 = vpop.f32.mrb[0].mxu0
        %v2436 = vadd.f32 %v2275, %v2435
        %2437 = vmatprep.mubr.f32.mxu0 %v1069
        %2438 = vmatmul.mubr.f32.gmra.mrb[0].mxu0 %v1068
        %v2439 = vpop.f32.mrb[0].mxu0
        %v2440 = vadd.f32 %v2279, %v2439
        %v2441 = vpop.f32.mrb[0].mxu0
        %v2442 = vadd.f32 %v2281, %v2441
        %2443 = vmatprep.mubr.f32.mxu0 %v1073
        %2444 = vmatmul.mubr.f32.gmra.mrb[0].mxu0 %v1072
        %v2445 = vpop.f32.mrb[0].mxu0
        %v2446 = vadd.f32 %v2285, %v2445
        %v2447 = vpop.f32.mrb[0].mxu0
        %v2448 = vadd.f32 %v2287, %v2447
        %2449 = vmatprep.mubr.f32.mxu0 %v1077
        %2450 = vmatmul.mubr.f32.gmra.mrb[0].mxu0 %v1076
        %v2451 = vpop.f32.mrb[0].mxu0
        %v2452 = vadd.f32 %v2291, %v2451
        %v2453 = vpop.f32.mrb[0].mxu0
        %v2454 = vadd.f32 %v2293, %v2453
        %2455 = vmatprep.mubr.f32.mxu0 %v1081
        %2456 = vmatmul.mubr.f32.gmra.mrb[0].mxu0 %v1080
        %v2457 = vpop.f32.mrb[0].mxu0
        %v2458 = vadd.f32 %v2297, %v2457
        %v2459 = vpop.f32.mrb[0].mxu0
        %v2460 = vadd.f32 %v2299, %v2459
        %2461 = vmatprep.mubr.f32.mxu0 %v1085
        %2462 = vmatmul.mubr.f32.gmra.mrb[0].mxu0 %v1084
        %v2463 = vpop.f32.mrb[0].mxu0
        %v2464 = vadd.f32 %v2303, %v2463
        %v2465 = vpop.f32.mrb[0].mxu0
        %v2466 = vadd.f32 %v2305, %v2465
        %2467 = vdwg.mxu0
        %2468 = vmatprep.subr.mxu0 0.0
        %2469 = vmatpush1.xpose.msra.mxu0 %v2052
        %2470 = vmatprep.subr.mxu0 0.0
        %2471 = vmatpush1.xpose.msra.mxu0 %v2058
        %2472 = vmatprep.subr.mxu0 0.0
        %2473 = vmatpush1.xpose.msra.mxu0 %v2064
        %2474 = vmatprep.subr.mxu0 0.0
        %2475 = vmatpush1.xpose.msra.mxu0 %v2070
        %2476 = vmatprep.subr.mxu0 0.0
        %2477 = vmatpush1.xpose.msra.mxu0 %v2076
        %2478 = vmatprep.subr.mxu0 0.0
        %2479 = vmatpush1.xpose.msra.mxu0 %v2082
        %2480 = vmatprep.subr.mxu0 0.0
        %2481 = vmatpush1.xpose.msra.mxu0 %v2088
        %2482 = vmatprep.subr.mxu0 0.0
        %2483 = vmatpush1.xpose.msra.mxu0 %v2094
        %2484 = vmatprep.subr.mxu0 0.0
        %2485 = vmatpush1.xpose.msra.mxu0 %v2100
        %2486 = vmatprep.subr.mxu0 0.0
        %2487 = vmatpush1.xpose.msra.mxu0 %v2106
        %2488 = vmatprep.subr.mxu0 0.0
        %2489 = vmatpush1.xpose.msra.mxu0 %v2112
        %2490 = vmatprep.subr.mxu0 0.0
        %2491 = vmatpush1.xpose.msra.mxu0 %v2118
        %2492 = vmatprep.subr.mxu0 0.0
        %2493 = vmatpush1.xpose.msra.mxu0 %v2124
        %2494 = vmatprep.subr.mxu0 0.0
        %2495 = vmatpush1.xpose.msra.mxu0 %v2130
        %2496 = vmatprep.subr.mxu0 0.0
        %2497 = vmatpush1.xpose.msra.mxu0 %v2136
        %2498 = vmatprep.subr.mxu0 0.0
        %2499 = vmatpush1.xpose.msra.mxu0 %v2142
        %2500 = vmatprep.subr.mxu0 0.0
        %2501 = vmatpush1.xpose.msra.mxu0 0.0
        %2502 = vmatprep.subr.mxu0 0.0
        %2503 = vmatpush1.xpose.msra.mxu0 0.0
        %2504 = vmatprep.subr.mxu0 0.0
        %2505 = vmatpush1.xpose.msra.mxu0 0.0
        %2506 = vmatprep.subr.mxu0 0.0
        %2507 = vmatpush1.xpose.msra.mxu0 0.0
        %2508 = vmatprep.subr.mxu0 0.0
        %2509 = vmatpush1.xpose.msra.mxu0 0.0
        %2510 = vmatprep.subr.mxu0 0.0
        %2511 = vmatpush1.xpose.msra.mxu0 0.0
        %2512 = vmatprep.subr.mxu0 0.0
        %2513 = vmatpush1.xpose.msra.mxu0 0.0
        %2514 = vmatprep.subr.mxu0 0.0
        %2515 = vmatpush1.xpose.msra.mxu0 0.0
        %2516 = vmatprep.subr.mxu0 0.0
        %2517 = vmatpush1.xpose.msra.mxu0 0.0
        %2518 = vmatprep.subr.mxu0 0.0
        %2519 = vmatpush1.xpose.msra.mxu0 0.0
        %2520 = vmatprep.subr.mxu0 0.0
        %2521 = vmatpush1.xpose.msra.mxu0 0.0
        %2522 = vmatprep.subr.mxu0 0.0
        %2523 = vmatpush1.xpose.msra.mxu0 0.0
        %2524 = vmatprep.subr.mxu0 0.0
        %2525 = vmatpush1.xpose.msra.mxu0 0.0
        %2526 = vmatprep.subr.mxu0 0.0
        %2527 = vmatpush1.xpose.msra.mxu0 0.0
        %2528 = vmatprep.subr.mxu0 0.0
        %2529 = vmatpush1.xpose.msra.mxu0 0.0
        %2530 = vmatprep.subr.mxu0 0.0
        %2531 = vmatpush1.xpose.msra.mxu0 0.0
        %2532 = vmatprep.mubr.f32.mxu0 0.0
        %2533 = vmatmul.mubr.f32.gmra.mrb[0].mxu0 %v1730
        %v2534 = vpop.f32.mrb[0].mxu0
        %v2535 = vadd.f32 0.0, %v2534
        %v2536 = vpop.f32.mrb[0].mxu0
        %2537 = vmatprep.mubr.f32.mxu0 0.0
        %2538 = vmatmul.mubr.f32.gmra.mrb[0].mxu0 %v1736
        %v2539 = vpop.f32.mrb[0].mxu0
        %v2540 = vadd.f32 0.0, %v2539
        %v2541 = vpop.f32.mrb[0].mxu0
        %2542 = vmatprep.mubr.f32.mxu0 0.0
        %2543 = vmatmul.mubr.f32.gmra.mrb[0].mxu0 %v1742
        %v2544 = vpop.f32.mrb[0].mxu0
        %v2545 = vadd.f32 0.0, %v2544
        %v2546 = vpop.f32.mrb[0].mxu0
        %2547 = vmatprep.mubr.f32.mxu0 0.0
        %2548 = vmatmul.mubr.f32.gmra.mrb[0].mxu0 %v1748
        %v2549 = vpop.f32.mrb[0].mxu0
        %v2550 = vadd.f32 0.0, %v2549
        %v2551 = vpop.f32.mrb[0].mxu0
        %2552 = vmatprep.mubr.f32.mxu0 0.0
        %2553 = vmatmul.mubr.f32.gmra.mrb[0].mxu0 %v1754
        %v2554 = vpop.f32.mrb[0].mxu0
        %v2555 = vadd.f32 0.0, %v2554
        %v2556 = vpop.f32.mrb[0].mxu0
        %2557 = vmatprep.mubr.f32.mxu0 0.0
        %2558 = vmatmul.mubr.f32.gmra.mrb[0].mxu0 %v1760
        %v2559 = vpop.f32.mrb[0].mxu0
        %v2560 = vadd.f32 0.0, %v2559
        %v2561 = vpop.f32.mrb[0].mxu0
        %2562 = vmatprep.mubr.f32.mxu0 0.0
        %2563 = vmatmul.mubr.f32.gmra.mrb[0].mxu0 %v1766
        %v2564 = vpop.f32.mrb[0].mxu0
        %v2565 = vadd.f32 0.0, %v2564
        %v2566 = vpop.f32.mrb[0].mxu0
        %2567 = vmatprep.mubr.f32.mxu0 0.0
        %2568 = vmatmul.mubr.f32.gmra.mrb[0].mxu0 %v1772
        %v2569 = vpop.f32.mrb[0].mxu0
        %v2570 = vadd.f32 0.0, %v2569
        %v2571 = vpop.f32.mrb[0].mxu0
        %2572 = vmatprep.mubr.f32.mxu0 0.0
        %2573 = vmatmul.mubr.f32.gmra.mrb[0].mxu0 %v1778
        %v2574 = vpop.f32.mrb[0].mxu0
        %v2575 = vadd.f32 0.0, %v2574
        %v2576 = vpop.f32.mrb[0].mxu0
        %2577 = vmatprep.mubr.f32.mxu0 0.0
        %2578 = vmatmul.mubr.f32.gmra.mrb[0].mxu0 %v1784
        %v2579 = vpop.f32.mrb[0].mxu0
        %v2580 = vadd.f32 0.0, %v2579
        %v2581 = vpop.f32.mrb[0].mxu0
        %2582 = vmatprep.mubr.f32.mxu0 0.0
        %2583 = vmatmul.mubr.f32.gmra.mrb[0].mxu0 %v1790
        %v2584 = vpop.f32.mrb[0].mxu0
        %v2585 = vadd.f32 0.0, %v2584
        %v2586 = vpop.f32.mrb[0].mxu0
        %2587 = vmatprep.mubr.f32.mxu0 0.0
        %2588 = vmatmul.mubr.f32.gmra.mrb[0].mxu0 %v1796
        %v2589 = vpop.f32.mrb[0].mxu0
        %v2590 = vadd.f32 0.0, %v2589
        %v2591 = vpop.f32.mrb[0].mxu0
        %2592 = vmatprep.mubr.f32.mxu0 0.0
        %2593 = vmatmul.mubr.f32.gmra.mrb[0].mxu0 %v1802
        %v2594 = vpop.f32.mrb[0].mxu0
        %v2595 = vadd.f32 0.0, %v2594
        %v2596 = vpop.f32.mrb[0].mxu0
        %2597 = vmatprep.mubr.f32.mxu0 0.0
        %2598 = vmatmul.mubr.f32.gmra.mrb[0].mxu0 %v1808
        %v2599 = vpop.f32.mrb[0].mxu0
        %v2600 = vadd.f32 0.0, %v2599
        %v2601 = vpop.f32.mrb[0].mxu0
        %2602 = vmatprep.mubr.f32.mxu0 0.0
        %2603 = vmatmul.mubr.f32.gmra.mrb[0].mxu0 %v1814
        %v2604 = vpop.f32.mrb[0].mxu0
        %v2605 = vadd.f32 0.0, %v2604
        %v2606 = vpop.f32.mrb[0].mxu0
        %2607 = vmatprep.mubr.f32.mxu0 0.0
        %2608 = vmatmul.mubr.f32.gmra.mrb[0].mxu0 %v1820
        %v2609 = vpop.f32.mrb[0].mxu0
        %v2610 = vadd.f32 0.0, %v2609
        %v2611 = vpop.f32.mrb[0].mxu0
        %2612 = vdwg.mxu0
        %2613 = vmax.xlane.f32.xlu0 %v2535
        %v2614 = vpop.xlane.xlu0 %2613
        %2615 = vmax.xlane.f32.xlu0 %v2540
        %v2616 = vpop.xlane.xlu0 %2615
        %2617 = vmax.xlane.f32.xlu0 %v2545
        %v2618 = vpop.xlane.xlu0 %2617
        %2619 = vmax.xlane.f32.xlu0 %v2550
        %v2620 = vpop.xlane.xlu0 %2619
        %2621 = vmax.xlane.f32.xlu0 %v2555
        %v2622 = vpop.xlane.xlu0 %2621
        %2623 = vmax.xlane.f32.xlu0 %v2560
        %v2624 = vpop.xlane.xlu0 %2623
        %2625 = vmax.xlane.f32.xlu0 %v2565
        %v2626 = vpop.xlane.xlu0 %2625
        %2627 = vmax.xlane.f32.xlu0 %v2570
        %v2628 = vpop.xlane.xlu0 %2627
        %2629 = vmax.xlane.f32.xlu0 %v2575
        %v2630 = vpop.xlane.xlu0 %2629
        %2631 = vmax.xlane.f32.xlu0 %v2580
        %v2632 = vpop.xlane.xlu0 %2631
        %2633 = vmax.xlane.f32.xlu0 %v2585
        %v2634 = vpop.xlane.xlu0 %2633
        %2635 = vmax.xlane.f32.xlu0 %v2590
        %v2636 = vpop.xlane.xlu0 %2635
        %2637 = vmax.xlane.f32.xlu0 %v2595
        %v2638 = vpop.xlane.xlu0 %2637
        %2639 = vmax.xlane.f32.xlu0 %v2600
        %v2640 = vpop.xlane.xlu0 %2639
        %2641 = vmax.xlane.f32.xlu0 %v2605
        %v2642 = vpop.xlane.xlu0 %2641
        %2643 = vmax.xlane.f32.xlu0 %v2610
        %v2644 = vpop.xlane.xlu0 %2643
        %v2645 = vsub.f32 %v2535, %v2614
        %v2646 = vsub.f32 %v2540, %v2616
        %v2647 = vsub.f32 %v2545, %v2618
        %v2648 = vsub.f32 %v2550, %v2620
        %v2649 = vsub.f32 %v2555, %v2622
        %v2650 = vsub.f32 %v2560, %v2624
        %v2651 = vsub.f32 %v2565, %v2626
        %v2652 = vsub.f32 %v2570, %v2628
        %v2653 = vsub.f32 %v2575, %v2630
        %v2654 = vsub.f32 %v2580, %v2632
        %v2655 = vsub.f32 %v2585, %v2634
        %v2656 = vsub.f32 %v2590, %v2636
        %v2657 = vsub.f32 %v2595, %v2638
        %v2658 = vsub.f32 %v2600, %v2640
        %v2659 = vsub.f32 %v2605, %v2642
        %v2660 = vsub.f32 %v2610, %v2644
        %v2661 = vmul.f32 %v2645, 1.442695
        %v2662 = vpow.pop %v2661
        %v2663 = vmul.f32 %v2646, 1.442695
        %v2664 = vpow.pop %v2663
        %v2665 = vmul.f32 %v2647, 1.442695
        %v2666 = vpow.pop %v2665
        %v2667 = vmul.f32 %v2648, 1.442695
        %v2668 = vpow.pop %v2667
        %v2669 = vmul.f32 %v2649, 1.442695
        %v2670 = vpow.pop %v2669
        %v2671 = vmul.f32 %v2650, 1.442695
        %v2672 = vpow.pop %v2671
        %v2673 = vmul.f32 %v2651, 1.442695
        %v2674 = vpow.pop %v2673
        %v2675 = vmul.f32 %v2652, 1.442695
        %v2676 = vpow.pop %v2675
        %v2677 = vmul.f32 %v2653, 1.442695
        %v2678 = vpow.pop %v2677
        %v2679 = vmul.f32 %v2654, 1.442695
        %v2680 = vpow.pop %v2679
        %v2681 = vmul.f32 %v2655, 1.442695
        %v2682 = vpow.pop %v2681
        %v2683 = vmul.f32 %v2656, 1.442695
        %v2684 = vpow.pop %v2683
        %v2685 = vmul.f32 %v2657, 1.442695
        %v2686 = vpow.pop %v2685
        %v2687 = vmul.f32 %v2658, 1.442695
        %v2688 = vpow.pop %v2687
        %v2689 = vmul.f32 %v2659, 1.442695
        %v2690 = vpow.pop %v2689
        %v2691 = vmul.f32 %v2660, 1.442695
        %v2692 = vpow.pop %v2691
        %2693 = vadd.xlane.f32.xlu0 %v2662
        %v2694 = vpop.xlane.xlu0 %2693
        %2695 = vadd.xlane.f32.xlu0 %v2664
        %v2696 = vpop.xlane.xlu0 %2695
        %2697 = vadd.xlane.f32.xlu0 %v2666
        %v2698 = vpop.xlane.xlu0 %2697
        %2699 = vadd.xlane.f32.xlu0 %v2668
        %v2700 = vpop.xlane.xlu0 %2699
        %2701 = vadd.xlane.f32.xlu0 %v2670
        %v2702 = vpop.xlane.xlu0 %2701
        %2703 = vadd.xlane.f32.xlu0 %v2672
        %v2704 = vpop.xlane.xlu0 %2703
        %2705 = vadd.xlane.f32.xlu0 %v2674
        %v2706 = vpop.xlane.xlu0 %2705
        %2707 = vadd.xlane.f32.xlu0 %v2676
        %v2708 = vpop.xlane.xlu0 %2707
        %2709 = vadd.xlane.f32.xlu0 %v2678
        %v2710 = vpop.xlane.xlu0 %2709
        %2711 = vadd.xlane.f32.xlu0 %v2680
        %v2712 = vpop.xlane.xlu0 %2711
        %2713 = vadd.xlane.f32.xlu0 %v2682
        %v2714 = vpop.xlane.xlu0 %2713
        %2715 = vadd.xlane.f32.xlu0 %v2684
        %v2716 = vpop.xlane.xlu0 %2715
        %2717 = vadd.xlane.f32.xlu0 %v2686
        %v2718 = vpop.xlane.xlu0 %2717
        %2719 = vadd.xlane.f32.xlu0 %v2688
        %v2720 = vpop.xlane.xlu0 %2719
        %2721 = vadd.xlane.f32.xlu0 %v2690
        %v2722 = vpop.xlane.xlu0 %2721
        %2723 = vadd.xlane.f32.xlu0 %v2692
        %v2724 = vpop.xlane.xlu0 %2723
        %v2725 = vrcp.pop %v2694
        %v2726 = vrcp.pop %v2696
        %v2727 = vrcp.pop %v2698
        %v2728 = vrcp.pop %v2700
        %v2729 = vrcp.pop %v2702
        %v2730 = vrcp.pop %v2704
        %v2731 = vrcp.pop %v2706
        %v2732 = vrcp.pop %v2708
        %v2733 = vrcp.pop %v2710
        %v2734 = vrcp.pop %v2712
        %v2735 = vrcp.pop %v2714
        %v2736 = vrcp.pop %v2716
        %v2737 = vrcp.pop %v2718
        %v2738 = vrcp.pop %v2720
        %v2739 = vrcp.pop %v2722
        %v2740 = vrcp.pop %v2724
        %2741 = vmatprep.subr.mxu0 0.0
        %2742 = vmatpush1.msra.mxu0 %v2374
        %2743 = vmatprep.subr.mxu0 0.0
        %2744 = vmatpush1.msra.mxu0 %v2380
        %2745 = vmatprep.subr.mxu0 0.0
        %2746 = vmatpush1.msra.mxu0 %v2386
        %2747 = vmatprep.subr.mxu0 0.0
        %2748 = vmatpush1.msra.mxu0 %v2392
        %2749 = vmatprep.subr.mxu0 0.0
        %2750 = vmatpush1.msra.mxu0 %v2398
        %2751 = vmatprep.subr.mxu0 0.0
        %2752 = vmatpush1.msra.mxu0 %v2404
        %2753 = vmatprep.subr.mxu0 0.0
        %2754 = vmatpush1.msra.mxu0 %v2410
        %2755 = vmatprep.subr.mxu0 0.0
        %2756 = vmatpush1.msra.mxu0 %v2416
        %2757 = vmatprep.subr.mxu0 0.0
        %2758 = vmatpush1.msra.mxu0 %v2422
        %2759 = vmatprep.subr.mxu0 0.0
        %2760 = vmatpush1.msra.mxu0 %v2428
        %2761 = vmatprep.subr.mxu0 0.0
        %2762 = vmatpush1.msra.mxu0 %v2434
        %2763 = vmatprep.subr.mxu0 0.0
        %2764 = vmatpush1.msra.mxu0 %v2440
        %2765 = vmatprep.subr.mxu0 0.0
        %2766 = vmatpush1.msra.mxu0 %v2446
        %2767 = vmatprep.subr.mxu0 0.0
        %2768 = vmatpush1.msra.mxu0 %v2452
        %2769 = vmatprep.subr.mxu0 0.0
        %2770 = vmatpush1.msra.mxu0 %v2458
        %2771 = vmatprep.subr.mxu0 0.0
        %2772 = vmatpush1.msra.mxu0 %v2464
        %2773 = vmatprep.subr.mxu0 0.0
        %2774 = vmatpush1.msra.mxu0 0.0
        %2775 = vmatprep.subr.mxu0 0.0
        %2776 = vmatpush1.msra.mxu0 0.0
        %2777 = vmatprep.subr.mxu0 0.0
        %2778 = vmatpush1.msra.mxu0 0.0
        %2779 = vmatprep.subr.mxu0 0.0
        %2780 = vmatpush1.msra.mxu0 0.0
        %2781 = vmatprep.subr.mxu0 0.0
        %2782 = vmatpush1.msra.mxu0 0.0
        %2783 = vmatprep.subr.mxu0 0.0
        %2784 = vmatpush1.msra.mxu0 0.0
        %2785 = vmatprep.subr.mxu0 0.0
        %2786 = vmatpush1.msra.mxu0 0.0
        %2787 = vmatprep.subr.mxu0 0.0
        %2788 = vmatpush1.msra.mxu0 0.0
        %2789 = vmatprep.subr.mxu0 0.0
        %2790 = vmatpush1.msra.mxu0 0.0
        %2791 = vmatprep.subr.mxu0 0.0
        %2792 = vmatpush1.msra.mxu0 0.0
        %2793 = vmatprep.subr.mxu0 0.0
        %2794 = vmatpush1.msra.mxu0 0.0
        %2795 = vmatprep.subr.mxu0 0.0
        %2796 = vmatpush1.msra.mxu0 0.0
        %2797 = vmatprep.subr.mxu0 0.0
        %2798 = vmatpush1.msra.mxu0 0.0
        %2799 = vmatprep.subr.mxu0 0.0
        %2800 = vmatpush1.msra.mxu0 0.0
        %2801 = vmatprep.subr.mxu0 0.0
        %2802 = vmatpush1.msra.mxu0 0.0
        %2803 = vmatprep.subr.mxu0 0.0
        %2804 = vmatpush1.msra.mxu0 0.0
        %2805 = vmatprep.mubr.f32.mxu0 0.0
        %2806 = vmatmul.mubr.f32.gmra.mrb[0].mxu0 %v2662
        %v2807 = vpop.f32.mrb[0].mxu0
        %v2808 = vadd.f32 0.0, %v2807
        %v2809 = vpop.f32.mrb[0].mxu0
        %2810 = vmatprep.mubr.f32.mxu0 0.0
        %2811 = vmatmul.mubr.f32.gmra.mrb[0].mxu0 %v2664
        %v2812 = vpop.f32.mrb[0].mxu0
        %v2813 = vadd.f32 0.0, %v2812
        %v2814 = vpop.f32.mrb[0].mxu0
        %2815 = vmatprep.mubr.f32.mxu0 0.0
        %2816 = vmatmul.mubr.f32.gmra.mrb[0].mxu0 %v2666
        %v2817 = vpop.f32.mrb[0].mxu0
        %v2818 = vadd.f32 0.0, %v2817
        %v2819 = vpop.f32.mrb[0].mxu0
        %2820 = vmatprep.mubr.f32.mxu0 0.0
        %2821 = vmatmul.mubr.f32.gmra.mrb[0].mxu0 %v2668
        %v2822 = vpop.f32.mrb[0].mxu0
        %v2823 = vadd.f32 0.0, %v2822
        %v2824 = vpop.f32.mrb[0].mxu0
        %2825 = vmatprep.mubr.f32.mxu0 0.0
        %2826 = vmatmul.mubr.f32.gmra.mrb[0].mxu0 %v2670
        %v2827 = vpop.f32.mrb[0].mxu0
        %v2828 = vadd.f32 0.0, %v2827
        %v2829 = vpop.f32.mrb[0].mxu0
        %2830 = vmatprep.mubr.f32.mxu0 0.0
        %2831 = vmatmul.mubr.f32.gmra.mrb[0].mxu0 %v2672
        %v2832 = vpop.f32.mrb[0].mxu0
        %v2833 = vadd.f32 0.0, %v2832
        %v2834 = vpop.f32.mrb[0].mxu0
        %2835 = vmatprep.mubr.f32.mxu0 0.0
        %2836 = vmatmul.mubr.f32.gmra.mrb[0].mxu0 %v2674
        %v2837 = vpop.f32.mrb[0].mxu0
        %v2838 = vadd.f32 0.0, %v2837
        %v2839 = vpop.f32.mrb[0].mxu0
        %2840 = vmatprep.mubr.f32.mxu0 0.0
        %2841 = vmatmul.mubr.f32.gmra.mrb[0].mxu0 %v2676
        %v2842 = vpop.f32.mrb[0].mxu0
        %v2843 = vadd.f32 0.0, %v2842
        %v2844 = vpop.f32.mrb[0].mxu0
        %2845 = vmatprep.mubr.f32.mxu0 0.0
        %2846 = vmatmul.mubr.f32.gmra.mrb[0].mxu0 %v2678
        %v2847 = vpop.f32.mrb[0].mxu0
        %v2848 = vadd.f32 0.0, %v2847
        %v2849 = vpop.f32.mrb[0].mxu0
        %2850 = vmatprep.mubr.f32.mxu0 0.0
        %2851 = vmatmul.mubr.f32.gmra.mrb[0].mxu0 %v2680
        %v2852 = vpop.f32.mrb[0].mxu0
        %v2853 = vadd.f32 0.0, %v2852
        %v2854 = vpop.f32.mrb[0].mxu0
        %2855 = vmatprep.mubr.f32.mxu0 0.0
        %2856 = vmatmul.mubr.f32.gmra.mrb[0].mxu0 %v2682
        %v2857 = vpop.f32.mrb[0].mxu0
        %v2858 = vadd.f32 0.0, %v2857
        %v2859 = vpop.f32.mrb[0].mxu0
        %2860 = vmatprep.mubr.f32.mxu0 0.0
        %2861 = vmatmul.mubr.f32.gmra.mrb[0].mxu0 %v2684
        %v2862 = vpop.f32.mrb[0].mxu0
        %v2863 = vadd.f32 0.0, %v2862
        %v2864 = vpop.f32.mrb[0].mxu0
        %2865 = vmatprep.mubr.f32.mxu0 0.0
        %2866 = vmatmul.mubr.f32.gmra.mrb[0].mxu0 %v2686
        %v2867 = vpop.f32.mrb[0].mxu0
        %v2868 = vadd.f32 0.0, %v2867
        %v2869 = vpop.f32.mrb[0].mxu0
        %2870 = vmatprep.mubr.f32.mxu0 0.0
        %2871 = vmatmul.mubr.f32.gmra.mrb[0].mxu0 %v2688
        %v2872 = vpop.f32.mrb[0].mxu0
        %v2873 = vadd.f32 0.0, %v2872
        %v2874 = vpop.f32.mrb[0].mxu0
        %2875 = vmatprep.mubr.f32.mxu0 0.0
        %2876 = vmatmul.mubr.f32.gmra.mrb[0].mxu0 %v2690
        %v2877 = vpop.f32.mrb[0].mxu0
        %v2878 = vadd.f32 0.0, %v2877
        %v2879 = vpop.f32.mrb[0].mxu0
        %2880 = vmatprep.mubr.f32.mxu0 0.0
        %2881 = vmatmul.mubr.f32.gmra.mrb[0].mxu0 %v2692
        %v2882 = vpop.f32.mrb[0].mxu0
        %v2883 = vadd.f32 0.0, %v2882
        %v2884 = vpop.f32.mrb[0].mxu0
        %2885 = vdwg.mxu0
        %v2886 = vmul.f32 %v2808, %v2725
        %v2887 = vmul.f32 %v2813, %v2726
        %v2888 = vmul.f32 %v2818, %v2727
        %v2889 = vmul.f32 %v2823, %v2728
        %v2890 = vmul.f32 %v2828, %v2729
        %v2891 = vmul.f32 %v2833, %v2730
        %v2892 = vmul.f32 %v2838, %v2731
        %v2893 = vmul.f32 %v2843, %v2732
        %v2894 = vmul.f32 %v2848, %v2733
        %v2895 = vmul.f32 %v2853, %v2734
        %v2896 = vmul.f32 %v2858, %v2735
        %v2897 = vmul.f32 %v2863, %v2736
        %v2898 = vmul.f32 %v2868, %v2737
        %v2899 = vmul.f32 %v2873, %v2738
        %v2900 = vmul.f32 %v2878, %v2739
        %v2901 = vmul.f32 %v2883, %v2740
        %2902 = vst [vmem:[%s1020] sm:$0xff] %v2886
        %2903 = vst [vmem:[%s1020 + $0x8] sm:$0xff] %v2887
        %2904 = vst [vmem:[%s1020 + $0x10] sm:$0xff] %v2888
        %2905 = vst [vmem:[%s1020 + $0x18] sm:$0xff] %v2889
        %2906 = vst [vmem:[%s1020 + $0x20] sm:$0xff] %v2890
        %2907 = vst [vmem:[%s1020 + $0x28] sm:$0xff] %v2891
        %2908 = vst [vmem:[%s1020 + $0x30] sm:$0xff] %v2892
        %2909 = vst [vmem:[%s1020 + $0x38] sm:$0xff] %v2893
        %2910 = vst [vmem:[%s1020 + $0x40] sm:$0xff] %v2894
        %2911 = vst [vmem:[%s1020 + $0x48] sm:$0xff] %v2895
        %2912 = vst [vmem:[%s1020 + $0x50] sm:$0xff] %v2896
        %2913 = vst [vmem:[%s1020 + $0x58] sm:$0xff] %v2897
        %2914 = vst [vmem:[%s1020 + $0x60] sm:$0xff] %v2898
        %2915 = vst [vmem:[%s1020 + $0x68] sm:$0xff] %v2899
        %2916 = vst [vmem:[%s1020 + $0x70] sm:$0xff] %v2900
        %2917 = vst [vmem:[%s1020 + $0x78] sm:$0xff] %v2901
        %2918 = vmatprep.subr.mxu0 0.0
        %2919 = vmatpush1.xpose.msra.mxu0 %v2054
        %2920 = vmatprep.subr.mxu0 0.0
        %2921 = vmatpush1.xpose.msra.mxu0 %v2060
        %2922 = vmatprep.subr.mxu0 0.0
        %2923 = vmatpush1.xpose.msra.mxu0 %v2066
        %2924 = vmatprep.subr.mxu0 0.0
        %2925 = vmatpush1.xpose.msra.mxu0 %v2072
        %2926 = vmatprep.subr.mxu0 0.0
        %2927 = vmatpush1.xpose.msra.mxu0 %v2078
        %2928 = vmatprep.subr.mxu0 0.0
        %2929 = vmatpush1.xpose.msra.mxu0 %v2084
        %2930 = vmatprep.subr.mxu0 0.0
        %2931 = vmatpush1.xpose.msra.mxu0 %v2090
        %2932 = vmatprep.subr.mxu0 0.0
        %2933 = vmatpush1.xpose.msra.mxu0 %v2096
        %2934 = vmatprep.subr.mxu0 0.0
        %2935 = vmatpush1.xpose.msra.mxu0 %v2102
        %2936 = vmatprep.subr.mxu0 0.0
        %2937 = vmatpush1.xpose.msra.mxu0 %v2108
        %2938 = vmatprep.subr.mxu0 0.0
        %2939 = vmatpush1.xpose.msra.mxu0 %v2114
        %2940 = vmatprep.subr.mxu0 0.0
        %2941 = vmatpush1.xpose.msra.mxu0 %v2120
        %2942 = vmatprep.subr.mxu0 0.0
        %2943 = vmatpush1.xpose.msra.mxu0 %v2126
        %2944 = vmatprep.subr.mxu0 0.0
        %2945 = vmatpush1.xpose.msra.mxu0 %v2132
        %2946 = vmatprep.subr.mxu0 0.0
        %2947 = vmatpush1.xpose.msra.mxu0 %v2138
        %2948 = vmatprep.subr.mxu0 0.0
        %2949 = vmatpush1.xpose.msra.mxu0 %v2144
        %2950 = vmatprep.subr.mxu0 0.0
        %2951 = vmatpush1.xpose.msra.mxu0 0.0
        %2952 = vmatprep.subr.mxu0 0.0
        %2953 = vmatpush1.xpose.msra.mxu0 0.0
        %2954 = vmatprep.subr.mxu0 0.0
        %2955 = vmatpush1.xpose.msra.mxu0 0.0
        %2956 = vmatprep.subr.mxu0 0.0
        %2957 = vmatpush1.xpose.msra.mxu0 0.0
        %2958 = vmatprep.subr.mxu0 0.0
        %2959 = vmatpush1.xpose.msra.mxu0 0.0
        %2960 = vmatprep.subr.mxu0 0.0
        %2961 = vmatpush1.xpose.msra.mxu0 0.0
        %2962 = vmatprep.subr.mxu0 0.0
        %2963 = vmatpush1.xpose.msra.mxu0 0.0
        %2964 = vmatprep.subr.mxu0 0.0
        %2965 = vmatpush1.xpose.msra.mxu0 0.0
        %2966 = vmatprep.subr.mxu0 0.0
        %2967 = vmatpush1.xpose.msra.mxu0 0.0
        %2968 = vmatprep.subr.mxu0 0.0
        %2969 = vmatpush1.xpose.msra.mxu0 0.0
        %2970 = vmatprep.subr.mxu0 0.0
        %2971 = vmatpush1.xpose.msra.mxu0 0.0
        %2972 = vmatprep.subr.mxu0 0.0
        %2973 = vmatpush1.xpose.msra.mxu0 0.0
        %2974 = vmatprep.subr.mxu0 0.0
        %2975 = vmatpush1.xpose.msra.mxu0 0.0
        %2976 = vmatprep.subr.mxu0 0.0
        %2977 = vmatpush1.xpose.msra.mxu0 0.0
        %2978 = vmatprep.subr.mxu0 0.0
        %2979 = vmatpush1.xpose.msra.mxu0 0.0
        %2980 = vmatprep.subr.mxu0 0.0
        %2981 = vmatpush1.xpose.msra.mxu0 0.0
        %2982 = vmatprep.mubr.f32.mxu0 0.0
        %2983 = vmatmul.mubr.f32.gmra.mrb[0].mxu0 %v1732
        %v2984 = vpop.f32.mrb[0].mxu0
        %v2985 = vadd.f32 0.0, %v2984
        %v2986 = vpop.f32.mrb[0].mxu0
        %2987 = vmatprep.mubr.f32.mxu0 0.0
        %2988 = vmatmul.mubr.f32.gmra.mrb[0].mxu0 %v1738
        %v2989 = vpop.f32.mrb[0].mxu0
        %v2990 = vadd.f32 0.0, %v2989
        %v2991 = vpop.f32.mrb[0].mxu0
        %2992 = vmatprep.mubr.f32.mxu0 0.0
        %2993 = vmatmul.mubr.f32.gmra.mrb[0].mxu0 %v1744
        %v2994 = vpop.f32.mrb[0].mxu0
        %v2995 = vadd.f32 0.0, %v2994
        %v2996 = vpop.f32.mrb[0].mxu0
        %2997 = vmatprep.mubr.f32.mxu0 0.0
        %2998 = vmatmul.mubr.f32.gmra.mrb[0].mxu0 %v1750
        %v2999 = vpop.f32.mrb[0].mxu0
        %v3000 = vadd.f32 0.0, %v2999
        %v3001 = vpop.f32.mrb[0].mxu0
        %3002 = vmatprep.mubr.f32.mxu0 0.0
        %3003 = vmatmul.mubr.f32.gmra.mrb[0].mxu0 %v1756
        %v3004 = vpop.f32.mrb[0].mxu0
        %v3005 = vadd.f32 0.0, %v3004
        %v3006 = vpop.f32.mrb[0].mxu0
        %3007 = vmatprep.mubr.f32.mxu0 0.0
        %3008 = vmatmul.mubr.f32.gmra.mrb[0].mxu0 %v1762
        %v3009 = vpop.f32.mrb[0].mxu0
        %v3010 = vadd.f32 0.0, %v3009
        %v3011 = vpop.f32.mrb[0].mxu0
        %3012 = vmatprep.mubr.f32.mxu0 0.0
        %3013 = vmatmul.mubr.f32.gmra.mrb[0].mxu0 %v1768
        %v3014 = vpop.f32.mrb[0].mxu0
        %v3015 = vadd.f32 0.0, %v3014
        %v3016 = vpop.f32.mrb[0].mxu0
        %3017 = vmatprep.mubr.f32.mxu0 0.0
        %3018 = vmatmul.mubr.f32.gmra.mrb[0].mxu0 %v1774
        %v3019 = vpop.f32.mrb[0].mxu0
        %v3020 = vadd.f32 0.0, %v3019
        %v3021 = vpop.f32.mrb[0].mxu0
        %3022 = vmatprep.mubr.f32.mxu0 0.0
        %3023 = vmatmul.mubr.f32.gmra.mrb[0].mxu0 %v1780
        %v3024 = vpop.f32.mrb[0].mxu0
        %v3025 = vadd.f32 0.0, %v3024
        %v3026 = vpop.f32.mrb[0].mxu0
        %3027 = vmatprep.mubr.f32.mxu0 0.0
        %3028 = vmatmul.mubr.f32.gmra.mrb[0].mxu0 %v1786
        %v3029 = vpop.f32.mrb[0].mxu0
        %v3030 = vadd.f32 0.0, %v3029
        %v3031 = vpop.f32.mrb[0].mxu0
        %3032 = vmatprep.mubr.f32.mxu0 0.0
        %3033 = vmatmul.mubr.f32.gmra.mrb[0].mxu0 %v1792
        %v3034 = vpop.f32.mrb[0].mxu0
        %v3035 = vadd.f32 0.0, %v3034
        %v3036 = vpop.f32.mrb[0].mxu0
        %3037 = vmatprep.mubr.f32.mxu0 0.0
        %3038 = vmatmul.mubr.f32.gmra.mrb[0].mxu0 %v1798
        %v3039 = vpop.f32.mrb[0].mxu0
        %v3040 = vadd.f32 0.0, %v3039
        %v3041 = vpop.f32.mrb[0].mxu0
        %3042 = vmatprep.mubr.f32.mxu0 0.0
        %3043 = vmatmul.mubr.f32.gmra.mrb[0].mxu0 %v1804
        %v3044 = vpop.f32.mrb[0].mxu0
        %v3045 = vadd.f32 0.0, %v3044
        %v3046 = vpop.f32.mrb[0].mxu0
        %3047 = vmatprep.mubr.f32.mxu0 0.0
        %3048 = vmatmul.mubr.f32.gmra.mrb[0].mxu0 %v1810
        %v3049 = vpop.f32.mrb[0].mxu0
        %v3050 = vadd.f32 0.0, %v3049
        %v3051 = vpop.f32.mrb[0].mxu0
        %3052 = vmatprep.mubr.f32.mxu0 0.0
        %3053 = vmatmul.mubr.f32.gmra.mrb[0].mxu0 %v1816
        %v3054 = vpop.f32.mrb[0].mxu0
        %v3055 = vadd.f32 0.0, %v3054
        %v3056 = vpop.f32.mrb[0].mxu0
        %3057 = vmatprep.mubr.f32.mxu0 0.0
        %3058 = vmatmul.mubr.f32.gmra.mrb[0].mxu0 %v1822
        %v3059 = vpop.f32.mrb[0].mxu0
        %v3060 = vadd.f32 0.0, %v3059
        %v3061 = vpop.f32.mrb[0].mxu0
        %3062 = vdwg.mxu0
        %3063 = vmax.xlane.f32.xlu0 %v2985
        %v3064 = vpop.xlane.xlu0 %3063
        %3065 = vmax.xlane.f32.xlu0 %v2990
        %v3066 = vpop.xlane.xlu0 %3065
        %3067 = vmax.xlane.f32.xlu0 %v2995
        %v3068 = vpop.xlane.xlu0 %3067
        %3069 = vmax.xlane.f32.xlu0 %v3000
        %v3070 = vpop.xlane.xlu0 %3069
        %3071 = vmax.xlane.f32.xlu0 %v3005
        %v3072 = vpop.xlane.xlu0 %3071
        %3073 = vmax.xlane.f32.xlu0 %v3010
        %v3074 = vpop.xlane.xlu0 %3073
        %3075 = vmax.xlane.f32.xlu0 %v3015
        %v3076 = vpop.xlane.xlu0 %3075
        %3077 = vmax.xlane.f32.xlu0 %v3020
        %v3078 = vpop.xlane.xlu0 %3077
        %3079 = vmax.xlane.f32.xlu0 %v3025
        %v3080 = vpop.xlane.xlu0 %3079
        %3081 = vmax.xlane.f32.xlu0 %v3030
        %v3082 = vpop.xlane.xlu0 %3081
        %3083 = vmax.xlane.f32.xlu0 %v3035
        %v3084 = vpop.xlane.xlu0 %3083
        %3085 = vmax.xlane.f32.xlu0 %v3040
        %v3086 = vpop.xlane.xlu0 %3085
        %3087 = vmax.xlane.f32.xlu0 %v3045
        %v3088 = vpop.xlane.xlu0 %3087
        %3089 = vmax.xlane.f32.xlu0 %v3050
        %v3090 = vpop.xlane.xlu0 %3089
        %3091 = vmax.xlane.f32.xlu0 %v3055
        %v3092 = vpop.xlane.xlu0 %3091
        %3093 = vmax.xlane.f32.xlu0 %v3060
        %v3094 = vpop.xlane.xlu0 %3093
        %v3095 = vsub.f32 %v2985, %v3064
        %v3096 = vsub.f32 %v2990, %v3066
        %v3097 = vsub.f32 %v2995, %v3068
        %v3098 = vsub.f32 %v3000, %v3070
        %v3099 = vsub.f32 %v3005, %v3072
        %v3100 = vsub.f32 %v3010, %v3074
        %v3101 = vsub.f32 %v3015, %v3076
        %v3102 = vsub.f32 %v3020, %v3078
        %v3103 = vsub.f32 %v3025, %v3080
        %v3104 = vsub.f32 %v3030, %v3082
        %v3105 = vsub.f32 %v3035, %v3084
        %v3106 = vsub.f32 %v3040, %v3086
        %v3107 = vsub.f32 %v3045, %v3088
        %v3108 = vsub.f32 %v3050, %v3090
        %v3109 = vsub.f32 %v3055, %v3092
        %v3110 = vsub.f32 %v3060, %v3094
        %v3111 = vmul.f32 %v3095, 1.442695
        %v3112 = vpow.pop %v3111
        %v3113 = vmul.f32 %v3096, 1.442695
        %v3114 = vpow.pop %v3113
        %v3115 = vmul.f32 %v3097, 1.442695
        %v3116 = vpow.pop %v3115
        %v3117 = vmul.f32 %v3098, 1.442695
        %v3118 = vpow.pop %v3117
        %v3119 = vmul.f32 %v3099, 1.442695
        %v3120 = vpow.pop %v3119
        %v3121 = vmul.f32 %v3100, 1.442695
        %v3122 = vpow.pop %v3121
        %v3123 = vmul.f32 %v3101, 1.442695
        %v3124 = vpow.pop %v3123
        %v3125 = vmul.f32 %v3102, 1.442695
        %v3126 = vpow.pop %v3125
        %v3127 = vmul.f32 %v3103, 1.442695
        %v3128 = vpow.pop %v3127
        %v3129 = vmul.f32 %v3104, 1.442695
        %v3130 = vpow.pop %v3129
        %v3131 = vmul.f32 %v3105, 1.442695
        %v3132 = vpow.pop %v3131
        %v3133 = vmul.f32 %v3106, 1.442695
        %v3134 = vpow.pop %v3133
        %v3135 = vmul.f32 %v3107, 1.442695
        %v3136 = vpow.pop %v3135
        %v3137 = vmul.f32 %v3108, 1.442695
        %v3138 = vpow.pop %v3137
        %v3139 = vmul.f32 %v3109, 1.442695
        %v3140 = vpow.pop %v3139
        %v3141 = vmul.f32 %v3110, 1.442695
        %v3142 = vpow.pop %v3141
        %3143 = vadd.xlane.f32.xlu0 %v3112
        %v3144 = vpop.xlane.xlu0 %3143
        %3145 = vadd.xlane.f32.xlu0 %v3114
        %v3146 = vpop.xlane.xlu0 %3145
        %3147 = vadd.xlane.f32.xlu0 %v3116
        %v3148 = vpop.xlane.xlu0 %3147
        %3149 = vadd.xlane.f32.xlu0 %v3118
        %v3150 = vpop.xlane.xlu0 %3149
        %3151 = vadd.xlane.f32.xlu0 %v3120
        %v3152 = vpop.xlane.xlu0 %3151
        %3153 = vadd.xlane.f32.xlu0 %v3122
        %v3154 = vpop.xlane.xlu0 %3153
        %3155 = vadd.xlane.f32.xlu0 %v3124
        %v3156 = vpop.xlane.xlu0 %3155
        %3157 = vadd.xlane.f32.xlu0 %v3126
        %v3158 = vpop.xlane.xlu0 %3157
        %3159 = vadd.xlane.f32.xlu0 %v3128
        %v3160 = vpop.xlane.xlu0 %3159
        %3161 = vadd.xlane.f32.xlu0 %v3130
        %v3162 = vpop.xlane.xlu0 %3161
        %3163 = vadd.xlane.f32.xlu0 %v3132
        %v3164 = vpop.xlane.xlu0 %3163
        %3165 = vadd.xlane.f32.xlu0 %v3134
        %v3166 = vpop.xlane.xlu0 %3165
        %3167 = vadd.xlane.f32.xlu0 %v3136
        %v3168 = vpop.xlane.xlu0 %3167
        %3169 = vadd.xlane.f32.xlu0 %v3138
        %v3170 = vpop.xlane.xlu0 %3169
        %3171 = vadd.xlane.f32.xlu0 %v3140
        %v3172 = vpop.xlane.xlu0 %3171
        %3173 = vadd.xlane.f32.xlu0 %v3142
        %v3174 = vpop.xlane.xlu0 %3173
        %v3175 = vrcp.pop %v3144
        %v3176 = vrcp.pop %v3146
        %v3177 = vrcp.pop %v3148
        %v3178 = vrcp.pop %v3150
        %v3179 = vrcp.pop %v3152
        %v3180 = vrcp.pop %v3154
        %v3181 = vrcp.pop %v3156
        %v3182 = vrcp.pop %v3158
        %v3183 = vrcp.pop %v3160
        %v3184 = vrcp.pop %v3162
        %v3185 = vrcp.pop %v3164
        %v3186 = vrcp.pop %v3166
        %v3187 = vrcp.pop %v3168
        %v3188 = vrcp.pop %v3170
        %v3189 = vrcp.pop %v3172
        %v3190 = vrcp.pop %v3174
        %3191 = vmatprep.subr.mxu0 0.0
        %3192 = vmatpush1.msra.mxu0 %v2376
        %3193 = vmatprep.subr.mxu0 0.0
        %3194 = vmatpush1.msra.mxu0 %v2382
        %3195 = vmatprep.subr.mxu0 0.0
        %3196 = vmatpush1.msra.mxu0 %v2388
        %3197 = vmatprep.subr.mxu0 0.0
        %3198 = vmatpush1.msra.mxu0 %v2394
        %3199 = vmatprep.subr.mxu0 0.0
        %3200 = vmatpush1.msra.mxu0 %v2400
        %3201 = vmatprep.subr.mxu0 0.0
        %3202 = vmatpush1.msra.mxu0 %v2406
        %3203 = vmatprep.subr.mxu0 0.0
        %3204 = vmatpush1.msra.mxu0 %v2412
        %3205 = vmatprep.subr.mxu0 0.0
        %3206 = vmatpush1.msra.mxu0 %v2418
        %3207 = vmatprep.subr.mxu0 0.0
        %3208 = vmatpush1.msra.mxu0 %v2424
        %3209 = vmatprep.subr.mxu0 0.0
        %3210 = vmatpush1.msra.mxu0 %v2430
        %3211 = vmatprep.subr.mxu0 0.0
        %3212 = vmatpush1.msra.mxu0 %v2436
        %3213 = vmatprep.subr.mxu0 0.0
        %3214 = vmatpush1.msra.mxu0 %v2442
        %3215 = vmatprep.subr.mxu0 0.0
        %3216 = vmatpush1.msra.mxu0 %v2448
        %3217 = vmatprep.subr.mxu0 0.0
        %3218 = vmatpush1.msra.mxu0 %v2454
        %3219 = vmatprep.subr.mxu0 0.0
        %3220 = vmatpush1.msra.mxu0 %v2460
        %3221 = vmatprep.subr.mxu0 0.0
        %3222 = vmatpush1.msra.mxu0 %v2466
        %3223 = vmatprep.subr.mxu0 0.0
        %3224 = vmatpush1.msra.mxu0 0.0
        %3225 = vmatprep.subr.mxu0 0.0
        %3226 = vmatpush1.msra.mxu0 0.0
        %3227 = vmatprep.subr.mxu0 0.0
        %3228 = vmatpush1.msra.mxu0 0.0
        %3229 = vmatprep.subr.mxu0 0.0
        %3230 = vmatpush1.msra.mxu0 0.0
        %3231 = vmatprep.subr.mxu0 0.0
        %3232 = vmatpush1.msra.mxu0 0.0
        %3233 = vmatprep.subr.mxu0 0.0
        %3234 = vmatpush1.msra.mxu0 0.0
        %3235 = vmatprep.subr.mxu0 0.0
        %3236 = vmatpush1.msra.mxu0 0.0
        %3237 = vmatprep.subr.mxu0 0.0
        %3238 = vmatpush1.msra.mxu0 0.0
        %3239 = vmatprep.subr.mxu0 0.0
        %3240 = vmatpush1.msra.mxu0 0.0
        %3241 = vmatprep.subr.mxu0 0.0
        %3242 = vmatpush1.msra.mxu0 0.0
        %3243 = vmatprep.subr.mxu0 0.0
        %3244 = vmatpush1.msra.mxu0 0.0
        %3245 = vmatprep.subr.mxu0 0.0
        %3246 = vmatpush1.msra.mxu0 0.0
        %3247 = vmatprep.subr.mxu0 0.0
        %3248 = vmatpush1.msra.mxu0 0.0
        %3249 = vmatprep.subr.mxu0 0.0
        %3250 = vmatpush1.msra.mxu0 0.0
        %3251 = vmatprep.subr.mxu0 0.0
        %3252 = vmatpush1.msra.mxu0 0.0
        %3253 = vmatprep.subr.mxu0 0.0
        %3254 = vmatpush1.msra.mxu0 0.0
        %3255 = vmatprep.mubr.f32.mxu0 0.0
        %3256 = vmatmul.mubr.f32.gmra.mrb[0].mxu0 %v3112
        %v3257 = vpop.f32.mrb[0].mxu0
        %v3258 = vadd.f32 0.0, %v3257
        %v3259 = vpop.f32.mrb[0].mxu0
        %3260 = vmatprep.mubr.f32.mxu0 0.0
        %3261 = vmatmul.mubr.f32.gmra.mrb[0].mxu0 %v3114
        %v3262 = vpop.f32.mrb[0].mxu0
        %v3263 = vadd.f32 0.0, %v3262
        %v3264 = vpop.f32.mrb[0].mxu0
        %3265 = vmatprep.mubr.f32.mxu0 0.0
        %3266 = vmatmul.mubr.f32.gmra.mrb[0].mxu0 %v3116
        %v3267 = vpop.f32.mrb[0].mxu0
        %v3268 = vadd.f32 0.0, %v3267
        %v3269 = vpop.f32.mrb[0].mxu0
        %3270 = vmatprep.mubr.f32.mxu0 0.0
        %3271 = vmatmul.mubr.f32.gmra.mrb[0].mxu0 %v3118
        %v3272 = vpop.f32.mrb[0].mxu0
        %v3273 = vadd.f32 0.0, %v3272
        %v3274 = vpop.f32.mrb[0].mxu0
        %3275 = vmatprep.mubr.f32.mxu0 0.0
        %3276 = vmatmul.mubr.f32.gmra.mrb[0].mxu0 %v3120
        %v3277 = vpop.f32.mrb[0].mxu0
        %v3278 = vadd.f32 0.0, %v3277
        %v3279 = vpop.f32.mrb[0].mxu0
        %3280 = vmatprep.mubr.f32.mxu0 0.0
        %3281 = vmatmul.mubr.f32.gmra.mrb[0].mxu0 %v3122
        %v3282 = vpop.f32.mrb[0].mxu0
        %v3283 = vadd.f32 0.0, %v3282
        %v3284 = vpop.f32.mrb[0].mxu0
        %3285 = vmatprep.mubr.f32.mxu0 0.0
        %3286 = vmatmul.mubr.f32.gmra.mrb[0].mxu0 %v3124
        %v3287 = vpop.f32.mrb[0].mxu0
        %v3288 = vadd.f32 0.0, %v3287
        %v3289 = vpop.f32.mrb[0].mxu0
        %3290 = vmatprep.mubr.f32.mxu0 0.0
        %3291 = vmatmul.mubr.f32.gmra.mrb[0].mxu0 %v3126
        %v3292 = vpop.f32.mrb[0].mxu0
        %v3293 = vadd.f32 0.0, %v3292
        %v3294 = vpop.f32.mrb[0].mxu0
        %3295 = vmatprep.mubr.f32.mxu0 0.0
        %3296 = vmatmul.mubr.f32.gmra.mrb[0].mxu0 %v3128
        %v3297 = vpop.f32.mrb[0].mxu0
        %v3298 = vadd.f32 0.0, %v3297
        %v3299 = vpop.f32.mrb[0].mxu0
        %3300 = vmatprep.mubr.f32.mxu0 0.0
        %3301 = vmatmul.mubr.f32.gmra.mrb[0].mxu0 %v3130
        %v3302 = vpop.f32.mrb[0].mxu0
        %v3303 = vadd.f32 0.0, %v3302
        %v3304 = vpop.f32.mrb[0].mxu0
        %3305 = vmatprep.mubr.f32.mxu0 0.0
        %3306 = vmatmul.mubr.f32.gmra.mrb[0].mxu0 %v3132
        %v3307 = vpop.f32.mrb[0].mxu0
        %v3308 = vadd.f32 0.0, %v3307
        %v3309 = vpop.f32.mrb[0].mxu0
        %3310 = vmatprep.mubr.f32.mxu0 0.0
        %3311 = vmatmul.mubr.f32.gmra.mrb[0].mxu0 %v3134
        %v3312 = vpop.f32.mrb[0].mxu0
        %v3313 = vadd.f32 0.0, %v3312
        %v3314 = vpop.f32.mrb[0].mxu0
        %3315 = vmatprep.mubr.f32.mxu0 0.0
        %3316 = vmatmul.mubr.f32.gmra.mrb[0].mxu0 %v3136
        %v3317 = vpop.f32.mrb[0].mxu0
        %v3318 = vadd.f32 0.0, %v3317
        %v3319 = vpop.f32.mrb[0].mxu0
        %3320 = vmatprep.mubr.f32.mxu0 0.0
        %3321 = vmatmul.mubr.f32.gmra.mrb[0].mxu0 %v3138
        %v3322 = vpop.f32.mrb[0].mxu0
        %v3323 = vadd.f32 0.0, %v3322
        %v3324 = vpop.f32.mrb[0].mxu0
        %3325 = vmatprep.mubr.f32.mxu0 0.0
        %3326 = vmatmul.mubr.f32.gmra.mrb[0].mxu0 %v3140
        %v3327 = vpop.f32.mrb[0].mxu0
        %v3328 = vadd.f32 0.0, %v3327
        %v3329 = vpop.f32.mrb[0].mxu0
        %3330 = vmatprep.mubr.f32.mxu0 0.0
        %3331 = vmatmul.mubr.f32.gmra.mrb[0].mxu0 %v3142
        %v3332 = vpop.f32.mrb[0].mxu0
        %v3333 = vadd.f32 0.0, %v3332
        %v3334 = vpop.f32.mrb[0].mxu0
        %3335 = vdwg.mxu0
        %v3336 = vmul.f32 %v3258, %v3175
        %v3337 = vmul.f32 %v3263, %v3176
        %v3338 = vmul.f32 %v3268, %v3177
        %v3339 = vmul.f32 %v3273, %v3178
        %v3340 = vmul.f32 %v3278, %v3179
        %v3341 = vmul.f32 %v3283, %v3180
        %v3342 = vmul.f32 %v3288, %v3181
        %v3343 = vmul.f32 %v3293, %v3182
        %v3344 = vmul.f32 %v3298, %v3183
        %v3345 = vmul.f32 %v3303, %v3184
        %v3346 = vmul.f32 %v3308, %v3185
        %v3347 = vmul.f32 %v3313, %v3186
        %v3348 = vmul.f32 %v3318, %v3187
        %v3349 = vmul.f32 %v3323, %v3188
        %v3350 = vmul.f32 %v3328, %v3189
        %v3351 = vmul.f32 %v3333, %v3190
        %s3352 = scalar_lea.vmem %s1020, 128
        %3353 = vst [vmem:[%s3352] sm:$0xff] %v3336
        %3354 = vst [vmem:[%s3352 + $0x8] sm:$0xff] %v3337
        %3355 = vst [vmem:[%s3352 + $0x10] sm:$0xff] %v3338
        %3356 = vst [vmem:[%s3352 + $0x18] sm:$0xff] %v3339
        %3357 = vst [vmem:[%s3352 + $0x20] sm:$0xff] %v3340
        %3358 = vst [vmem:[%s3352 + $0x28] sm:$0xff] %v3341
        %3359 = vst [vmem:[%s3352 + $0x30] sm:$0xff] %v3342
        %3360 = vst [vmem:[%s3352 + $0x38] sm:$0xff] %v3343
        %3361 = vst [vmem:[%s3352 + $0x40] sm:$0xff] %v3344
        %3362 = vst [vmem:[%s3352 + $0x48] sm:$0xff] %v3345
        %3363 = vst [vmem:[%s3352 + $0x50] sm:$0xff] %v3346
        %3364 = vst [vmem:[%s3352 + $0x58] sm:$0xff] %v3347
        %3365 = vst [vmem:[%s3352 + $0x60] sm:$0xff] %v3348
        %3366 = vst [vmem:[%s3352 + $0x68] sm:$0xff] %v3349
        %3367 = vst [vmem:[%s3352 + $0x70] sm:$0xff] %v3350
        %3368 = vst [vmem:[%s3352 + $0x78] sm:$0xff] %v3351
        %s3369 = smul.u32 2, %s18
        %p3370 = scmp.lt.s32.totalorder %s19, 1
        %s3371 = scalar_select %p3370, %s19, 1
        %p3372 = scmp.lt.s32.totalorder %s3369, 3
        %s3373 = scalar_select %p3372, %s3369, 3
        %s3374 = smul.addr %s3373, 16
        %s3375 = smul.addr %s3371, 64
        %s3376 = sadd.s32 %s3374, %s3375
        %s3377 = smul.addr %s3376, 8
        %s3378 = scalar_lea.vmem %s3, %s3377
        // Predicated region
        $region56: #{multi_head_attention.2} parent=50 // pred_check
          %p3379 = pneg %p124
        $region57: #{multi_head_attention.2} parent=50 // pred_check_branch
          %3381 = sbr.rel (%p3379) target = $region59
        $region58: #{multi_head_attention.2} parent=50 // pred_region
          %s3382 = smul.u32 2, %s18
        $region59: #{multi_head_attention.2} parent=50 // pred_fallthru
          _
      $region51: #{multi_head_attention.2} parent=5 // pred_fallthru
        _
      %p3383 = scmp.le.s32.totalorder 2, %s9
      // Predicated region
      $region60: #{multi_head_attention.2} parent=5 // pred_check
        %p3384 = pneg %p3383
      $region61: #{multi_head_attention.2} parent=5 // pred_check_branch
        %3386 = sbr.rel (%p3384) target = $region63
      $region62: #{multi_head_attention.2} parent=5 // pred_region
        %s3387 = ssub.s32 %s9, 2
        // Predicated region
        $region64: #{multi_head_attention.2} parent=62 // pred_check
          %p3388 = pneg %p130
        $region65: #{multi_head_attention.2} parent=62 // pred_check_branch
          %3390 = sbr.rel (%p3388) target = $region67
        $region66: #{multi_head_attention.2} parent=62 // pred_region
          %s3391 = smul.u32 2, %s20
          %p3392 = scmp.lt.s32.totalorder %s21, 1
          %s3393 = scalar_select %p3392, %s21, 1
          %p3394 = scmp.lt.s32.totalorder %s3391, 3
          %s3395 = scalar_select %p3394, %s3391, 3
          %s3396 = smul.addr %s3395, 16
          %s3397 = smul.addr %s3393, 64
          %s3398 = sadd.s32 %s3396, %s3397
          %s3399 = smul.addr %s3398, 8
          %s3400 = scalar_lea.vmem %s3, %s3399
        $region67: #{multi_head_attention.2} parent=62 // pred_fallthru
          _
      $region63: #{multi_head_attention.2} parent=5 // pred_fallthru
        _
    $region6: #{multi_head_attention.2} parent=1 // loop_footer
      %s13 = sadd.s32 1, %s9
    $region7: #{multi_head_attention.2} parent=1 // loop_footer_branch
      %8 = sbr.rel target = $region3
    $region8: #{multi_head_attention.2} parent=1 // loop_exit
      _

</llo_original>
